<compile_context>
chip_gen: v7x
topology: tpu7x:2x2x1
jax: 0.10.0
libtpu: 0.0.40
codegen_flags: <defaults>
</compile_context>

<pallas_src>
import jax
import jax.numpy as jnp
from jax.experimental import pallas as pl
from jax.experimental.pallas import tpu as pltpu


# ----------------------------------------------------------------------------
# Fused Pallas kernel: whole P-Net forward for B_TILE images per grid step.
# ----------------------------------------------------------------------------
def _pnet_kernel(x_ref, w1_ref, b1_ref, w2_ref, b2_ref, w3_ref, b3_ref,
                 wh_ref, bh_ref, sl_ref, o_ref, xpad_ref):
    f32 = jnp.float32
    Bt, H, W, Cin = x_ref.shape
    C1 = b1_ref.shape[1]
    H1, W1 = H, W                                   # conv1: 3x3, pad 1, stride 1
    Hp, Wp = (H1 - 3) // 2 + 1, (W1 - 3) // 2 + 1   # MaxPool2d(3, 2), floor mode
    H2, W2 = Hp - 2, Wp - 2                         # conv2: 3x3 valid
    H3, W3 = H2 - 2, W2 - 2                         # conv3: 3x3 valid
    HW3 = H3 * W3

    def prelu(v, a):
        return jnp.where(v >= 0, v, a * v)

    # (B, Hh, Ww, C) -> (B*Hh*Ww, C).  Pure reshape when Ww is 8-aligned
    # (layout-free sublane merge); otherwise slice+concat (always supported).
    def flatten_rows(t):
        B, Hh, Ww, C = t.shape
        if Ww % 8 == 0:
            return t.reshape(B * Hh * Ww, C)
        slabs = [t[b, h] for b in range(B) for h in range(Hh)]
        return jnp.concatenate(slabs, axis=0)

    # (B*Hh*Ww, C) -> (B, Hh, Ww, C), same alignment rule.
    def unflatten_rows(t, B, Hh, Ww):
        C = t.shape[-1]
        if Ww % 8 == 0:
            return t.reshape(B, Hh, Ww, C)
        slabs = [t[r * Ww:(r + 1) * Ww][None] for r in range(B * Hh)]
        return jnp.concatenate(slabs, axis=0).reshape(B, Hh, Ww, C)

    # 3x3 valid im2col: 9 shifted slices + ONE channel concat + row flatten.
    def im2col3x3(t, Ho, Wo):
        taps = [t[:, kh:kh + Ho, kw:kw + Wo, :]
                for kh in range(3) for kw in range(3)]
        return flatten_rows(jnp.concatenate(taps, axis=-1))   # (B*Ho*Wo, 9*C)

    # ---- conv1 zero padding via persistent VMEM scratch ----------------------
    # Border re-zeroed every step (tiny), interior overwritten every step.
    zrow = jnp.zeros((Bt, 1, W + 2, Cin), f32)
    zcol = jnp.zeros((Bt, H, 1, Cin), f32)
    xpad_ref[:, 0:1, :, :] = zrow
    xpad_ref[:, H + 1:H + 2, :, :] = zrow
    xpad_ref[:, 1:H + 1, 0:1, :] = zcol
    xpad_ref[:, 1:H + 1, W + 1:W + 2, :] = zcol
    xpad_ref[:, 1:H + 1, 1:W + 1, :] = x_ref[...]
    xp = xpad_ref[...]                                         # (Bt, H+2, W+2, Cin)

    # ---- conv1 (+PReLU): one (Bt*H1*W1, 9*Cin) x (9*Cin, C1) matmul ----------
    patches1 = im2col3x3(xp, H1, W1)
    y1 = jnp.dot(patches1, w1_ref[...], preferred_element_type=f32)
    y1 = prelu(y1 + b1_ref[...], sl_ref[0, 0])
    y1 = unflatten_rows(y1, Bt, H1, W1)                        # (Bt, H1, W1, C1)

    # ---- MaxPool2d(3, 2), floor mode, vectorized -----------------------------
    # rows: sliding 3-window max, then pick even starts via leading-dim reshape
    hmax = jnp.maximum(jnp.maximum(y1[:, 0:H1 - 2], y1[:, 1:H1 - 1]), y1[:, 2:H1])
    if hmax.shape[1] < 2 * Hp:                                 # odd-H fallback
        hmax = jnp.concatenate([hmax, hmax[:, -1:]], axis=1)
    rmax = hmax[:, :2 * Hp].reshape(Bt, Hp, 2, W1, C1)[:, :, 0]  # (Bt, Hp, W1, C1)
    # cols: sliding 3-window max, even-column pick (concat kept: a reshape here
    # would create a 2-element sublane tile — avoided for lowering robustness)
    wmax = jnp.maximum(jnp.maximum(rmax[:, :, 0:W1 - 2], rmax[:, :, 1:W1 - 1]),
                       rmax[:, :, 2:W1])                       # (Bt, Hp, W1-2, C1)
    pooled = jnp.concatenate([wmax[:, :, 2 * j:2 * j + 1, :] for j in range(Wp)],
                             axis=2)                           # (Bt, Hp, Wp, C1)

    # ---- conv2 (+PReLU): one (Bt*H2*W2, 9*C1) x (9*C1, C2) matmul ------------
    patches2 = im2col3x3(pooled, H2, W2)
    y2 = jnp.dot(patches2, w2_ref[...], preferred_element_type=f32)
    x2 = prelu(y2 + b2_ref[...], sl_ref[0, 1])
    x2 = unflatten_rows(x2, Bt, H2, W2)                        # (Bt, H2, W2, C2)

    # ---- conv3 (+PReLU): one (Bt*H3*W3, 9*C2) x (9*C2, C3) matmul ------------
    patches3 = im2col3x3(x2, H3, W3)
    y3 = jnp.dot(patches3, w3_ref[...], preferred_element_type=f32)
    x3 = prelu(y3 + b3_ref[...], sl_ref[0, 2])                 # (Bt*H3*W3, C3)

    # ---- fused heads: 1x1 conv, Cout = 1 (cls, sigmoid) + 4 (box) ------------
    yh = jnp.dot(x3, wh_ref[...], preferred_element_type=f32) + bh_ref[...]
    col = jax.lax.broadcasted_iota(jnp.int32, yh.shape, 1)
    out2d = jnp.where(col == 0, jax.nn.sigmoid(yh), yh).astype(o_ref.dtype)
    for b in range(Bt):                                        # (HW3, 5) per image
        o_ref[b] = out2d[b * HW3:(b + 1) * HW3]


# ----------------------------------------------------------------------------
# pallas_call wrapper
# ----------------------------------------------------------------------------
def _choose_batch_tile(n):
    # Amortize per-grid-step overhead, but keep >=2 grid steps when N > 1 so
    # both v7x TensorCores are used ("parallel" grid axis).
    bt = min(8, max(1, n))
    while bt > 1 and -(-n // bt) < 2:
        bt -= 1
    return bt


def _pnet_pallas_call(x_nhwc, w1p, b1, w2p, b2, w3p, b3, whp, bh, slopes, b_tile):
    # TODO(synk): for pyramid-scale inputs add a row-striped grid axis (4-row
    # halo) so peak VMEM stays under v7x's 64 MiB; fine for small tiles here.
    N, H, W, Cin = x_nhwc.shape                     # N already padded to b_tile
    Hp, Wp = (H - 3) // 2 + 1, (W - 3) // 2 + 1
    H3, W3 = Hp - 4, Wp - 4
    M, Ch = H3 * W3, whp.shape[1]
    return pl.pallas_call(
        _pnet_kernel,
        out_shape=jax.ShapeDtypeStruct((N, M, Ch), jnp.float32),
        grid=(N // b_tile,),
        in_specs=[
            pl.BlockSpec((b_tile, H, W, Cin), lambda n: (n, 0, 0, 0)),
            pl.BlockSpec(w1p.shape, lambda n: (0, 0)),
            pl.BlockSpec(b1.shape, lambda n: (0, 0)),
            pl.BlockSpec(w2p.shape, lambda n: (0, 0)),
            pl.BlockSpec(b2.shape, lambda n: (0, 0)),
            pl.BlockSpec(w3p.shape, lambda n: (0, 0)),
            pl.BlockSpec(b3.shape, lambda n: (0, 0)),
            pl.BlockSpec(whp.shape, lambda n: (0, 0)),
            pl.BlockSpec(bh.shape, lambda n: (0, 0)),
            pl.BlockSpec((1, 3), lambda n: (0, 0),
                         memory_space=pltpu.MemorySpace.SMEM),
        ],
        out_specs=pl.BlockSpec((b_tile, M, Ch), lambda n: (n, 0, 0)),
        scratch_shapes=[pltpu.VMEM((b_tile, H + 2, W + 2, Cin), jnp.float32)],
        compiler_params=pltpu.CompilerParams(
            dimension_semantics=("parallel",),
            vmem_limit_bytes=32 * 1024 * 1024),
    )(x_nhwc, w1p, b1, w2p, b2, w3p, b3, whp, bh, slopes)


@jax.jit
def pnet_forward(x_nchw, params):
    x = jnp.transpose(x_nchw, (0, 2, 3, 1)).astype(jnp.float32)  # NCHW -> NHWC
    N, H, W, Cin = x.shape
    H3 = ((H - 3) // 2 + 1) - 4
    W3 = ((W - 3) // 2 + 1) - 4
    f32 = jnp.float32

    b_tile = _choose_batch_tile(N)
    n_pad = ((N + b_tile - 1) // b_tile) * b_tile
    if n_pad != N:
        x = jnp.concatenate([x, jnp.zeros((n_pad - N, H, W, Cin), f32)], axis=0)

    # Pre-pack weights as im2col matrices (KH*KW*Cin, Cout); fuse the two heads.
    w1p = params["w1"].reshape(-1, params["w1"].shape[-1]).astype(f32)   # (27, 10)
    w2p = params["w2"].reshape(-1, params["w2"].shape[-1]).astype(f32)   # (90, 16)
    w3p = params["w3"].reshape(-1, params["w3"].shape[-1]).astype(f32)   # (144, 32)
    whp = jnp.concatenate([params["wc"].reshape(-1, 1),
                           params["wo"].reshape(-1, 4)], axis=1).astype(f32)  # (32, 5)
    b1 = params["b1"].reshape(1, -1).astype(f32)
    b2 = params["b2"].reshape(1, -1).astype(f32)
    b3 = params["b3"].reshape(1, -1).astype(f32)
    bh = jnp.concatenate([params["bc"], params["bo"]]).reshape(1, -1).astype(f32)
    slopes = jnp.stack([params["a1"], params["a2"],
                        params["a3"]]).reshape(1, 3).astype(f32)

    out = _pnet_pallas_call(x, w1p, b1, w2p, b2, w3p, b3, whp, bh, slopes, b_tile)
    out = out[:N].reshape(N, H3, W3, 5)
    cls = jnp.transpose(out[..., 0:1], (0, 3, 1, 2))   # (N, 1, H3, W3)
    box = jnp.transpose(out[..., 1:5], (0, 3, 1, 2))   # (N, 4, H3, W3)
    return cls, box


# ----------------------------------------------------------------------------
# Parameter init (PyTorch-like) -- conv weights stored HWIO (KH, KW, Cin, Cout)
# ----------------------------------------------------------------------------
def init_params(key):
    def conv_init(k, ksize, cin, cout):
        kw, kb = jax.random.split(k)
        bound = 1.0 / float(cin * ksize * ksize) ** 0.5
        w = jax.random.uniform(kw, (ksize, ksize, cin, cout), jnp.float32, -bound, bound)
        b = jax.random.uniform(kb, (cout,), jnp.float32, -bound, bound)
        return w, b

    keys = jax.random.split(key, 5)
    w1, b1 = conv_init(keys[0], 3, 3, 10)
    w2, b2 = conv_init(keys[1], 3, 10, 16)
    w3, b3 = conv_init(keys[2], 3, 16, 32)
    wc, bc = conv_init(keys[3], 1, 32, 1)
    wo, bo = conv_init(keys[4], 1, 32, 4)
    return dict(
        w1=w1, b1=b1, a1=jnp.float32(0.25),   # nn.PReLU() default: single slope 0.25
        w2=w2, b2=b2, a2=jnp.float32(0.25),
        w3=w3, b3=b3, a3=jnp.float32(0.25),
        wc=wc, bc=bc, wo=wo, bo=bo)


# ----------------------------------------------------------------------------
# Pure-JAX reference (default precision, consistent with the kernel)
# ----------------------------------------------------------------------------
def pnet_reference(x_nchw, params):
    def conv(x, w_hwio, b, pad):
        w = jnp.transpose(w_hwio, (3, 2, 0, 1))  # -> OIHW
        y = jax.lax.conv_general_dilated(
            x, w, (1, 1), [(pad, pad), (pad, pad)],
            dimension_numbers=("NCHW", "OIHW", "NCHW"))
        return y + b[None, :, None, None]

    def prelu(x, a):
        return jnp.where(x >= 0, x, a * x)

    x = prelu(conv(x_nchw, params["w1"], params["b1"], 1), params["a1"])
    x = jax.lax.reduce_window(x, -jnp.inf, jax.lax.max,
                              (1, 1, 3, 3), (1, 1, 2, 2), "VALID")
    x = prelu(conv(x, params["w2"], params["b2"], 0), params["a2"])
    x = prelu(conv(x, params["w3"], params["b3"], 0), params["a3"])
    cls = jax.nn.sigmoid(conv(x, params["wc"], params["bc"], 0))
    box = conv(x, params["wo"], params["bo"], 0)
    return cls, box


if __name__ == "__main__":
    key = jax.random.PRNGKey(0)
    pkey, xkey = jax.random.split(key)
    params = init_params(pkey)

    def check(n):
        x = jax.random.normal(jax.random.fold_in(xkey, n),
                              (n, 3, 16, 16), jnp.float32)      # NCHW like PyTorch
        cls, box = pnet_forward(x, params)
        jax.block_until_ready((cls, box))
        assert cls.shape == (n, 1, 3, 3), cls.shape
        assert box.shape == (n, 4, 3, 3), box.shape

        cls_ref, box_ref = pnet_reference(x, params)
        cls_err = float(jnp.max(jnp.abs(cls - cls_ref)))
        box_err = float(jnp.max(jnp.abs(box - box_ref)))
        # Default (single-pass bf16 MXU) matmul precision on both sides;
        # tolerance sized for bf16 input rounding over K <= 144 dot products.
        assert jnp.allclose(cls, cls_ref, atol=5e-2, rtol=5e-2), ("cls mismatch", cls_err)
        assert jnp.allclose(box, box_ref, atol=5e-2, rtol=5e-2), ("box mismatch", box_err)

    check(2)   # b_tile=1, grid=(2,): both v7x TensorCores busy
    check(5)   # b_tile=4, grid=(2,): exercises batch tiling + batch padding
    print("KERNEL_OK")
</pallas_src>

<mosaic_0001>
module attributes {stable_mosaic.version = 11 : i64} {
  func.func @_pnet_kernel(%arg0: i32, %arg1: memref<1x16x16x3xf32, #tpu.memory_space<vmem>>, %arg2: memref<27x10xf32, #tpu.memory_space<vmem>>, %arg3: memref<1x10xf32, #tpu.memory_space<vmem>>, %arg4: memref<90x16xf32, #tpu.memory_space<vmem>>, %arg5: memref<1x16xf32, #tpu.memory_space<vmem>>, %arg6: memref<144x32xf32, #tpu.memory_space<vmem>>, %arg7: memref<1x32xf32, #tpu.memory_space<vmem>>, %arg8: memref<32x5xf32, #tpu.memory_space<vmem>>, %arg9: memref<1x5xf32, #tpu.memory_space<vmem>>, %arg10: memref<1x3xf32, #tpu.memory_space<smem>>, %arg11: memref<1x9x5xf32, #tpu.memory_space<vmem>>, %arg12: memref<1x18x18x3xf32, #tpu.memory_space<vmem>>) attributes {dimension_semantics = [#tpu.dimension_semantics<parallel>], iteration_bounds = array<i64: 2>, scalar_prefetch = 0 : i64, scratch_operands = 1 : i64, tpu.core_type = #tpu.core_type<tc>, window_params = [{transform_indices = @transform_0, window_bounds = array<i64: 1, 16, 16, 3>}, {pipeline_mode = #tpu.pipeline_mode<synchronous>, transform_indices = @transform_1, window_bounds = array<i64: 27, 10>}, {pipeline_mode = #tpu.pipeline_mode<synchronous>, transform_indices = @transform_2, window_bounds = array<i64: 1, 10>}, {pipeline_mode = #tpu.pipeline_mode<synchronous>, transform_indices = @transform_3, window_bounds = array<i64: 90, 16>}, {pipeline_mode = #tpu.pipeline_mode<synchronous>, transform_indices = @transform_4, window_bounds = array<i64: 1, 16>}, {pipeline_mode = #tpu.pipeline_mode<synchronous>, transform_indices = @transform_5, window_bounds = array<i64: 144, 32>}, {pipeline_mode = #tpu.pipeline_mode<synchronous>, transform_indices = @transform_6, window_bounds = array<i64: 1, 32>}, {pipeline_mode = #tpu.pipeline_mode<synchronous>, transform_indices = @transform_7, window_bounds = array<i64: 32, 5>}, {pipeline_mode = #tpu.pipeline_mode<synchronous>, transform_indices = @transform_8, window_bounds = array<i64: 1, 5>}, {transform_indices = @transform_9, window_bounds = array<i64: 1, 3>}, {transform_indices = @transform_10, window_bounds = array<i64: 1, 9, 5>}]} {
    %cst = arith.constant 0.000000e+00 : f32
    %0 = vector.broadcast %cst : f32 to vector<1x1x18x3xf32>
    %cst_0 = arith.constant 0.000000e+00 : f32
    %1 = vector.broadcast %cst_0 : f32 to vector<1x16x1x3xf32>
    %c0 = arith.constant 0 : index
    %c0_1 = arith.constant 0 : index
    %c0_2 = arith.constant 0 : index
    %c0_3 = arith.constant 0 : index
    %2 = vector.load %arg12[%c0, %c0_1, %c0_2, %c0_3] : memref<1x18x18x3xf32, #tpu.memory_space<vmem>>, vector<1x1x18x3xf32>
    tpu.vector_store %arg12[%c0, %c0_1, %c0_2, %c0_3], %0 {strides = array<i32>} : memref<1x18x18x3xf32, #tpu.memory_space<vmem>>, vector<1x1x18x3xf32>,
    %c0_4 = arith.constant 0 : index
    %c17 = arith.constant 17 : index
    %c0_5 = arith.constant 0 : index
    %c0_6 = arith.constant 0 : index
    %3 = vector.load %arg12[%c0_4, %c17, %c0_5, %c0_6] : memref<1x18x18x3xf32, #tpu.memory_space<vmem>>, vector<1x1x18x3xf32>
    tpu.vector_store %arg12[%c0_4, %c17, %c0_5, %c0_6], %0 {strides = array<i32>} : memref<1x18x18x3xf32, #tpu.memory_space<vmem>>, vector<1x1x18x3xf32>,
    %c0_7 = arith.constant 0 : index
    %c1 = arith.constant 1 : index
    %c0_8 = arith.constant 0 : index
    %c0_9 = arith.constant 0 : index
    %4 = vector.load %arg12[%c0_7, %c1, %c0_8, %c0_9] : memref<1x18x18x3xf32, #tpu.memory_space<vmem>>, vector<1x16x1x3xf32>
    tpu.vector_store %arg12[%c0_7, %c1, %c0_8, %c0_9], %1 {strides = array<i32>} : memref<1x18x18x3xf32, #tpu.memory_space<vmem>>, vector<1x16x1x3xf32>,
    %c0_10 = arith.constant 0 : index
    %c1_11 = arith.constant 1 : index
    %c17_12 = arith.constant 17 : index
    %c0_13 = arith.constant 0 : index
    %5 = vector.load %arg12[%c0_10, %c1_11, %c17_12, %c0_13] : memref<1x18x18x3xf32, #tpu.memory_space<vmem>>, vector<1x16x1x3xf32>
    tpu.vector_store %arg12[%c0_10, %c1_11, %c17_12, %c0_13], %1 {strides = array<i32>} : memref<1x18x18x3xf32, #tpu.memory_space<vmem>>, vector<1x16x1x3xf32>,
    %c0_14 = arith.constant 0 : index
    %c0_15 = arith.constant 0 : index
    %c0_16 = arith.constant 0 : index
    %c0_17 = arith.constant 0 : index
    %6 = vector.load %arg1[%c0_14, %c0_15, %c0_16, %c0_17] : memref<1x16x16x3xf32, #tpu.memory_space<vmem>>, vector<1x16x16x3xf32>
    %c0_18 = arith.constant 0 : index
    %c1_19 = arith.constant 1 : index
    %c1_20 = arith.constant 1 : index
    %c0_21 = arith.constant 0 : index
    %7 = vector.load %arg12[%c0_18, %c1_19, %c1_20, %c0_21] : memref<1x18x18x3xf32, #tpu.memory_space<vmem>>, vector<1x16x16x3xf32>
    tpu.vector_store %arg12[%c0_18, %c1_19, %c1_20, %c0_21], %6 {strides = array<i32>} : memref<1x18x18x3xf32, #tpu.memory_space<vmem>>, vector<1x16x16x3xf32>,
    %c0_22 = arith.constant 0 : index
    %c0_23 = arith.constant 0 : index
    %c0_24 = arith.constant 0 : index
    %c0_25 = arith.constant 0 : index
    %8 = vector.load %arg12[%c0_22, %c0_23, %c0_24, %c0_25] : memref<1x18x18x3xf32, #tpu.memory_space<vmem>>, vector<1x18x18x3xf32>
    %9 = vector.extract_strided_slice %8 {offsets = [0, 0, 0, 0], sizes = [1, 16, 16, 3], strides = [1, 1, 1, 1]} : vector<1x18x18x3xf32> to vector<1x16x16x3xf32>
    %10 = vector.extract_strided_slice %8 {offsets = [0, 0, 1, 0], sizes = [1, 16, 16, 3], strides = [1, 1, 1, 1]} : vector<1x18x18x3xf32> to vector<1x16x16x3xf32>
    %11 = vector.extract_strided_slice %8 {offsets = [0, 0, 2, 0], sizes = [1, 16, 16, 3], strides = [1, 1, 1, 1]} : vector<1x18x18x3xf32> to vector<1x16x16x3xf32>
    %12 = vector.extract_strided_slice %8 {offsets = [0, 1, 0, 0], sizes = [1, 16, 16, 3], strides = [1, 1, 1, 1]} : vector<1x18x18x3xf32> to vector<1x16x16x3xf32>
    %13 = vector.extract_strided_slice %8 {offsets = [0, 1, 1, 0], sizes = [1, 16, 16, 3], strides = [1, 1, 1, 1]} : vector<1x18x18x3xf32> to vector<1x16x16x3xf32>
    %14 = vector.extract_strided_slice %8 {offsets = [0, 1, 2, 0], sizes = [1, 16, 16, 3], strides = [1, 1, 1, 1]} : vector<1x18x18x3xf32> to vector<1x16x16x3xf32>
    %15 = vector.extract_strided_slice %8 {offsets = [0, 2, 0, 0], sizes = [1, 16, 16, 3], strides = [1, 1, 1, 1]} : vector<1x18x18x3xf32> to vector<1x16x16x3xf32>
    %16 = vector.extract_strided_slice %8 {offsets = [0, 2, 1, 0], sizes = [1, 16, 16, 3], strides = [1, 1, 1, 1]} : vector<1x18x18x3xf32> to vector<1x16x16x3xf32>
    %17 = vector.extract_strided_slice %8 {offsets = [0, 2, 2, 0], sizes = [1, 16, 16, 3], strides = [1, 1, 1, 1]} : vector<1x18x18x3xf32> to vector<1x16x16x3xf32>
    %18 = tpu.concatenate %9, %10, %11, %12, %13, %14, %15, %16, %17 in 3 : vector<1x16x16x3xf32>, vector<1x16x16x3xf32>, vector<1x16x16x3xf32>, vector<1x16x16x3xf32>, vector<1x16x16x3xf32>, vector<1x16x16x3xf32>, vector<1x16x16x3xf32>, vector<1x16x16x3xf32>, vector<1x16x16x3xf32> -> vector<1x16x16x27xf32>
    %19 = vector.shape_cast %18 : vector<1x16x16x27xf32> to vector<256x27xf32>
    %c0_26 = arith.constant 0 : index
    %c0_27 = arith.constant 0 : index
    %20 = vector.load %arg2[%c0_26, %c0_27] : memref<27x10xf32, #tpu.memory_space<vmem>>, vector<27x10xf32>
    %cst_28 = arith.constant dense<0.000000e+00> : vector<256x10xf32>
    %21 = tpu.matmul %19, %20, %cst_28 {dimension_numbers = #tpu.dot_dimension_numbers<[1], [0], [0], [1], [0, 0, 1, 1], [], []>} : vector<256x27xf32>, vector<27x10xf32>, vector<256x10xf32> -> vector<256x10xf32>
    %c0_29 = arith.constant 0 : index
    %c0_30 = arith.constant 0 : index
    %22 = vector.load %arg3[%c0_29, %c0_30] : memref<1x10xf32, #tpu.memory_space<vmem>>, vector<1x10xf32>
    %23 = vector.broadcast %22 : vector<1x10xf32> to vector<256x10xf32>
    %24 = arith.addf %21, %23 : vector<256x10xf32>
    %c0_31 = arith.constant 0 : index
    %c0_32 = arith.constant 0 : index
    %25 = memref.load %arg10[%c0_31, %c0_32] : memref<1x3xf32, #tpu.memory_space<smem>>
    %cst_33 = arith.constant 0.000000e+00 : f32
    %26 = vector.broadcast %cst_33 : f32 to vector<256x10xf32>
    %27 = arith.cmpf oge, %24, %26 : vector<256x10xf32>
    %28 = vector.broadcast %25 : f32 to vector<256x10xf32>
    %29 = arith.mulf %28, %24 : vector<256x10xf32>
    %30 = arith.select %27, %24, %29 : vector<256x10xi1>, vector<256x10xf32>
    %31 = vector.shape_cast %30 : vector<256x10xf32> to vector<1x16x16x10xf32>
    %32 = vector.extract_strided_slice %31 {offsets = [0, 0, 0, 0], sizes = [1, 14, 16, 10], strides = [1, 1, 1, 1]} : vector<1x16x16x10xf32> to vector<1x14x16x10xf32>
    %33 = vector.extract_strided_slice %31 {offsets = [0, 1, 0, 0], sizes = [1, 14, 16, 10], strides = [1, 1, 1, 1]} : vector<1x16x16x10xf32> to vector<1x14x16x10xf32>
    %34 = arith.maximumf %32, %33 : vector<1x14x16x10xf32>
    %35 = vector.extract_strided_slice %31 {offsets = [0, 2, 0, 0], sizes = [1, 14, 16, 10], strides = [1, 1, 1, 1]} : vector<1x16x16x10xf32> to vector<1x14x16x10xf32>
    %36 = arith.maximumf %34, %35 : vector<1x14x16x10xf32>
    %37 = vector.shape_cast %36 : vector<1x14x16x10xf32> to vector<1x7x2x16x10xf32>
    %38 = vector.extract_strided_slice %37 {offsets = [0, 0, 0, 0, 0], sizes = [1, 7, 1, 16, 10], strides = [1, 1, 1, 1, 1]} : vector<1x7x2x16x10xf32> to vector<1x7x1x16x10xf32>
    %39 = vector.shape_cast %38 : vector<1x7x1x16x10xf32> to vector<1x7x16x10xf32>
    %40 = vector.extract_strided_slice %39 {offsets = [0, 0, 0, 0], sizes = [1, 7, 14, 10], strides = [1, 1, 1, 1]} : vector<1x7x16x10xf32> to vector<1x7x14x10xf32>
    %41 = vector.extract_strided_slice %39 {offsets = [0, 0, 1, 0], sizes = [1, 7, 14, 10], strides = [1, 1, 1, 1]} : vector<1x7x16x10xf32> to vector<1x7x14x10xf32>
    %42 = arith.maximumf %40, %41 : vector<1x7x14x10xf32>
    %43 = vector.extract_strided_slice %39 {offsets = [0, 0, 2, 0], sizes = [1, 7, 14, 10], strides = [1, 1, 1, 1]} : vector<1x7x16x10xf32> to vector<1x7x14x10xf32>
    %44 = arith.maximumf %42, %43 : vector<1x7x14x10xf32>
    %45 = vector.extract_strided_slice %44 {offsets = [0, 0, 0, 0], sizes = [1, 7, 1, 10], strides = [1, 1, 1, 1]} : vector<1x7x14x10xf32> to vector<1x7x1x10xf32>
    %46 = vector.extract_strided_slice %44 {offsets = [0, 0, 2, 0], sizes = [1, 7, 1, 10], strides = [1, 1, 1, 1]} : vector<1x7x14x10xf32> to vector<1x7x1x10xf32>
    %47 = vector.extract_strided_slice %44 {offsets = [0, 0, 4, 0], sizes = [1, 7, 1, 10], strides = [1, 1, 1, 1]} : vector<1x7x14x10xf32> to vector<1x7x1x10xf32>
    %48 = vector.extract_strided_slice %44 {offsets = [0, 0, 6, 0], sizes = [1, 7, 1, 10], strides = [1, 1, 1, 1]} : vector<1x7x14x10xf32> to vector<1x7x1x10xf32>
    %49 = vector.extract_strided_slice %44 {offsets = [0, 0, 8, 0], sizes = [1, 7, 1, 10], strides = [1, 1, 1, 1]} : vector<1x7x14x10xf32> to vector<1x7x1x10xf32>
    %50 = vector.extract_strided_slice %44 {offsets = [0, 0, 10, 0], sizes = [1, 7, 1, 10], strides = [1, 1, 1, 1]} : vector<1x7x14x10xf32> to vector<1x7x1x10xf32>
    %51 = vector.extract_strided_slice %44 {offsets = [0, 0, 12, 0], sizes = [1, 7, 1, 10], strides = [1, 1, 1, 1]} : vector<1x7x14x10xf32> to vector<1x7x1x10xf32>
    %52 = tpu.concatenate %45, %46, %47, %48, %49, %50, %51 in 2 : vector<1x7x1x10xf32>, vector<1x7x1x10xf32>, vector<1x7x1x10xf32>, vector<1x7x1x10xf32>, vector<1x7x1x10xf32>, vector<1x7x1x10xf32>, vector<1x7x1x10xf32> -> vector<1x7x7x10xf32>
    %53 = vector.extract_strided_slice %52 {offsets = [0, 0, 0, 0], sizes = [1, 5, 5, 10], strides = [1, 1, 1, 1]} : vector<1x7x7x10xf32> to vector<1x5x5x10xf32>
    %54 = vector.extract_strided_slice %52 {offsets = [0, 0, 1, 0], sizes = [1, 5, 5, 10], strides = [1, 1, 1, 1]} : vector<1x7x7x10xf32> to vector<1x5x5x10xf32>
    %55 = vector.extract_strided_slice %52 {offsets = [0, 0, 2, 0], sizes = [1, 5, 5, 10], strides = [1, 1, 1, 1]} : vector<1x7x7x10xf32> to vector<1x5x5x10xf32>
    %56 = vector.extract_strided_slice %52 {offsets = [0, 1, 0, 0], sizes = [1, 5, 5, 10], strides = [1, 1, 1, 1]} : vector<1x7x7x10xf32> to vector<1x5x5x10xf32>
    %57 = vector.extract_strided_slice %52 {offsets = [0, 1, 1, 0], sizes = [1, 5, 5, 10], strides = [1, 1, 1, 1]} : vector<1x7x7x10xf32> to vector<1x5x5x10xf32>
    %58 = vector.extract_strided_slice %52 {offsets = [0, 1, 2, 0], sizes = [1, 5, 5, 10], strides = [1, 1, 1, 1]} : vector<1x7x7x10xf32> to vector<1x5x5x10xf32>
    %59 = vector.extract_strided_slice %52 {offsets = [0, 2, 0, 0], sizes = [1, 5, 5, 10], strides = [1, 1, 1, 1]} : vector<1x7x7x10xf32> to vector<1x5x5x10xf32>
    %60 = vector.extract_strided_slice %52 {offsets = [0, 2, 1, 0], sizes = [1, 5, 5, 10], strides = [1, 1, 1, 1]} : vector<1x7x7x10xf32> to vector<1x5x5x10xf32>
    %61 = vector.extract_strided_slice %52 {offsets = [0, 2, 2, 0], sizes = [1, 5, 5, 10], strides = [1, 1, 1, 1]} : vector<1x7x7x10xf32> to vector<1x5x5x10xf32>
    %62 = tpu.concatenate %53, %54, %55, %56, %57, %58, %59, %60, %61 in 3 : vector<1x5x5x10xf32>, vector<1x5x5x10xf32>, vector<1x5x5x10xf32>, vector<1x5x5x10xf32>, vector<1x5x5x10xf32>, vector<1x5x5x10xf32>, vector<1x5x5x10xf32>, vector<1x5x5x10xf32>, vector<1x5x5x10xf32> -> vector<1x5x5x90xf32>
    %63 = vector.extract_strided_slice %62 {offsets = [0, 0, 0, 0], sizes = [1, 1, 5, 90], strides = [1, 1, 1, 1]} : vector<1x5x5x90xf32> to vector<1x1x5x90xf32>
    %64 = vector.shape_cast %63 : vector<1x1x5x90xf32> to vector<5x90xf32>
    %65 = vector.extract_strided_slice %62 {offsets = [0, 1, 0, 0], sizes = [1, 1, 5, 90], strides = [1, 1, 1, 1]} : vector<1x5x5x90xf32> to vector<1x1x5x90xf32>
    %66 = vector.shape_cast %65 : vector<1x1x5x90xf32> to vector<5x90xf32>
    %67 = vector.extract_strided_slice %62 {offsets = [0, 2, 0, 0], sizes = [1, 1, 5, 90], strides = [1, 1, 1, 1]} : vector<1x5x5x90xf32> to vector<1x1x5x90xf32>
    %68 = vector.shape_cast %67 : vector<1x1x5x90xf32> to vector<5x90xf32>
    %69 = vector.extract_strided_slice %62 {offsets = [0, 3, 0, 0], sizes = [1, 1, 5, 90], strides = [1, 1, 1, 1]} : vector<1x5x5x90xf32> to vector<1x1x5x90xf32>
    %70 = vector.shape_cast %69 : vector<1x1x5x90xf32> to vector<5x90xf32>
    %71 = vector.extract_strided_slice %62 {offsets = [0, 4, 0, 0], sizes = [1, 1, 5, 90], strides = [1, 1, 1, 1]} : vector<1x5x5x90xf32> to vector<1x1x5x90xf32>
    %72 = vector.shape_cast %71 : vector<1x1x5x90xf32> to vector<5x90xf32>
    %73 = tpu.concatenate %64, %66, %68, %70, %72 in 0 : vector<5x90xf32>, vector<5x90xf32>, vector<5x90xf32>, vector<5x90xf32>, vector<5x90xf32> -> vector<25x90xf32>
    %c0_34 = arith.constant 0 : index
    %c0_35 = arith.constant 0 : index
    %74 = vector.load %arg4[%c0_34, %c0_35] : memref<90x16xf32, #tpu.memory_space<vmem>>, vector<90x16xf32>
    %cst_36 = arith.constant dense<0.000000e+00> : vector<25x16xf32>
    %75 = tpu.matmul %73, %74, %cst_36 {dimension_numbers = #tpu.dot_dimension_numbers<[1], [0], [0], [1], [0, 0, 1, 1], [], []>} : vector<25x90xf32>, vector<90x16xf32>, vector<25x16xf32> -> vector<25x16xf32>
    %c0_37 = arith.constant 0 : index
    %c0_38 = arith.constant 0 : index
    %76 = vector.load %arg5[%c0_37, %c0_38] : memref<1x16xf32, #tpu.memory_space<vmem>>, vector<1x16xf32>
    %77 = vector.broadcast %76 : vector<1x16xf32> to vector<25x16xf32>
    %78 = arith.addf %75, %77 : vector<25x16xf32>
    %c0_39 = arith.constant 0 : index
    %c1_40 = arith.constant 1 : index
    %79 = memref.load %arg10[%c0_39, %c1_40] : memref<1x3xf32, #tpu.memory_space<smem>>
    %cst_41 = arith.constant 0.000000e+00 : f32
    %80 = vector.broadcast %cst_41 : f32 to vector<25x16xf32>
    %81 = arith.cmpf oge, %78, %80 : vector<25x16xf32>
    %82 = vector.broadcast %79 : f32 to vector<25x16xf32>
    %83 = arith.mulf %82, %78 : vector<25x16xf32>
    %84 = arith.select %81, %78, %83 : vector<25x16xi1>, vector<25x16xf32>
    %85 = vector.extract_strided_slice %84 {offsets = [0, 0], sizes = [5, 16], strides = [1, 1]} : vector<25x16xf32> to vector<5x16xf32>
    %86 = vector.shape_cast %85 : vector<5x16xf32> to vector<1x5x16xf32>
    %87 = vector.extract_strided_slice %84 {offsets = [5, 0], sizes = [5, 16], strides = [1, 1]} : vector<25x16xf32> to vector<5x16xf32>
    %88 = vector.shape_cast %87 : vector<5x16xf32> to vector<1x5x16xf32>
    %89 = vector.extract_strided_slice %84 {offsets = [10, 0], sizes = [5, 16], strides = [1, 1]} : vector<25x16xf32> to vector<5x16xf32>
    %90 = vector.shape_cast %89 : vector<5x16xf32> to vector<1x5x16xf32>
    %91 = vector.extract_strided_slice %84 {offsets = [15, 0], sizes = [5, 16], strides = [1, 1]} : vector<25x16xf32> to vector<5x16xf32>
    %92 = vector.shape_cast %91 : vector<5x16xf32> to vector<1x5x16xf32>
    %93 = vector.extract_strided_slice %84 {offsets = [20, 0], sizes = [5, 16], strides = [1, 1]} : vector<25x16xf32> to vector<5x16xf32>
    %94 = vector.shape_cast %93 : vector<5x16xf32> to vector<1x5x16xf32>
    %95 = tpu.concatenate %86, %88, %90, %92, %94 in 0 : vector<1x5x16xf32>, vector<1x5x16xf32>, vector<1x5x16xf32>, vector<1x5x16xf32>, vector<1x5x16xf32> -> vector<5x5x16xf32>
    %96 = vector.shape_cast %95 : vector<5x5x16xf32> to vector<1x5x5x16xf32>
    %97 = vector.extract_strided_slice %96 {offsets = [0, 0, 0, 0], sizes = [1, 3, 3, 16], strides = [1, 1, 1, 1]} : vector<1x5x5x16xf32> to vector<1x3x3x16xf32>
    %98 = vector.extract_strided_slice %96 {offsets = [0, 0, 1, 0], sizes = [1, 3, 3, 16], strides = [1, 1, 1, 1]} : vector<1x5x5x16xf32> to vector<1x3x3x16xf32>
    %99 = vector.extract_strided_slice %96 {offsets = [0, 0, 2, 0], sizes = [1, 3, 3, 16], strides = [1, 1, 1, 1]} : vector<1x5x5x16xf32> to vector<1x3x3x16xf32>
    %100 = vector.extract_strided_slice %96 {offsets = [0, 1, 0, 0], sizes = [1, 3, 3, 16], strides = [1, 1, 1, 1]} : vector<1x5x5x16xf32> to vector<1x3x3x16xf32>
    %101 = vector.extract_strided_slice %96 {offsets = [0, 1, 1, 0], sizes = [1, 3, 3, 16], strides = [1, 1, 1, 1]} : vector<1x5x5x16xf32> to vector<1x3x3x16xf32>
    %102 = vector.extract_strided_slice %96 {offsets = [0, 1, 2, 0], sizes = [1, 3, 3, 16], strides = [1, 1, 1, 1]} : vector<1x5x5x16xf32> to vector<1x3x3x16xf32>
    %103 = vector.extract_strided_slice %96 {offsets = [0, 2, 0, 0], sizes = [1, 3, 3, 16], strides = [1, 1, 1, 1]} : vector<1x5x5x16xf32> to vector<1x3x3x16xf32>
    %104 = vector.extract_strided_slice %96 {offsets = [0, 2, 1, 0], sizes = [1, 3, 3, 16], strides = [1, 1, 1, 1]} : vector<1x5x5x16xf32> to vector<1x3x3x16xf32>
    %105 = vector.extract_strided_slice %96 {offsets = [0, 2, 2, 0], sizes = [1, 3, 3, 16], strides = [1, 1, 1, 1]} : vector<1x5x5x16xf32> to vector<1x3x3x16xf32>
    %106 = tpu.concatenate %97, %98, %99, %100, %101, %102, %103, %104, %105 in 3 : vector<1x3x3x16xf32>, vector<1x3x3x16xf32>, vector<1x3x3x16xf32>, vector<1x3x3x16xf32>, vector<1x3x3x16xf32>, vector<1x3x3x16xf32>, vector<1x3x3x16xf32>, vector<1x3x3x16xf32>, vector<1x3x3x16xf32> -> vector<1x3x3x144xf32>
    %107 = vector.extract_strided_slice %106 {offsets = [0, 0, 0, 0], sizes = [1, 1, 3, 144], strides = [1, 1, 1, 1]} : vector<1x3x3x144xf32> to vector<1x1x3x144xf32>
    %108 = vector.shape_cast %107 : vector<1x1x3x144xf32> to vector<3x144xf32>
    %109 = vector.extract_strided_slice %106 {offsets = [0, 1, 0, 0], sizes = [1, 1, 3, 144], strides = [1, 1, 1, 1]} : vector<1x3x3x144xf32> to vector<1x1x3x144xf32>
    %110 = vector.shape_cast %109 : vector<1x1x3x144xf32> to vector<3x144xf32>
    %111 = vector.extract_strided_slice %106 {offsets = [0, 2, 0, 0], sizes = [1, 1, 3, 144], strides = [1, 1, 1, 1]} : vector<1x3x3x144xf32> to vector<1x1x3x144xf32>
    %112 = vector.shape_cast %111 : vector<1x1x3x144xf32> to vector<3x144xf32>
    %113 = tpu.concatenate %108, %110, %112 in 0 : vector<3x144xf32>, vector<3x144xf32>, vector<3x144xf32> -> vector<9x144xf32>
    %c0_42 = arith.constant 0 : index
    %c0_43 = arith.constant 0 : index
    %114 = vector.load %arg6[%c0_42, %c0_43] : memref<144x32xf32, #tpu.memory_space<vmem>>, vector<144x32xf32>
    %cst_44 = arith.constant dense<0.000000e+00> : vector<9x32xf32>
    %115 = tpu.matmul %113, %114, %cst_44 {dimension_numbers = #tpu.dot_dimension_numbers<[1], [0], [0], [1], [0, 0, 1, 1], [], []>} : vector<9x144xf32>, vector<144x32xf32>, vector<9x32xf32> -> vector<9x32xf32>
    %c0_45 = arith.constant 0 : index
    %c0_46 = arith.constant 0 : index
    %116 = vector.load %arg7[%c0_45, %c0_46] : memref<1x32xf32, #tpu.memory_space<vmem>>, vector<1x32xf32>
    %117 = vector.broadcast %116 : vector<1x32xf32> to vector<9x32xf32>
    %118 = arith.addf %115, %117 : vector<9x32xf32>
    %c0_47 = arith.constant 0 : index
    %c2 = arith.constant 2 : index
    %119 = memref.load %arg10[%c0_47, %c2] : memref<1x3xf32, #tpu.memory_space<smem>>
    %cst_48 = arith.constant 0.000000e+00 : f32
    %120 = vector.broadcast %cst_48 : f32 to vector<9x32xf32>
    %121 = arith.cmpf oge, %118, %120 : vector<9x32xf32>
    %122 = vector.broadcast %119 : f32 to vector<9x32xf32>
    %123 = arith.mulf %122, %118 : vector<9x32xf32>
    %124 = arith.select %121, %118, %123 : vector<9x32xi1>, vector<9x32xf32>
    %c0_49 = arith.constant 0 : index
    %c0_50 = arith.constant 0 : index
    %125 = vector.load %arg8[%c0_49, %c0_50] : memref<32x5xf32, #tpu.memory_space<vmem>>, vector<32x5xf32>
    %cst_51 = arith.constant dense<0.000000e+00> : vector<9x5xf32>
    %126 = tpu.matmul %124, %125, %cst_51 {dimension_numbers = #tpu.dot_dimension_numbers<[1], [0], [0], [1], [0, 0, 1, 1], [], []>} : vector<9x32xf32>, vector<32x5xf32>, vector<9x5xf32> -> vector<9x5xf32>
    %c0_52 = arith.constant 0 : index
    %c0_53 = arith.constant 0 : index
    %127 = vector.load %arg9[%c0_52, %c0_53] : memref<1x5xf32, #tpu.memory_space<vmem>>, vector<1x5xf32>
    %128 = vector.broadcast %127 : vector<1x5xf32> to vector<9x5xf32>
    %129 = arith.addf %126, %128 : vector<9x5xf32>
    %130 = tpu.iota {dimensions = array<i32: 1>} : vector<9x5xi32>
    %c0_i32 = arith.constant 0 : i32
    %131 = vector.broadcast %c0_i32 : i32 to vector<9x5xi32>
    %132 = arith.cmpi eq, %130, %131 : vector<9x5xi32>
    %133 = arith.negf %129 : vector<9x5xf32>
    %134 = math.exp %133 : vector<9x5xf32>
    %cst_54 = arith.constant 1.000000e+00 : f32
    %135 = vector.broadcast %cst_54 : f32 to vector<9x5xf32>
    %136 = arith.addf %135, %134 : vector<9x5xf32>
    %137 = arith.divf %135, %136 : vector<9x5xf32>
    %138 = arith.select %132, %137, %129 : vector<9x5xi1>, vector<9x5xf32>
    %c0_55 = arith.constant 0 : index
    %c0_56 = arith.constant 0 : index
    %c0_57 = arith.constant 0 : index
    %139 = vector.load %arg11[%c0_55, %c0_56, %c0_57] : memref<1x9x5xf32, #tpu.memory_space<vmem>>, vector<1x9x5xf32>
    %140 = vector.shape_cast %139 : vector<1x9x5xf32> to vector<9x5xf32>
    %141 = vector.shape_cast %138 : vector<9x5xf32> to vector<1x9x5xf32>
    tpu.vector_store %arg11[%c0_55, %c0_56, %c0_57], %141 {strides = array<i32>} : memref<1x9x5xf32, #tpu.memory_space<vmem>>, vector<1x9x5xf32>,
    return
  }
  func.func @transform_0(%arg0: i32) -> (i32, i32, i32, i32) {
    %c0_i32 = arith.constant 0 : i32
    %c0_i32_0 = arith.constant 0 : i32
    %c0_i32_1 = arith.constant 0 : i32
    %c0_i32_2 = arith.constant 0 : i32
    return %arg0, %c0_i32, %c0_i32_0, %c0_i32_1 : i32, i32, i32, i32
  }
  func.func @transform_1(%arg0: i32) -> (i32, i32) {
    %c0_i32 = arith.constant 0 : i32
    %c0_i32_0 = arith.constant 0 : i32
    %c0_i32_1 = arith.constant 0 : i32
    return %c0_i32, %c0_i32_0 : i32, i32
  }
  func.func @transform_2(%arg0: i32) -> (i32, i32) {
    %c0_i32 = arith.constant 0 : i32
    %c0_i32_0 = arith.constant 0 : i32
    %c0_i32_1 = arith.constant 0 : i32
    return %c0_i32, %c0_i32_0 : i32, i32
  }
  func.func @transform_3(%arg0: i32) -> (i32, i32) {
    %c0_i32 = arith.constant 0 : i32
    %c0_i32_0 = arith.constant 0 : i32
    %c0_i32_1 = arith.constant 0 : i32
    return %c0_i32, %c0_i32_0 : i32, i32
  }
  func.func @transform_4(%arg0: i32) -> (i32, i32) {
    %c0_i32 = arith.constant 0 : i32
    %c0_i32_0 = arith.constant 0 : i32
    %c0_i32_1 = arith.constant 0 : i32
    return %c0_i32, %c0_i32_0 : i32, i32
  }
  func.func @transform_5(%arg0: i32) -> (i32, i32) {
    %c0_i32 = arith.constant 0 : i32
    %c0_i32_0 = arith.constant 0 : i32
    %c0_i32_1 = arith.constant 0 : i32
    return %c0_i32, %c0_i32_0 : i32, i32
  }
  func.func @transform_6(%arg0: i32) -> (i32, i32) {
    %c0_i32 = arith.constant 0 : i32
    %c0_i32_0 = arith.constant 0 : i32
    %c0_i32_1 = arith.constant 0 : i32
    return %c0_i32, %c0_i32_0 : i32, i32
  }
  func.func @transform_7(%arg0: i32) -> (i32, i32) {
    %c0_i32 = arith.constant 0 : i32
    %c0_i32_0 = arith.constant 0 : i32
    %c0_i32_1 = arith.constant 0 : i32
    return %c0_i32, %c0_i32_0 : i32, i32
  }
  func.func @transform_8(%arg0: i32) -> (i32, i32) {
    %c0_i32 = arith.constant 0 : i32
    %c0_i32_0 = arith.constant 0 : i32
    %c0_i32_1 = arith.constant 0 : i32
    return %c0_i32, %c0_i32_0 : i32, i32
  }
  func.func @transform_9(%arg0: i32) -> (i32, i32) {
    %c0_i32 = arith.constant 0 : i32
    %c0_i32_0 = arith.constant 0 : i32
    %c0_i32_1 = arith.constant 0 : i32
    return %c0_i32, %c0_i32_0 : i32, i32
  }
  func.func @transform_10(%arg0: i32) -> (i32, i32, i32) {
    %c0_i32 = arith.constant 0 : i32
    %c0_i32_0 = arith.constant 0 : i32
    %c0_i32_1 = arith.constant 0 : i32
    return %arg0, %c0_i32, %c0_i32_0 : i32, i32, i32
  }
}

</mosaic_0001>

<llo_original>
// kernel: pnet_forward.1
$region0: #{pnet_forward.1}
  #allocation0 [shape = 'u32[]', space=smem, size = 0x4, offset = 0x4, fixed_abs, tag = 'smem constant byte address 0x4 - core index']
  #allocation1 [shape = 'u32[144,128]{1,0:T(1,128)}', space=vmem, size = 0x12000, scoped, tag = 'internal scratch']
  #allocation2 [shape = 'f32[1,18,18,3]{3,2,1,0:T(8,128)}', space=vmem, size = 0x36000, scoped, tag = 'scratch operand']
  %s0 = inlined_call_operand.vmem [shape: f32[2,16,16,3], index: 0, kind: input, shape index: {}]
  %s1 = inlined_call_operand.vmem [shape: f32[27,10], index: 1, kind: input, shape index: {}]
  %s2 = inlined_call_operand.vmem [shape: f32[1,10], index: 2, kind: input, shape index: {}]
  %s3 = inlined_call_operand.vmem [shape: f32[90,16], index: 3, kind: input, shape index: {}]
  %s4 = inlined_call_operand.vmem [shape: f32[1,16], index: 4, kind: input, shape index: {}]
  %s5 = inlined_call_operand.vmem [shape: f32[144,32], index: 5, kind: input, shape index: {}]
  %s6 = inlined_call_operand.vmem [shape: f32[1,32], index: 6, kind: input, shape index: {}]
  %s7 = inlined_call_operand.vmem [shape: f32[32,5], index: 7, kind: input, shape index: {}]
  %s8 = inlined_call_operand.vmem [shape: f32[1,5], index: 8, kind: input, shape index: {}]
  %s9 = inlined_call_operand.vmem [shape: f32[1,3], index: 9, kind: input, shape index: {}]
  %s10 = inlined_call_operand.vmem [shape: f32[2,9,5], index: 10, kind: output, shape index: {}]
  %s11 = sld [smem:[#allocation0]]
  $region77: #{pnet_forward.1} parent=0
    _
  %s13 = ssub.s32 1, %s11
  %s14 = scalar_select 0, %s13, %s11
  $region1: #{pnet_forward.1} parent=0
    #allocation3 [shape = 'u8[512]{0}', space=smem, size = 0x200, scoped, tag = 'input window, operand 9, single buffered']
    #allocation4 [shape = 's32[2]{0}', space=sflag, size = 0x8, scoped, tag = 'scoped memory for pnet_forward.1']
    %15 = vsyncpa [#allocation4], 0
    loop: start=0, step=1, limit=4
    $region2: #{pnet_forward.1} parent=1 // loop_pre_header
      _
    $region3: #{pnet_forward.1} parent=1 // loop_header
      %s17 = sphi 0, %s21
      %p18 = scmp.ge.s32.totalorder %s17, 4
      %s27 = sphi 0, %s29
      %s30 = sphi 0, %s27
      %s31 = sphi 0, %s30
      %s47 = sphi 0, %s31
      %s51 = sphi 0, %s51
      %s53 = sphi 0, %s51
      %s54 = sphi 0, %s53
      %s68 = sphi 0, %s54
      %s72 = sphi 0, %s72
      %s74 = sphi 0, %s72
      %s75 = sphi 0, %s74
      %s89 = sphi 0, %s75
      %s93 = sphi 0, %s93
      %s95 = sphi 0, %s93
      %s96 = sphi 0, %s95
      %s110 = sphi 0, %s96
      %s114 = sphi 0, %s114
      %s116 = sphi 0, %s114
      %s117 = sphi 0, %s116
      %s131 = sphi 0, %s117
      %s135 = sphi 0, %s135
      %s137 = sphi 0, %s135
      %s138 = sphi 0, %s137
      %s152 = sphi 0, %s138
      %s156 = sphi 0, %s156
      %s158 = sphi 0, %s156
      %s159 = sphi 0, %s158
      %s173 = sphi 0, %s159
      %s177 = sphi 0, %s177
      %s179 = sphi 0, %s177
      %s180 = sphi 0, %s179
      %s194 = sphi 0, %s180
      %s198 = sphi 0, %s198
      %s200 = sphi 0, %s198
      %s201 = sphi 0, %s200
      %s215 = sphi 0, %s201
      %s219 = sphi 0, %s219
      %s221 = sphi 0, %s219
      %s222 = sphi 0, %s221
      %s236 = sphi 0, %s222
      %s242 = sphi 0, %s244
      %s245 = sphi 0, %s242
      %s246 = sphi 0, %s245
      %s262 = sphi 0, %s246
    $region4: #{pnet_forward.1} parent=1 // loop_header_branch
      %20 = sbr.rel (%p18) target = $region8
    $region5: #{pnet_forward.1} parent=1 // loop_body
      %s22 = ssub.s32 %s17, 1
      %s23 = ssub.s32 %s17, 2
      %s24 = sadd.s32 %s17, 1
      %s25 = ssub.s32 %s17, %s24
      %p26 = scmp.eq.s32.totalorder %s25, 0
      %s28 = sadd.s32 %s27, 1
      %s29 = scalar_select %p26, %s27, %s28
      %p32 = pneg %p26
      %p33 = scmp.eq.s32.totalorder %s17, 1
      %p34 = por %p32, %p33
      %p35 = scmp.ne.s32.totalorder %s27, %s30
      %p36 = scmp.eq.s32.totalorder %s17, 0
      %p37 = por %p35, %p36
      %p38 = scmp.ne.s32.totalorder %s27, %s30
      %p39 = scmp.eq.s32.totalorder %s22, 1
      %p40 = por %p38, %p39
      %p41 = scmp.ne.s32.totalorder %s30, %s31
      %p42 = scmp.eq.s32.totalorder %s22, 0
      %p43 = por %p41, %p42
      %p44 = scmp.ne.s32.totalorder %s30, %s31
      %p45 = scmp.eq.s32.totalorder %s23, 1
      %p46 = por %p44, %p45
      %p48 = scmp.ne.s32.totalorder %s31, %s47
      %p49 = scmp.eq.s32.totalorder %s23, 0
      %p50 = por %p48, %p49
      %s52 = sadd.s32 %s51, 1
      %p55 = scmp.eq.s32.totalorder %s17, 1
      %p56 = scmp.ne.s32.totalorder %s51, %s53
      %p57 = scmp.eq.s32.totalorder %s17, 0
      %p58 = por %p56, %p57
      %p59 = scmp.ne.s32.totalorder %s51, %s53
      %p60 = scmp.eq.s32.totalorder %s22, 1
      %p61 = por %p59, %p60
      %p62 = scmp.ne.s32.totalorder %s53, %s54
      %p63 = scmp.eq.s32.totalorder %s22, 0
      %p64 = por %p62, %p63
      %p65 = scmp.ne.s32.totalorder %s53, %s54
      %p66 = scmp.eq.s32.totalorder %s23, 1
      %p67 = por %p65, %p66
      %p69 = scmp.ne.s32.totalorder %s54, %s68
      %p70 = scmp.eq.s32.totalorder %s23, 0
      %p71 = por %p69, %p70
      %s73 = sadd.s32 %s72, 1
      %p76 = scmp.eq.s32.totalorder %s17, 1
      %p77 = scmp.ne.s32.totalorder %s72, %s74
      %p78 = scmp.eq.s32.totalorder %s17, 0
      %p79 = por %p77, %p78
      %p80 = scmp.ne.s32.totalorder %s72, %s74
      %p81 = scmp.eq.s32.totalorder %s22, 1
      %p82 = por %p80, %p81
      %p83 = scmp.ne.s32.totalorder %s74, %s75
      %p84 = scmp.eq.s32.totalorder %s22, 0
      %p85 = por %p83, %p84
      %p86 = scmp.ne.s32.totalorder %s74, %s75
      %p87 = scmp.eq.s32.totalorder %s23, 1
      %p88 = por %p86, %p87
      %p90 = scmp.ne.s32.totalorder %s75, %s89
      %p91 = scmp.eq.s32.totalorder %s23, 0
      %p92 = por %p90, %p91
      %s94 = sadd.s32 %s93, 1
      %p97 = scmp.eq.s32.totalorder %s17, 1
      %p98 = scmp.ne.s32.totalorder %s93, %s95
      %p99 = scmp.eq.s32.totalorder %s17, 0
      %p100 = por %p98, %p99
      %p101 = scmp.ne.s32.totalorder %s93, %s95
      %p102 = scmp.eq.s32.totalorder %s22, 1
      %p103 = por %p101, %p102
      %p104 = scmp.ne.s32.totalorder %s95, %s96
      %p105 = scmp.eq.s32.totalorder %s22, 0
      %p106 = por %p104, %p105
      %p107 = scmp.ne.s32.totalorder %s95, %s96
      %p108 = scmp.eq.s32.totalorder %s23, 1
      %p109 = por %p107, %p108
      %p111 = scmp.ne.s32.totalorder %s96, %s110
      %p112 = scmp.eq.s32.totalorder %s23, 0
      %p113 = por %p111, %p112
      %s115 = sadd.s32 %s114, 1
      %p118 = scmp.eq.s32.totalorder %s17, 1
      %p119 = scmp.ne.s32.totalorder %s114, %s116
      %p120 = scmp.eq.s32.totalorder %s17, 0
      %p121 = por %p119, %p120
      %p122 = scmp.ne.s32.totalorder %s114, %s116
      %p123 = scmp.eq.s32.totalorder %s22, 1
      %p124 = por %p122, %p123
      %p125 = scmp.ne.s32.totalorder %s116, %s117
      %p126 = scmp.eq.s32.totalorder %s22, 0
      %p127 = por %p125, %p126
      %p128 = scmp.ne.s32.totalorder %s116, %s117
      %p129 = scmp.eq.s32.totalorder %s23, 1
      %p130 = por %p128, %p129
      %p132 = scmp.ne.s32.totalorder %s117, %s131
      %p133 = scmp.eq.s32.totalorder %s23, 0
      %p134 = por %p132, %p133
      %s136 = sadd.s32 %s135, 1
      %p139 = scmp.eq.s32.totalorder %s17, 1
      %p140 = scmp.ne.s32.totalorder %s135, %s137
      %p141 = scmp.eq.s32.totalorder %s17, 0
      %p142 = por %p140, %p141
      %p143 = scmp.ne.s32.totalorder %s135, %s137
      %p144 = scmp.eq.s32.totalorder %s22, 1
      %p145 = por %p143, %p144
      %p146 = scmp.ne.s32.totalorder %s137, %s138
      %p147 = scmp.eq.s32.totalorder %s22, 0
      %p148 = por %p146, %p147
      %p149 = scmp.ne.s32.totalorder %s137, %s138
      %p150 = scmp.eq.s32.totalorder %s23, 1
      %p151 = por %p149, %p150
      %p153 = scmp.ne.s32.totalorder %s138, %s152
      %p154 = scmp.eq.s32.totalorder %s23, 0
      %p155 = por %p153, %p154
      %s157 = sadd.s32 %s156, 1
      %p160 = scmp.eq.s32.totalorder %s17, 1
      %p161 = scmp.ne.s32.totalorder %s156, %s158
      %p162 = scmp.eq.s32.totalorder %s17, 0
      %p163 = por %p161, %p162
      %p164 = scmp.ne.s32.totalorder %s156, %s158
      %p165 = scmp.eq.s32.totalorder %s22, 1
      %p166 = por %p164, %p165
      %p167 = scmp.ne.s32.totalorder %s158, %s159
      %p168 = scmp.eq.s32.totalorder %s22, 0
      %p169 = por %p167, %p168
      %p170 = scmp.ne.s32.totalorder %s158, %s159
      %p171 = scmp.eq.s32.totalorder %s23, 1
      %p172 = por %p170, %p171
      %p174 = scmp.ne.s32.totalorder %s159, %s173
      %p175 = scmp.eq.s32.totalorder %s23, 0
      %p176 = por %p174, %p175
      %s178 = sadd.s32 %s177, 1
      %p181 = scmp.eq.s32.totalorder %s17, 1
      %p182 = scmp.ne.s32.totalorder %s177, %s179
      %p183 = scmp.eq.s32.totalorder %s17, 0
      %p184 = por %p182, %p183
      %p185 = scmp.ne.s32.totalorder %s177, %s179
      %p186 = scmp.eq.s32.totalorder %s22, 1
      %p187 = por %p185, %p186
      %p188 = scmp.ne.s32.totalorder %s179, %s180
      %p189 = scmp.eq.s32.totalorder %s22, 0
      %p190 = por %p188, %p189
      %p191 = scmp.ne.s32.totalorder %s179, %s180
      %p192 = scmp.eq.s32.totalorder %s23, 1
      %p193 = por %p191, %p192
      %p195 = scmp.ne.s32.totalorder %s180, %s194
      %p196 = scmp.eq.s32.totalorder %s23, 0
      %p197 = por %p195, %p196
      %s199 = sadd.s32 %s198, 1
      %p202 = scmp.eq.s32.totalorder %s17, 1
      %p203 = scmp.ne.s32.totalorder %s198, %s200
      %p204 = scmp.eq.s32.totalorder %s17, 0
      %p205 = por %p203, %p204
      %p206 = scmp.ne.s32.totalorder %s198, %s200
      %p207 = scmp.eq.s32.totalorder %s22, 1
      %p208 = por %p206, %p207
      %p209 = scmp.ne.s32.totalorder %s200, %s201
      %p210 = scmp.eq.s32.totalorder %s22, 0
      %p211 = por %p209, %p210
      %p212 = scmp.ne.s32.totalorder %s200, %s201
      %p213 = scmp.eq.s32.totalorder %s23, 1
      %p214 = por %p212, %p213
      %p216 = scmp.ne.s32.totalorder %s201, %s215
      %p217 = scmp.eq.s32.totalorder %s23, 0
      %p218 = por %p216, %p217
      %s220 = sadd.s32 %s219, 1
      %p223 = scmp.eq.s32.totalorder %s17, 1
      %p224 = scmp.ne.s32.totalorder %s219, %s221
      %p225 = scmp.eq.s32.totalorder %s17, 0
      %p226 = por %p224, %p225
      %p227 = scmp.ne.s32.totalorder %s219, %s221
      %p228 = scmp.eq.s32.totalorder %s22, 1
      %p229 = por %p227, %p228
      %p230 = scmp.ne.s32.totalorder %s221, %s222
      %p231 = scmp.eq.s32.totalorder %s22, 0
      %p232 = por %p230, %p231
      %p233 = scmp.ne.s32.totalorder %s221, %s222
      %p234 = scmp.eq.s32.totalorder %s23, 1
      %p235 = por %p233, %p234
      %p237 = scmp.ne.s32.totalorder %s222, %s236
      %p238 = scmp.eq.s32.totalorder %s23, 0
      %p239 = por %p237, %p238
      %s240 = ssub.s32 %s17, %s24
      %p241 = scmp.eq.s32.totalorder %s240, 0
      %s243 = sadd.s32 %s242, 1
      %s244 = scalar_select %p241, %s242, %s243
      %p247 = pneg %p241
      %p248 = scmp.eq.s32.totalorder %s17, 1
      %p249 = por %p247, %p248
      %p250 = scmp.ne.s32.totalorder %s242, %s245
      %p251 = scmp.eq.s32.totalorder %s17, 0
      %p252 = por %p250, %p251
      %p253 = scmp.ne.s32.totalorder %s242, %s245
      %p254 = scmp.eq.s32.totalorder %s22, 1
      %p255 = por %p253, %p254
      %p256 = scmp.ne.s32.totalorder %s245, %s246
      %p257 = scmp.eq.s32.totalorder %s22, 0
      %p258 = por %p256, %p257
      %p259 = scmp.ne.s32.totalorder %s245, %s246
      %p260 = scmp.eq.s32.totalorder %s23, 1
      %p261 = por %p259, %p260
      %p263 = scmp.ne.s32.totalorder %s246, %s262
      %p264 = scmp.eq.s32.totalorder %s23, 0
      %p265 = por %p263, %p264
      %p266 = scmp.le.s32.totalorder 1, %s17
      %p267 = scmp.lt.s32.totalorder %s17, 3
      %p268 = pnand %p266, %p267
      %p269 = pneg %p268
      // Predicated region
      $region9: #{pnet_forward.1} parent=5 // pred_check
        _
      $region10: #{pnet_forward.1} parent=5 // pred_check_branch
        %271 = sbr.rel (%p268) target = $region12
      $region11: #{pnet_forward.1} parent=5 // pred_region
        %s272 = ssub.s32 %s17, 1
        // Predicated region
        $region13: #{pnet_forward.1} parent=11 // pred_check
          %p273 = pneg %p64
        $region14: #{pnet_forward.1} parent=11 // pred_check_branch
          %275 = sbr.rel (%p273) target = $region16
        $region15: #{pnet_forward.1} parent=11 // pred_region
          _
        $region16: #{pnet_forward.1} parent=11 // pred_fallthru
          _
        // Predicated region
        $region17: #{pnet_forward.1} parent=11 // pred_check
          %p276 = pneg %p85
        $region18: #{pnet_forward.1} parent=11 // pred_check_branch
          %278 = sbr.rel (%p276) target = $region20
        $region19: #{pnet_forward.1} parent=11 // pred_region
          _
        $region20: #{pnet_forward.1} parent=11 // pred_fallthru
          _
        // Predicated region
        $region21: #{pnet_forward.1} parent=11 // pred_check
          %p279 = pneg %p106
        $region22: #{pnet_forward.1} parent=11 // pred_check_branch
          %281 = sbr.rel (%p279) target = $region24
        $region23: #{pnet_forward.1} parent=11 // pred_region
          _
        $region24: #{pnet_forward.1} parent=11 // pred_fallthru
          _
        // Predicated region
        $region25: #{pnet_forward.1} parent=11 // pred_check
          %p282 = pneg %p127
        $region26: #{pnet_forward.1} parent=11 // pred_check_branch
          %284 = sbr.rel (%p282) target = $region28
        $region27: #{pnet_forward.1} parent=11 // pred_region
          _
        $region28: #{pnet_forward.1} parent=11 // pred_fallthru
          _
        // Predicated region
        $region29: #{pnet_forward.1} parent=11 // pred_check
          %p285 = pneg %p148
        $region30: #{pnet_forward.1} parent=11 // pred_check_branch
          %287 = sbr.rel (%p285) target = $region32
        $region31: #{pnet_forward.1} parent=11 // pred_region
          _
        $region32: #{pnet_forward.1} parent=11 // pred_fallthru
          _
        // Predicated region
        $region33: #{pnet_forward.1} parent=11 // pred_check
          %p288 = pneg %p169
        $region34: #{pnet_forward.1} parent=11 // pred_check_branch
          %290 = sbr.rel (%p288) target = $region36
        $region35: #{pnet_forward.1} parent=11 // pred_region
          _
        $region36: #{pnet_forward.1} parent=11 // pred_fallthru
          _
        // Predicated region
        $region37: #{pnet_forward.1} parent=11 // pred_check
          %p291 = pneg %p190
        $region38: #{pnet_forward.1} parent=11 // pred_check_branch
          %293 = sbr.rel (%p291) target = $region40
        $region39: #{pnet_forward.1} parent=11 // pred_region
          _
        $region40: #{pnet_forward.1} parent=11 // pred_fallthru
          _
        // Predicated region
        $region41: #{pnet_forward.1} parent=11 // pred_check
          %p294 = pneg %p211
        $region42: #{pnet_forward.1} parent=11 // pred_check_branch
          %296 = sbr.rel (%p294) target = $region44
        $region43: #{pnet_forward.1} parent=11 // pred_region
          _
        $region44: #{pnet_forward.1} parent=11 // pred_fallthru
          _
        // Predicated region
        $region45: #{pnet_forward.1} parent=11 // pred_check
          %p297 = pneg %p232
        $region46: #{pnet_forward.1} parent=11 // pred_check_branch
          %299 = sbr.rel (%p297) target = $region48
        $region47: #{pnet_forward.1} parent=11 // pred_region
          %s301 = ssub.s32 16, 16
          %302 = vsyncadd [#allocation4], %s301
          %s304 = sshll.u32 %s9, 4
          %s305 = int_to_ptr.vmem [resolvable:$true] %s304
          %307 = dma.vmem_to_smem %s305, 16, [#allocation3], [#allocation4]
        $region48: #{pnet_forward.1} parent=11 // pred_fallthru
          _
      $region12: #{pnet_forward.1} parent=5 // pred_fallthru
        _
      %p308 = scmp.lt.s32.totalorder %s17, 2
      // Predicated region
      $region49: #{pnet_forward.1} parent=5 // pred_check
        %p309 = pneg %p308
      $region50: #{pnet_forward.1} parent=5 // pred_check_branch
        %311 = sbr.rel (%p309) target = $region52
      $region51: #{pnet_forward.1} parent=5 // pred_region
        // Predicated region
        $region53: #{pnet_forward.1} parent=51 // pred_check
          %p312 = pneg %p37
        $region54: #{pnet_forward.1} parent=51 // pred_check_branch
          %314 = sbr.rel (%p312) target = $region56
        $region55: #{pnet_forward.1} parent=51 // pred_region
          %p315 = scmp.lt.s32.totalorder %s17, 1
          %s316 = scalar_select %p315, %s17, 1
          %s317 = smul.addr %s316, 32
          %s318 = smul.addr %s317, 8
          %s319 = scalar_lea.vmem %s0, %s318
        $region56: #{pnet_forward.1} parent=51 // pred_fallthru
          _
      $region52: #{pnet_forward.1} parent=5 // pred_fallthru
        _
      %p320 = scmp.le.s32.totalorder 1, %s17
      %p321 = scmp.lt.s32.totalorder %s17, 3
      %p322 = pnand %p320, %p321
      %p323 = pneg %p322
      // Predicated region
      $region57: #{pnet_forward.1} parent=5 // pred_check
        _
      $region58: #{pnet_forward.1} parent=5 // pred_check_branch
        %325 = sbr.rel (%p322) target = $region60
      $region59: #{pnet_forward.1} parent=5 // pred_region
        %s326 = ssub.s32 %s17, 1
        // Predicated region
        $region61: #{pnet_forward.1} parent=59 // pred_check
          %p327 = pneg %p232
        $region62: #{pnet_forward.1} parent=59 // pred_check_branch
          %329 = sbr.rel (%p327) target = $region64
        $region63: #{pnet_forward.1} parent=59 // pred_region
          %330 = dma.done [#allocation4], 16
        $region64: #{pnet_forward.1} parent=59 // pred_fallthru
          _
        %331 = sfence
        %p332 = scmp.lt.s32.totalorder %s22, 1
        %s333 = scalar_select %p332, %s22, 1
        %s334 = smul.addr %s333, 32
        %s335 = smul.addr %s334, 8
        %s336 = scalar_lea.vmem %s0, %s335
        %p337 = pneg %p43
        %p338 = pneg %p40
        %p339 = pneg %p64
        %p340 = pneg %p61
        %p341 = pneg %p85
        %p342 = pneg %p82
        %p343 = pneg %p106
        %p344 = pneg %p103
        %p345 = pneg %p127
        %p346 = pneg %p124
        %p347 = pneg %p148
        %p348 = pneg %p145
        %p349 = pneg %p169
        %p350 = pneg %p166
        %p351 = pneg %p190
        %p352 = pneg %p187
        %p353 = pneg %p211
        %p354 = pneg %p208
        %p355 = pneg %p232
        %p356 = pneg %p229
        %p357 = pneg %p258
        %p358 = pneg %p255
        %p359 = scmp.lt.s32.totalorder %s22, 1
        %s360 = scalar_select %p359, %s22, 1
        %s361 = smul.addr %s360, 2
        %s362 = smul.addr %s361, 8
        %s363 = scalar_lea.vmem %s10, %s362
        %p364 = scmp.lt.s32.totalorder %s22, 1
        %s365 = scalar_select %p364, %s22, 1
        %s366 = smul.addr %s365, 32
        %s367 = smul.addr %s366, 8
        %s368 = scalar_lea.vmem %s0, %s367
        %p369 = scmp.lt.s32.totalorder %s22, 1
        %s370 = scalar_select %p369, %s22, 1
        %s371 = smul.addr %s370, 2
        %s372 = smul.addr %s371, 8
        %s373 = scalar_lea.vmem %s10, %s372
        %vm374 = vcmask 23552
        %375 = vst.msk [vmem:[#allocation2] sm:$0xff] %vm374, 0.0
        %376 = vst.msk [vmem:[#allocation2 + $0x8] sm:$0xff] %vm374, 0.0
        %vm377 = vcmask 17408
        %378 = vst.msk [vmem:[#allocation2 + $0x10] sm:$0x3] %vm377, 0.0
        %s379 = scalar_lea.vmem [#allocation2], 408
        %380 = vst.msk [vmem:[%s379] sm:$0xff] %vm374, 0.0
        %381 = vst.msk [vmem:[%s379 + $0x8] sm:$0xff] %vm374, 0.0
        %382 = vst.msk [vmem:[%s379 + $0x10] sm:$0x3] %vm377, 0.0
        %s383 = scalar_lea.vmem [#allocation2], 24
        %vm384 = vcmask 16384
        %385 = vst.msk [vmem:[%s383] sm:$0x1] %vm384, 0.0
        %386 = vst.msk [vmem:[%s383 + $0x18] sm:$0x1] %vm384, 0.0
        %387 = vst.msk [vmem:[%s383 + $0x30] sm:$0x1] %vm384, 0.0
        %388 = vst.msk [vmem:[%s383 + $0x48] sm:$0x1] %vm384, 0.0
        %389 = vst.msk [vmem:[%s383 + $0x60] sm:$0x1] %vm384, 0.0
        %390 = vst.msk [vmem:[%s383 + $0x78] sm:$0x1] %vm384, 0.0
        %391 = vst.msk [vmem:[%s383 + $0x90] sm:$0x1] %vm384, 0.0
        %392 = vst.msk [vmem:[%s383 + $0xa8] sm:$0x1] %vm384, 0.0
        %393 = vst.msk [vmem:[%s383 + $0xc0] sm:$0x1] %vm384, 0.0
        %394 = vst.msk [vmem:[%s383 + $0xd8] sm:$0x1] %vm384, 0.0
        %395 = vst.msk [vmem:[%s383 + $0xf0] sm:$0x1] %vm384, 0.0
        %396 = vst.msk [vmem:[%s383 + $0x108] sm:$0x1] %vm384, 0.0
        %397 = vst.msk [vmem:[%s383 + $0x120] sm:$0x1] %vm384, 0.0
        %398 = vst.msk [vmem:[%s383 + $0x138] sm:$0x1] %vm384, 0.0
        %399 = vst.msk [vmem:[%s383 + $0x150] sm:$0x1] %vm384, 0.0
        %400 = vst.msk [vmem:[%s383 + $0x168] sm:$0x1] %vm384, 0.0
        %401 = vst.msk [vmem:[%s383 + $0x11] sm:$0x1] %vm384, 0.0
        %402 = vst.msk [vmem:[%s383 + $0x29] sm:$0x1] %vm384, 0.0
        %403 = vst.msk [vmem:[%s383 + $0x41] sm:$0x1] %vm384, 0.0
        %404 = vst.msk [vmem:[%s383 + $0x59] sm:$0x1] %vm384, 0.0
        %405 = vst.msk [vmem:[%s383 + $0x71] sm:$0x1] %vm384, 0.0
        %406 = vst.msk [vmem:[%s383 + $0x89] sm:$0x1] %vm384, 0.0
        %407 = vst.msk [vmem:[%s383 + $0xa1] sm:$0x1] %vm384, 0.0
        %408 = vst.msk [vmem:[%s383 + $0xb9] sm:$0x1] %vm384, 0.0
        %409 = vst.msk [vmem:[%s383 + $0xd1] sm:$0x1] %vm384, 0.0
        %410 = vst.msk [vmem:[%s383 + $0xe9] sm:$0x1] %vm384, 0.0
        %411 = vst.msk [vmem:[%s383 + $0x101] sm:$0x1] %vm384, 0.0
        %412 = vst.msk [vmem:[%s383 + $0x119] sm:$0x1] %vm384, 0.0
        %413 = vst.msk [vmem:[%s383 + $0x131] sm:$0x1] %vm384, 0.0
        %414 = vst.msk [vmem:[%s383 + $0x149] sm:$0x1] %vm384, 0.0
        %415 = vst.msk [vmem:[%s383 + $0x161] sm:$0x1] %vm384, 0.0
        %416 = vst.msk [vmem:[%s383 + $0x179] sm:$0x1] %vm384, 0.0
        %v417 = vld [vmem:[%s368] sm:$0xff]
        %v418 = vld [vmem:[%s368 + $0x8] sm:$0xff]
        %v419 = vld [vmem:[%s368 + $0x10] sm:$0xff]
        %v420 = vld [vmem:[%s368 + $0x18] sm:$0xff]
        %v421 = vld [vmem:[%s368 + $0x20] sm:$0xff]
        %v422 = vld [vmem:[%s368 + $0x28] sm:$0xff]
        %v423 = vld [vmem:[%s368 + $0x30] sm:$0xff]
        %v424 = vld [vmem:[%s368 + $0x38] sm:$0xff]
        %v425 = vld [vmem:[%s368 + $0x40] sm:$0xff]
        %v426 = vld [vmem:[%s368 + $0x48] sm:$0xff]
        %v427 = vld [vmem:[%s368 + $0x50] sm:$0xff]
        %v428 = vld [vmem:[%s368 + $0x58] sm:$0xff]
        %v429 = vld [vmem:[%s368 + $0x60] sm:$0xff]
        %v430 = vld [vmem:[%s368 + $0x68] sm:$0xff]
        %v431 = vld [vmem:[%s368 + $0x70] sm:$0xff]
        %v432 = vld [vmem:[%s368 + $0x78] sm:$0xff]
        %v433 = vld [vmem:[%s368 + $0x80] sm:$0xff]
        %v434 = vld [vmem:[%s368 + $0x88] sm:$0xff]
        %v435 = vld [vmem:[%s368 + $0x90] sm:$0xff]
        %v436 = vld [vmem:[%s368 + $0x98] sm:$0xff]
        %v437 = vld [vmem:[%s368 + $0xa0] sm:$0xff]
        %v438 = vld [vmem:[%s368 + $0xa8] sm:$0xff]
        %v439 = vld [vmem:[%s368 + $0xb0] sm:$0xff]
        %v440 = vld [vmem:[%s368 + $0xb8] sm:$0xff]
        %v441 = vld [vmem:[%s368 + $0xc0] sm:$0xff]
        %v442 = vld [vmem:[%s368 + $0xc8] sm:$0xff]
        %v443 = vld [vmem:[%s368 + $0xd0] sm:$0xff]
        %v444 = vld [vmem:[%s368 + $0xd8] sm:$0xff]
        %v445 = vld [vmem:[%s368 + $0xe0] sm:$0xff]
        %v446 = vld [vmem:[%s368 + $0xe8] sm:$0xff]
        %v447 = vld [vmem:[%s368 + $0xf0] sm:$0xff]
        %v448 = vld [vmem:[%s368 + $0xf8] sm:$0xff]
        %449 = vst.msk [vmem:[%s383 + $0x1] sm:$0xff] %vm374, %v417
        %450 = vst.msk [vmem:[%s383 + $0x9] sm:$0xff] %vm374, %v418
        %451 = vst.msk [vmem:[%s383 + $0x19] sm:$0xff] %vm374, %v419
        %452 = vst.msk [vmem:[%s383 + $0x21] sm:$0xff] %vm374, %v420
        %453 = vst.msk [vmem:[%s383 + $0x31] sm:$0xff] %vm374, %v421
        %454 = vst.msk [vmem:[%s383 + $0x39] sm:$0xff] %vm374, %v422
        %455 = vst.msk [vmem:[%s383 + $0x49] sm:$0xff] %vm374, %v423
        %456 = vst.msk [vmem:[%s383 + $0x51] sm:$0xff] %vm374, %v424
        %457 = vst.msk [vmem:[%s383 + $0x61] sm:$0xff] %vm374, %v425
        %458 = vst.msk [vmem:[%s383 + $0x69] sm:$0xff] %vm374, %v426
        %459 = vst.msk [vmem:[%s383 + $0x79] sm:$0xff] %vm374, %v427
        %460 = vst.msk [vmem:[%s383 + $0x81] sm:$0xff] %vm374, %v428
        %461 = vst.msk [vmem:[%s383 + $0x91] sm:$0xff] %vm374, %v429
        %462 = vst.msk [vmem:[%s383 + $0x99] sm:$0xff] %vm374, %v430
        %463 = vst.msk [vmem:[%s383 + $0xa9] sm:$0xff] %vm374, %v431
        %464 = vst.msk [vmem:[%s383 + $0xb1] sm:$0xff] %vm374, %v432
        %465 = vst.msk [vmem:[%s383 + $0xc1] sm:$0xff] %vm374, %v433
        %466 = vst.msk [vmem:[%s383 + $0xc9] sm:$0xff] %vm374, %v434
        %467 = vst.msk [vmem:[%s383 + $0xd9] sm:$0xff] %vm374, %v435
        %468 = vst.msk [vmem:[%s383 + $0xe1] sm:$0xff] %vm374, %v436
        %469 = vst.msk [vmem:[%s383 + $0xf1] sm:$0xff] %vm374, %v437
        %470 = vst.msk [vmem:[%s383 + $0xf9] sm:$0xff] %vm374, %v438
        %471 = vst.msk [vmem:[%s383 + $0x109] sm:$0xff] %vm374, %v439
        %472 = vst.msk [vmem:[%s383 + $0x111] sm:$0xff] %vm374, %v440
        %473 = vst.msk [vmem:[%s383 + $0x121] sm:$0xff] %vm374, %v441
        %474 = vst.msk [vmem:[%s383 + $0x129] sm:$0xff] %vm374, %v442
        %475 = vst.msk [vmem:[%s383 + $0x139] sm:$0xff] %vm374, %v443
        %476 = vst.msk [vmem:[%s383 + $0x141] sm:$0xff] %vm374, %v444
        %477 = vst.msk [vmem:[%s383 + $0x151] sm:$0xff] %vm374, %v445
        %478 = vst.msk [vmem:[%s383 + $0x159] sm:$0xff] %vm374, %v446
        %479 = vst.msk [vmem:[%s383 + $0x169] sm:$0xff] %vm374, %v447
        %480 = vst.msk [vmem:[%s383 + $0x171] sm:$0xff] %vm374, %v448
        %v481 = vld [vmem:[#allocation2] sm:$0xff]
        %v482 = vld [vmem:[#allocation2 + $0x8] sm:$0xff]
        %v483 = vld [vmem:[#allocation2 + $0x10] sm:$0x3]
        %v484 = vld [vmem:[#allocation2 + $0x18] sm:$0xff]
        %v485 = vld [vmem:[#allocation2 + $0x20] sm:$0xff]
        %v486 = vld [vmem:[#allocation2 + $0x28] sm:$0x3]
        %v487 = vld [vmem:[#allocation2 + $0x30] sm:$0xff]
        %v488 = vld [vmem:[#allocation2 + $0x38] sm:$0xff]
        %v489 = vld [vmem:[#allocation2 + $0x40] sm:$0x3]
        %v490 = vld [vmem:[#allocation2 + $0x48] sm:$0xff]
        %v491 = vld [vmem:[#allocation2 + $0x50] sm:$0xff]
        %v492 = vld [vmem:[#allocation2 + $0x58] sm:$0x3]
        %v493 = vld [vmem:[#allocation2 + $0x60] sm:$0xff]
        %v494 = vld [vmem:[#allocation2 + $0x68] sm:$0xff]
        %v495 = vld [vmem:[#allocation2 + $0x70] sm:$0x3]
        %v496 = vld [vmem:[#allocation2 + $0x78] sm:$0xff]
        %v497 = vld [vmem:[#allocation2 + $0x80] sm:$0xff]
        %v498 = vld [vmem:[#allocation2 + $0x88] sm:$0x3]
        %v499 = vld [vmem:[#allocation2 + $0x90] sm:$0xff]
        %v500 = vld [vmem:[#allocation2 + $0x98] sm:$0xff]
        %v501 = vld [vmem:[#allocation2 + $0xa0] sm:$0x3]
        %v502 = vld [vmem:[#allocation2 + $0xa8] sm:$0xff]
        %v503 = vld [vmem:[#allocation2 + $0xb0] sm:$0xff]
        %v504 = vld [vmem:[#allocation2 + $0xb8] sm:$0x3]
        %v505 = vld [vmem:[#allocation2 + $0xc0] sm:$0xff]
        %v506 = vld [vmem:[#allocation2 + $0xc8] sm:$0xff]
        %v507 = vld [vmem:[#allocation2 + $0xd0] sm:$0x3]
        %v508 = vld [vmem:[#allocation2 + $0xd8] sm:$0xff]
        %v509 = vld [vmem:[#allocation2 + $0xe0] sm:$0xff]
        %v510 = vld [vmem:[#allocation2 + $0xe8] sm:$0x3]
        %v511 = vld [vmem:[#allocation2 + $0xf0] sm:$0xff]
        %v512 = vld [vmem:[#allocation2 + $0xf8] sm:$0xff]
        %v513 = vld [vmem:[#allocation2 + $0x100] sm:$0x3]
        %v514 = vld [vmem:[#allocation2 + $0x108] sm:$0xff]
        %v515 = vld [vmem:[#allocation2 + $0x110] sm:$0xff]
        %v516 = vld [vmem:[#allocation2 + $0x118] sm:$0x3]
        %v517 = vld [vmem:[#allocation2 + $0x120] sm:$0xff]
        %v518 = vld [vmem:[#allocation2 + $0x128] sm:$0xff]
        %v519 = vld [vmem:[#allocation2 + $0x130] sm:$0x3]
        %v520 = vld [vmem:[#allocation2 + $0x138] sm:$0xff]
        %v521 = vld [vmem:[#allocation2 + $0x140] sm:$0xff]
        %v522 = vld [vmem:[#allocation2 + $0x148] sm:$0x3]
        %v523 = vld [vmem:[#allocation2 + $0x150] sm:$0xff]
        %v524 = vld [vmem:[#allocation2 + $0x158] sm:$0xff]
        %v525 = vld [vmem:[#allocation2 + $0x160] sm:$0x3]
        %v526 = vld [vmem:[#allocation2 + $0x168] sm:$0xff]
        %v527 = vld [vmem:[#allocation2 + $0x170] sm:$0xff]
        %v528 = vld [vmem:[#allocation2 + $0x178] sm:$0x3]
        %v529 = vld [vmem:[#allocation2 + $0x180] sm:$0xff]
        %v530 = vld [vmem:[#allocation2 + $0x188] sm:$0xff]
        %v531 = vld [vmem:[#allocation2 + $0x190] sm:$0x3]
        %v532 = vld [vmem:[#allocation2 + $0x198] sm:$0xff]
        %v533 = vld [vmem:[#allocation2 + $0x1a0] sm:$0xff]
        %v534 = vld [vmem:[#allocation2 + $0x1a8] sm:$0x3]
        %vm583 = vcmask 1046528
        %v584 = vrot.slane %v481, 1
        %v585 = vrot.slane %v482, 1
        %v586 = vsel %vm583, %v584, %v585
        %v587 = vrot.slane %v483, 1
        %v588 = vsel %vm583, %v585, %v587
        %v589 = vrot.slane %v484, 1
        %v590 = vrot.slane %v485, 1
        %v591 = vsel %vm583, %v589, %v590
        %v592 = vrot.slane %v486, 1
        %v593 = vsel %vm583, %v590, %v592
        %v594 = vrot.slane %v487, 1
        %v595 = vrot.slane %v488, 1
        %v596 = vsel %vm583, %v594, %v595
        %v597 = vrot.slane %v489, 1
        %v598 = vsel %vm583, %v595, %v597
        %v599 = vrot.slane %v490, 1
        %v600 = vrot.slane %v491, 1
        %v601 = vsel %vm583, %v599, %v600
        %v602 = vrot.slane %v492, 1
        %v603 = vsel %vm583, %v600, %v602
        %v604 = vrot.slane %v493, 1
        %v605 = vrot.slane %v494, 1
        %v606 = vsel %vm583, %v604, %v605
        %v607 = vrot.slane %v495, 1
        %v608 = vsel %vm583, %v605, %v607
        %v609 = vrot.slane %v496, 1
        %v610 = vrot.slane %v497, 1
        %v611 = vsel %vm583, %v609, %v610
        %v612 = vrot.slane %v498, 1
        %v613 = vsel %vm583, %v610, %v612
        %v614 = vrot.slane %v499, 1
        %v615 = vrot.slane %v500, 1
        %v616 = vsel %vm583, %v614, %v615
        %v617 = vrot.slane %v501, 1
        %v618 = vsel %vm583, %v615, %v617
        %v619 = vrot.slane %v502, 1
        %v620 = vrot.slane %v503, 1
        %v621 = vsel %vm583, %v619, %v620
        %v622 = vrot.slane %v504, 1
        %v623 = vsel %vm583, %v620, %v622
        %v624 = vrot.slane %v505, 1
        %v625 = vrot.slane %v506, 1
        %v626 = vsel %vm583, %v624, %v625
        %v627 = vrot.slane %v507, 1
        %v628 = vsel %vm583, %v625, %v627
        %v629 = vrot.slane %v508, 1
        %v630 = vrot.slane %v509, 1
        %v631 = vsel %vm583, %v629, %v630
        %v632 = vrot.slane %v510, 1
        %v633 = vsel %vm583, %v630, %v632
        %v634 = vrot.slane %v511, 1
        %v635 = vrot.slane %v512, 1
        %v636 = vsel %vm583, %v634, %v635
        %v637 = vrot.slane %v513, 1
        %v638 = vsel %vm583, %v635, %v637
        %v639 = vrot.slane %v514, 1
        %v640 = vrot.slane %v515, 1
        %v641 = vsel %vm583, %v639, %v640
        %v642 = vrot.slane %v516, 1
        %v643 = vsel %vm583, %v640, %v642
        %v644 = vrot.slane %v517, 1
        %v645 = vrot.slane %v518, 1
        %v646 = vsel %vm583, %v644, %v645
        %v647 = vrot.slane %v519, 1
        %v648 = vsel %vm583, %v645, %v647
        %v649 = vrot.slane %v520, 1
        %v650 = vrot.slane %v521, 1
        %v651 = vsel %vm583, %v649, %v650
        %v652 = vrot.slane %v522, 1
        %v653 = vsel %vm583, %v650, %v652
        %v654 = vrot.slane %v523, 1
        %v655 = vrot.slane %v524, 1
        %v656 = vsel %vm583, %v654, %v655
        %v657 = vrot.slane %v525, 1
        %v658 = vsel %vm583, %v655, %v657
        %v659 = vrot.slane %v526, 1
        %v660 = vrot.slane %v527, 1
        %v661 = vsel %vm583, %v659, %v660
        %v662 = vrot.slane %v528, 1
        %v663 = vsel %vm583, %v660, %v662
        %664 = vrot.lane.b32.xlu0 %v586, 3
        %v665 = vpop.permute.xlu0 %664
        %666 = vrot.lane.b32.xlu0 %v588, 3
        %v667 = vpop.permute.xlu0 %666
        %668 = vrot.lane.b32.xlu0 %v591, 3
        %v669 = vpop.permute.xlu0 %668
        %670 = vrot.lane.b32.xlu0 %v593, 3
        %v671 = vpop.permute.xlu0 %670
        %672 = vrot.lane.b32.xlu0 %v596, 3
        %v673 = vpop.permute.xlu0 %672
        %674 = vrot.lane.b32.xlu0 %v598, 3
        %v675 = vpop.permute.xlu0 %674
        %676 = vrot.lane.b32.xlu0 %v601, 3
        %v677 = vpop.permute.xlu0 %676
        %678 = vrot.lane.b32.xlu0 %v603, 3
        %v679 = vpop.permute.xlu0 %678
        %680 = vrot.lane.b32.xlu0 %v606, 3
        %v681 = vpop.permute.xlu0 %680
        %682 = vrot.lane.b32.xlu0 %v608, 3
        %v683 = vpop.permute.xlu0 %682
        %684 = vrot.lane.b32.xlu0 %v611, 3
        %v685 = vpop.permute.xlu0 %684
        %686 = vrot.lane.b32.xlu0 %v613, 3
        %v687 = vpop.permute.xlu0 %686
        %688 = vrot.lane.b32.xlu0 %v616, 3
        %v689 = vpop.permute.xlu0 %688
        %690 = vrot.lane.b32.xlu0 %v618, 3
        %v691 = vpop.permute.xlu0 %690
        %692 = vrot.lane.b32.xlu0 %v621, 3
        %v693 = vpop.permute.xlu0 %692
        %694 = vrot.lane.b32.xlu0 %v623, 3
        %v695 = vpop.permute.xlu0 %694
        %696 = vrot.lane.b32.xlu0 %v626, 3
        %v697 = vpop.permute.xlu0 %696
        %698 = vrot.lane.b32.xlu0 %v628, 3
        %v699 = vpop.permute.xlu0 %698
        %700 = vrot.lane.b32.xlu0 %v631, 3
        %v701 = vpop.permute.xlu0 %700
        %702 = vrot.lane.b32.xlu0 %v633, 3
        %v703 = vpop.permute.xlu0 %702
        %704 = vrot.lane.b32.xlu0 %v636, 3
        %v705 = vpop.permute.xlu0 %704
        %706 = vrot.lane.b32.xlu0 %v638, 3
        %v707 = vpop.permute.xlu0 %706
        %708 = vrot.lane.b32.xlu0 %v641, 3
        %v709 = vpop.permute.xlu0 %708
        %710 = vrot.lane.b32.xlu0 %v643, 3
        %v711 = vpop.permute.xlu0 %710
        %712 = vrot.lane.b32.xlu0 %v646, 3
        %v713 = vpop.permute.xlu0 %712
        %714 = vrot.lane.b32.xlu0 %v648, 3
        %v715 = vpop.permute.xlu0 %714
        %716 = vrot.lane.b32.xlu0 %v651, 3
        %v717 = vpop.permute.xlu0 %716
        %718 = vrot.lane.b32.xlu0 %v653, 3
        %v719 = vpop.permute.xlu0 %718
        %720 = vrot.lane.b32.xlu0 %v656, 3
        %v721 = vpop.permute.xlu0 %720
        %722 = vrot.lane.b32.xlu0 %v658, 3
        %v723 = vpop.permute.xlu0 %722
        %724 = vrot.lane.b32.xlu0 %v661, 3
        %v725 = vpop.permute.xlu0 %724
        %726 = vrot.lane.b32.xlu0 %v663, 3
        %v727 = vpop.permute.xlu0 %726
        %vm760 = vcmask 1045504
        %v761 = vrot.slane %v481, 2
        %v762 = vrot.slane %v482, 2
        %v763 = vsel %vm760, %v761, %v762
        %v764 = vrot.slane %v483, 2
        %v765 = vsel %vm760, %v762, %v764
        %v766 = vrot.slane %v484, 2
        %v767 = vrot.slane %v485, 2
        %v768 = vsel %vm760, %v766, %v767
        %v769 = vrot.slane %v486, 2
        %v770 = vsel %vm760, %v767, %v769
        %v771 = vrot.slane %v487, 2
        %v772 = vrot.slane %v488, 2
        %v773 = vsel %vm760, %v771, %v772
        %v774 = vrot.slane %v489, 2
        %v775 = vsel %vm760, %v772, %v774
        %v776 = vrot.slane %v490, 2
        %v777 = vrot.slane %v491, 2
        %v778 = vsel %vm760, %v776, %v777
        %v779 = vrot.slane %v492, 2
        %v780 = vsel %vm760, %v777, %v779
        %v781 = vrot.slane %v493, 2
        %v782 = vrot.slane %v494, 2
        %v783 = vsel %vm760, %v781, %v782
        %v784 = vrot.slane %v495, 2
        %v785 = vsel %vm760, %v782, %v784
        %v786 = vrot.slane %v496, 2
        %v787 = vrot.slane %v497, 2
        %v788 = vsel %vm760, %v786, %v787
        %v789 = vrot.slane %v498, 2
        %v790 = vsel %vm760, %v787, %v789
        %v791 = vrot.slane %v499, 2
        %v792 = vrot.slane %v500, 2
        %v793 = vsel %vm760, %v791, %v792
        %v794 = vrot.slane %v501, 2
        %v795 = vsel %vm760, %v792, %v794
        %v796 = vrot.slane %v502, 2
        %v797 = vrot.slane %v503, 2
        %v798 = vsel %vm760, %v796, %v797
        %v799 = vrot.slane %v504, 2
        %v800 = vsel %vm760, %v797, %v799
        %v801 = vrot.slane %v505, 2
        %v802 = vrot.slane %v506, 2
        %v803 = vsel %vm760, %v801, %v802
        %v804 = vrot.slane %v507, 2
        %v805 = vsel %vm760, %v802, %v804
        %v806 = vrot.slane %v508, 2
        %v807 = vrot.slane %v509, 2
        %v808 = vsel %vm760, %v806, %v807
        %v809 = vrot.slane %v510, 2
        %v810 = vsel %vm760, %v807, %v809
        %v811 = vrot.slane %v511, 2
        %v812 = vrot.slane %v512, 2
        %v813 = vsel %vm760, %v811, %v812
        %v814 = vrot.slane %v513, 2
        %v815 = vsel %vm760, %v812, %v814
        %v816 = vrot.slane %v514, 2
        %v817 = vrot.slane %v515, 2
        %v818 = vsel %vm760, %v816, %v817
        %v819 = vrot.slane %v516, 2
        %v820 = vsel %vm760, %v817, %v819
        %v821 = vrot.slane %v517, 2
        %v822 = vrot.slane %v518, 2
        %v823 = vsel %vm760, %v821, %v822
        %v824 = vrot.slane %v519, 2
        %v825 = vsel %vm760, %v822, %v824
        %v826 = vrot.slane %v520, 2
        %v827 = vrot.slane %v521, 2
        %v828 = vsel %vm760, %v826, %v827
        %v829 = vrot.slane %v522, 2
        %v830 = vsel %vm760, %v827, %v829
        %v831 = vrot.slane %v523, 2
        %v832 = vrot.slane %v524, 2
        %v833 = vsel %vm760, %v831, %v832
        %v834 = vrot.slane %v525, 2
        %v835 = vsel %vm760, %v832, %v834
        %v836 = vrot.slane %v526, 2
        %v837 = vrot.slane %v527, 2
        %v838 = vsel %vm760, %v836, %v837
        %v839 = vrot.slane %v528, 2
        %v840 = vsel %vm760, %v837, %v839
        %841 = vrot.lane.b32.xlu0 %v763, 6
        %v842 = vpop.permute.xlu0 %841
        %843 = vrot.lane.b32.xlu0 %v765, 6
        %v844 = vpop.permute.xlu0 %843
        %845 = vrot.lane.b32.xlu0 %v768, 6
        %v846 = vpop.permute.xlu0 %845
        %847 = vrot.lane.b32.xlu0 %v770, 6
        %v848 = vpop.permute.xlu0 %847
        %849 = vrot.lane.b32.xlu0 %v773, 6
        %v850 = vpop.permute.xlu0 %849
        %851 = vrot.lane.b32.xlu0 %v775, 6
        %v852 = vpop.permute.xlu0 %851
        %853 = vrot.lane.b32.xlu0 %v778, 6
        %v854 = vpop.permute.xlu0 %853
        %855 = vrot.lane.b32.xlu0 %v780, 6
        %v856 = vpop.permute.xlu0 %855
        %857 = vrot.lane.b32.xlu0 %v783, 6
        %v858 = vpop.permute.xlu0 %857
        %859 = vrot.lane.b32.xlu0 %v785, 6
        %v860 = vpop.permute.xlu0 %859
        %861 = vrot.lane.b32.xlu0 %v788, 6
        %v862 = vpop.permute.xlu0 %861
        %863 = vrot.lane.b32.xlu0 %v790, 6
        %v864 = vpop.permute.xlu0 %863
        %865 = vrot.lane.b32.xlu0 %v793, 6
        %v866 = vpop.permute.xlu0 %865
        %867 = vrot.lane.b32.xlu0 %v795, 6
        %v868 = vpop.permute.xlu0 %867
        %869 = vrot.lane.b32.xlu0 %v798, 6
        %v870 = vpop.permute.xlu0 %869
        %871 = vrot.lane.b32.xlu0 %v800, 6
        %v872 = vpop.permute.xlu0 %871
        %873 = vrot.lane.b32.xlu0 %v803, 6
        %v874 = vpop.permute.xlu0 %873
        %875 = vrot.lane.b32.xlu0 %v805, 6
        %v876 = vpop.permute.xlu0 %875
        %877 = vrot.lane.b32.xlu0 %v808, 6
        %v878 = vpop.permute.xlu0 %877
        %879 = vrot.lane.b32.xlu0 %v810, 6
        %v880 = vpop.permute.xlu0 %879
        %881 = vrot.lane.b32.xlu0 %v813, 6
        %v882 = vpop.permute.xlu0 %881
        %883 = vrot.lane.b32.xlu0 %v815, 6
        %v884 = vpop.permute.xlu0 %883
        %885 = vrot.lane.b32.xlu0 %v818, 6
        %v886 = vpop.permute.xlu0 %885
        %887 = vrot.lane.b32.xlu0 %v820, 6
        %v888 = vpop.permute.xlu0 %887
        %889 = vrot.lane.b32.xlu0 %v823, 6
        %v890 = vpop.permute.xlu0 %889
        %891 = vrot.lane.b32.xlu0 %v825, 6
        %v892 = vpop.permute.xlu0 %891
        %893 = vrot.lane.b32.xlu0 %v828, 6
        %v894 = vpop.permute.xlu0 %893
        %895 = vrot.lane.b32.xlu0 %v830, 6
        %v896 = vpop.permute.xlu0 %895
        %897 = vrot.lane.b32.xlu0 %v833, 6
        %v898 = vpop.permute.xlu0 %897
        %899 = vrot.lane.b32.xlu0 %v835, 6
        %v900 = vpop.permute.xlu0 %899
        %901 = vrot.lane.b32.xlu0 %v838, 6
        %v902 = vpop.permute.xlu0 %901
        %903 = vrot.lane.b32.xlu0 %v840, 6
        %v904 = vpop.permute.xlu0 %903
        %939 = vrot.lane.b32.xlu0 %v484, 9
        %v940 = vpop.permute.xlu0 %939
        %941 = vrot.lane.b32.xlu0 %v485, 9
        %v942 = vpop.permute.xlu0 %941
        %943 = vrot.lane.b32.xlu0 %v487, 9
        %v944 = vpop.permute.xlu0 %943
        %945 = vrot.lane.b32.xlu0 %v488, 9
        %v946 = vpop.permute.xlu0 %945
        %947 = vrot.lane.b32.xlu0 %v490, 9
        %v948 = vpop.permute.xlu0 %947
        %949 = vrot.lane.b32.xlu0 %v491, 9
        %v950 = vpop.permute.xlu0 %949
        %951 = vrot.lane.b32.xlu0 %v493, 9
        %v952 = vpop.permute.xlu0 %951
        %953 = vrot.lane.b32.xlu0 %v494, 9
        %v954 = vpop.permute.xlu0 %953
        %955 = vrot.lane.b32.xlu0 %v496, 9
        %v956 = vpop.permute.xlu0 %955
        %957 = vrot.lane.b32.xlu0 %v497, 9
        %v958 = vpop.permute.xlu0 %957
        %959 = vrot.lane.b32.xlu0 %v499, 9
        %v960 = vpop.permute.xlu0 %959
        %961 = vrot.lane.b32.xlu0 %v500, 9
        %v962 = vpop.permute.xlu0 %961
        %963 = vrot.lane.b32.xlu0 %v502, 9
        %v964 = vpop.permute.xlu0 %963
        %965 = vrot.lane.b32.xlu0 %v503, 9
        %v966 = vpop.permute.xlu0 %965
        %967 = vrot.lane.b32.xlu0 %v505, 9
        %v968 = vpop.permute.xlu0 %967
        %969 = vrot.lane.b32.xlu0 %v506, 9
        %v970 = vpop.permute.xlu0 %969
        %971 = vrot.lane.b32.xlu0 %v508, 9
        %v972 = vpop.permute.xlu0 %971
        %973 = vrot.lane.b32.xlu0 %v509, 9
        %v974 = vpop.permute.xlu0 %973
        %975 = vrot.lane.b32.xlu0 %v511, 9
        %v976 = vpop.permute.xlu0 %975
        %977 = vrot.lane.b32.xlu0 %v512, 9
        %v978 = vpop.permute.xlu0 %977
        %979 = vrot.lane.b32.xlu0 %v514, 9
        %v980 = vpop.permute.xlu0 %979
        %981 = vrot.lane.b32.xlu0 %v515, 9
        %v982 = vpop.permute.xlu0 %981
        %983 = vrot.lane.b32.xlu0 %v517, 9
        %v984 = vpop.permute.xlu0 %983
        %985 = vrot.lane.b32.xlu0 %v518, 9
        %v986 = vpop.permute.xlu0 %985
        %987 = vrot.lane.b32.xlu0 %v520, 9
        %v988 = vpop.permute.xlu0 %987
        %989 = vrot.lane.b32.xlu0 %v521, 9
        %v990 = vpop.permute.xlu0 %989
        %991 = vrot.lane.b32.xlu0 %v523, 9
        %v992 = vpop.permute.xlu0 %991
        %993 = vrot.lane.b32.xlu0 %v524, 9
        %v994 = vpop.permute.xlu0 %993
        %995 = vrot.lane.b32.xlu0 %v526, 9
        %v996 = vpop.permute.xlu0 %995
        %997 = vrot.lane.b32.xlu0 %v527, 9
        %v998 = vpop.permute.xlu0 %997
        %999 = vrot.lane.b32.xlu0 %v529, 9
        %v1000 = vpop.permute.xlu0 %999
        %1001 = vrot.lane.b32.xlu0 %v530, 9
        %v1002 = vpop.permute.xlu0 %1001
        %v1036 = vrot.slane %v529, 1
        %v1037 = vrot.slane %v530, 1
        %v1038 = vsel %vm583, %v1036, %v1037
        %v1039 = vrot.slane %v531, 1
        %v1040 = vsel %vm583, %v1037, %v1039
        %1041 = vrot.lane.b32.xlu0 %v591, 12
        %v1042 = vpop.permute.xlu0 %1041
        %1043 = vrot.lane.b32.xlu0 %v593, 12
        %v1044 = vpop.permute.xlu0 %1043
        %1045 = vrot.lane.b32.xlu0 %v596, 12
        %v1046 = vpop.permute.xlu0 %1045
        %1047 = vrot.lane.b32.xlu0 %v598, 12
        %v1048 = vpop.permute.xlu0 %1047
        %1049 = vrot.lane.b32.xlu0 %v601, 12
        %v1050 = vpop.permute.xlu0 %1049
        %1051 = vrot.lane.b32.xlu0 %v603, 12
        %v1052 = vpop.permute.xlu0 %1051
        %1053 = vrot.lane.b32.xlu0 %v606, 12
        %v1054 = vpop.permute.xlu0 %1053
        %1055 = vrot.lane.b32.xlu0 %v608, 12
        %v1056 = vpop.permute.xlu0 %1055
        %1057 = vrot.lane.b32.xlu0 %v611, 12
        %v1058 = vpop.permute.xlu0 %1057
        %1059 = vrot.lane.b32.xlu0 %v613, 12
        %v1060 = vpop.permute.xlu0 %1059
        %1061 = vrot.lane.b32.xlu0 %v616, 12
        %v1062 = vpop.permute.xlu0 %1061
        %1063 = vrot.lane.b32.xlu0 %v618, 12
        %v1064 = vpop.permute.xlu0 %1063
        %1065 = vrot.lane.b32.xlu0 %v621, 12
        %v1066 = vpop.permute.xlu0 %1065
        %1067 = vrot.lane.b32.xlu0 %v623, 12
        %v1068 = vpop.permute.xlu0 %1067
        %1069 = vrot.lane.b32.xlu0 %v626, 12
        %v1070 = vpop.permute.xlu0 %1069
        %1071 = vrot.lane.b32.xlu0 %v628, 12
        %v1072 = vpop.permute.xlu0 %1071
        %1073 = vrot.lane.b32.xlu0 %v631, 12
        %v1074 = vpop.permute.xlu0 %1073
        %1075 = vrot.lane.b32.xlu0 %v633, 12
        %v1076 = vpop.permute.xlu0 %1075
        %1077 = vrot.lane.b32.xlu0 %v636, 12
        %v1078 = vpop.permute.xlu0 %1077
        %1079 = vrot.lane.b32.xlu0 %v638, 12
        %v1080 = vpop.permute.xlu0 %1079
        %1081 = vrot.lane.b32.xlu0 %v641, 12
        %v1082 = vpop.permute.xlu0 %1081
        %1083 = vrot.lane.b32.xlu0 %v643, 12
        %v1084 = vpop.permute.xlu0 %1083
        %1085 = vrot.lane.b32.xlu0 %v646, 12
        %v1086 = vpop.permute.xlu0 %1085
        %1087 = vrot.lane.b32.xlu0 %v648, 12
        %v1088 = vpop.permute.xlu0 %1087
        %1089 = vrot.lane.b32.xlu0 %v651, 12
        %v1090 = vpop.permute.xlu0 %1089
        %1091 = vrot.lane.b32.xlu0 %v653, 12
        %v1092 = vpop.permute.xlu0 %1091
        %1093 = vrot.lane.b32.xlu0 %v656, 12
        %v1094 = vpop.permute.xlu0 %1093
        %1095 = vrot.lane.b32.xlu0 %v658, 12
        %v1096 = vpop.permute.xlu0 %1095
        %1097 = vrot.lane.b32.xlu0 %v661, 12
        %v1098 = vpop.permute.xlu0 %1097
        %1099 = vrot.lane.b32.xlu0 %v663, 12
        %v1100 = vpop.permute.xlu0 %1099
        %1101 = vrot.lane.b32.xlu0 %v1038, 12
        %v1102 = vpop.permute.xlu0 %1101
        %1103 = vrot.lane.b32.xlu0 %v1040, 12
        %v1104 = vpop.permute.xlu0 %1103
        %v1137 = vrot.slane %v529, 2
        %v1138 = vrot.slane %v530, 2
        %v1139 = vsel %vm760, %v1137, %v1138
        %v1140 = vrot.slane %v531, 2
        %v1141 = vsel %vm760, %v1138, %v1140
        %1142 = vrot.lane.b32.xlu0 %v768, 15
        %v1143 = vpop.permute.xlu0 %1142
        %1144 = vrot.lane.b32.xlu0 %v770, 15
        %v1145 = vpop.permute.xlu0 %1144
        %1146 = vrot.lane.b32.xlu0 %v773, 15
        %v1147 = vpop.permute.xlu0 %1146
        %1148 = vrot.lane.b32.xlu0 %v775, 15
        %v1149 = vpop.permute.xlu0 %1148
        %1150 = vrot.lane.b32.xlu0 %v778, 15
        %v1151 = vpop.permute.xlu0 %1150
        %1152 = vrot.lane.b32.xlu0 %v780, 15
        %v1153 = vpop.permute.xlu0 %1152
        %1154 = vrot.lane.b32.xlu0 %v783, 15
        %v1155 = vpop.permute.xlu0 %1154
        %1156 = vrot.lane.b32.xlu0 %v785, 15
        %v1157 = vpop.permute.xlu0 %1156
        %1158 = vrot.lane.b32.xlu0 %v788, 15
        %v1159 = vpop.permute.xlu0 %1158
        %1160 = vrot.lane.b32.xlu0 %v790, 15
        %v1161 = vpop.permute.xlu0 %1160
        %1162 = vrot.lane.b32.xlu0 %v793, 15
        %v1163 = vpop.permute.xlu0 %1162
        %1164 = vrot.lane.b32.xlu0 %v795, 15
        %v1165 = vpop.permute.xlu0 %1164
        %1166 = vrot.lane.b32.xlu0 %v798, 15
        %v1167 = vpop.permute.xlu0 %1166
        %1168 = vrot.lane.b32.xlu0 %v800, 15
        %v1169 = vpop.permute.xlu0 %1168
        %1170 = vrot.lane.b32.xlu0 %v803, 15
        %v1171 = vpop.permute.xlu0 %1170
        %1172 = vrot.lane.b32.xlu0 %v805, 15
        %v1173 = vpop.permute.xlu0 %1172
        %1174 = vrot.lane.b32.xlu0 %v808, 15
        %v1175 = vpop.permute.xlu0 %1174
        %1176 = vrot.lane.b32.xlu0 %v810, 15
        %v1177 = vpop.permute.xlu0 %1176
        %1178 = vrot.lane.b32.xlu0 %v813, 15
        %v1179 = vpop.permute.xlu0 %1178
        %1180 = vrot.lane.b32.xlu0 %v815, 15
        %v1181 = vpop.permute.xlu0 %1180
        %1182 = vrot.lane.b32.xlu0 %v818, 15
        %v1183 = vpop.permute.xlu0 %1182
        %1184 = vrot.lane.b32.xlu0 %v820, 15
        %v1185 = vpop.permute.xlu0 %1184
        %1186 = vrot.lane.b32.xlu0 %v823, 15
        %v1187 = vpop.permute.xlu0 %1186
        %1188 = vrot.lane.b32.xlu0 %v825, 15
        %v1189 = vpop.permute.xlu0 %1188
        %1190 = vrot.lane.b32.xlu0 %v828, 15
        %v1191 = vpop.permute.xlu0 %1190
        %1192 = vrot.lane.b32.xlu0 %v830, 15
        %v1193 = vpop.permute.xlu0 %1192
        %1194 = vrot.lane.b32.xlu0 %v833, 15
        %v1195 = vpop.permute.xlu0 %1194
        %1196 = vrot.lane.b32.xlu0 %v835, 15
        %v1197 = vpop.permute.xlu0 %1196
        %1198 = vrot.lane.b32.xlu0 %v838, 15
        %v1199 = vpop.permute.xlu0 %1198
        %1200 = vrot.lane.b32.xlu0 %v840, 15
        %v1201 = vpop.permute.xlu0 %1200
        %1202 = vrot.lane.b32.xlu0 %v1139, 15
        %v1203 = vpop.permute.xlu0 %1202
        %1204 = vrot.lane.b32.xlu0 %v1141, 15
        %v1205 = vpop.permute.xlu0 %1204
        %1240 = vrot.lane.b32.xlu0 %v487, 18
        %v1241 = vpop.permute.xlu0 %1240
        %1242 = vrot.lane.b32.xlu0 %v488, 18
        %v1243 = vpop.permute.xlu0 %1242
        %1244 = vrot.lane.b32.xlu0 %v490, 18
        %v1245 = vpop.permute.xlu0 %1244
        %1246 = vrot.lane.b32.xlu0 %v491, 18
        %v1247 = vpop.permute.xlu0 %1246
        %1248 = vrot.lane.b32.xlu0 %v493, 18
        %v1249 = vpop.permute.xlu0 %1248
        %1250 = vrot.lane.b32.xlu0 %v494, 18
        %v1251 = vpop.permute.xlu0 %1250
        %1252 = vrot.lane.b32.xlu0 %v496, 18
        %v1253 = vpop.permute.xlu0 %1252
        %1254 = vrot.lane.b32.xlu0 %v497, 18
        %v1255 = vpop.permute.xlu0 %1254
        %1256 = vrot.lane.b32.xlu0 %v499, 18
        %v1257 = vpop.permute.xlu0 %1256
        %1258 = vrot.lane.b32.xlu0 %v500, 18
        %v1259 = vpop.permute.xlu0 %1258
        %1260 = vrot.lane.b32.xlu0 %v502, 18
        %v1261 = vpop.permute.xlu0 %1260
        %1262 = vrot.lane.b32.xlu0 %v503, 18
        %v1263 = vpop.permute.xlu0 %1262
        %1264 = vrot.lane.b32.xlu0 %v505, 18
        %v1265 = vpop.permute.xlu0 %1264
        %1266 = vrot.lane.b32.xlu0 %v506, 18
        %v1267 = vpop.permute.xlu0 %1266
        %1268 = vrot.lane.b32.xlu0 %v508, 18
        %v1269 = vpop.permute.xlu0 %1268
        %1270 = vrot.lane.b32.xlu0 %v509, 18
        %v1271 = vpop.permute.xlu0 %1270
        %1272 = vrot.lane.b32.xlu0 %v511, 18
        %v1273 = vpop.permute.xlu0 %1272
        %1274 = vrot.lane.b32.xlu0 %v512, 18
        %v1275 = vpop.permute.xlu0 %1274
        %1276 = vrot.lane.b32.xlu0 %v514, 18
        %v1277 = vpop.permute.xlu0 %1276
        %1278 = vrot.lane.b32.xlu0 %v515, 18
        %v1279 = vpop.permute.xlu0 %1278
        %1280 = vrot.lane.b32.xlu0 %v517, 18
        %v1281 = vpop.permute.xlu0 %1280
        %1282 = vrot.lane.b32.xlu0 %v518, 18
        %v1283 = vpop.permute.xlu0 %1282
        %1284 = vrot.lane.b32.xlu0 %v520, 18
        %v1285 = vpop.permute.xlu0 %1284
        %1286 = vrot.lane.b32.xlu0 %v521, 18
        %v1287 = vpop.permute.xlu0 %1286
        %1288 = vrot.lane.b32.xlu0 %v523, 18
        %v1289 = vpop.permute.xlu0 %1288
        %1290 = vrot.lane.b32.xlu0 %v524, 18
        %v1291 = vpop.permute.xlu0 %1290
        %1292 = vrot.lane.b32.xlu0 %v526, 18
        %v1293 = vpop.permute.xlu0 %1292
        %1294 = vrot.lane.b32.xlu0 %v527, 18
        %v1295 = vpop.permute.xlu0 %1294
        %1296 = vrot.lane.b32.xlu0 %v529, 18
        %v1297 = vpop.permute.xlu0 %1296
        %1298 = vrot.lane.b32.xlu0 %v530, 18
        %v1299 = vpop.permute.xlu0 %1298
        %1300 = vrot.lane.b32.xlu0 %v532, 18
        %v1301 = vpop.permute.xlu0 %1300
        %1302 = vrot.lane.b32.xlu0 %v533, 18
        %v1303 = vpop.permute.xlu0 %1302
        %v1337 = vrot.slane %v532, 1
        %v1338 = vrot.slane %v533, 1
        %v1339 = vsel %vm583, %v1337, %v1338
        %v1340 = vrot.slane %v534, 1
        %v1341 = vsel %vm583, %v1338, %v1340
        %1342 = vrot.lane.b32.xlu0 %v596, 21
        %v1343 = vpop.permute.xlu0 %1342
        %1344 = vrot.lane.b32.xlu0 %v598, 21
        %v1345 = vpop.permute.xlu0 %1344
        %1346 = vrot.lane.b32.xlu0 %v601, 21
        %v1347 = vpop.permute.xlu0 %1346
        %1348 = vrot.lane.b32.xlu0 %v603, 21
        %v1349 = vpop.permute.xlu0 %1348
        %1350 = vrot.lane.b32.xlu0 %v606, 21
        %v1351 = vpop.permute.xlu0 %1350
        %1352 = vrot.lane.b32.xlu0 %v608, 21
        %v1353 = vpop.permute.xlu0 %1352
        %1354 = vrot.lane.b32.xlu0 %v611, 21
        %v1355 = vpop.permute.xlu0 %1354
        %1356 = vrot.lane.b32.xlu0 %v613, 21
        %v1357 = vpop.permute.xlu0 %1356
        %1358 = vrot.lane.b32.xlu0 %v616, 21
        %v1359 = vpop.permute.xlu0 %1358
        %1360 = vrot.lane.b32.xlu0 %v618, 21
        %v1361 = vpop.permute.xlu0 %1360
        %1362 = vrot.lane.b32.xlu0 %v621, 21
        %v1363 = vpop.permute.xlu0 %1362
        %1364 = vrot.lane.b32.xlu0 %v623, 21
        %v1365 = vpop.permute.xlu0 %1364
        %1366 = vrot.lane.b32.xlu0 %v626, 21
        %v1367 = vpop.permute.xlu0 %1366
        %1368 = vrot.lane.b32.xlu0 %v628, 21
        %v1369 = vpop.permute.xlu0 %1368
        %1370 = vrot.lane.b32.xlu0 %v631, 21
        %v1371 = vpop.permute.xlu0 %1370
        %1372 = vrot.lane.b32.xlu0 %v633, 21
        %v1373 = vpop.permute.xlu0 %1372
        %1374 = vrot.lane.b32.xlu0 %v636, 21
        %v1375 = vpop.permute.xlu0 %1374
        %1376 = vrot.lane.b32.xlu0 %v638, 21
        %v1377 = vpop.permute.xlu0 %1376
        %1378 = vrot.lane.b32.xlu0 %v641, 21
        %v1379 = vpop.permute.xlu0 %1378
        %1380 = vrot.lane.b32.xlu0 %v643, 21
        %v1381 = vpop.permute.xlu0 %1380
        %1382 = vrot.lane.b32.xlu0 %v646, 21
        %v1383 = vpop.permute.xlu0 %1382
        %1384 = vrot.lane.b32.xlu0 %v648, 21
        %v1385 = vpop.permute.xlu0 %1384
        %1386 = vrot.lane.b32.xlu0 %v651, 21
        %v1387 = vpop.permute.xlu0 %1386
        %1388 = vrot.lane.b32.xlu0 %v653, 21
        %v1389 = vpop.permute.xlu0 %1388
        %1390 = vrot.lane.b32.xlu0 %v656, 21
        %v1391 = vpop.permute.xlu0 %1390
        %1392 = vrot.lane.b32.xlu0 %v658, 21
        %v1393 = vpop.permute.xlu0 %1392
        %1394 = vrot.lane.b32.xlu0 %v661, 21
        %v1395 = vpop.permute.xlu0 %1394
        %1396 = vrot.lane.b32.xlu0 %v663, 21
        %v1397 = vpop.permute.xlu0 %1396
        %1398 = vrot.lane.b32.xlu0 %v1038, 21
        %v1399 = vpop.permute.xlu0 %1398
        %1400 = vrot.lane.b32.xlu0 %v1040, 21
        %v1401 = vpop.permute.xlu0 %1400
        %1402 = vrot.lane.b32.xlu0 %v1339, 21
        %v1403 = vpop.permute.xlu0 %1402
        %1404 = vrot.lane.b32.xlu0 %v1341, 21
        %v1405 = vpop.permute.xlu0 %1404
        %v1438 = vrot.slane %v532, 2
        %v1439 = vrot.slane %v533, 2
        %v1440 = vsel %vm760, %v1438, %v1439
        %v1441 = vrot.slane %v534, 2
        %v1442 = vsel %vm760, %v1439, %v1441
        %1443 = vrot.lane.b32.xlu0 %v773, 24
        %v1444 = vpop.permute.xlu0 %1443
        %1445 = vrot.lane.b32.xlu0 %v775, 24
        %v1446 = vpop.permute.xlu0 %1445
        %1447 = vrot.lane.b32.xlu0 %v778, 24
        %v1448 = vpop.permute.xlu0 %1447
        %1449 = vrot.lane.b32.xlu0 %v780, 24
        %v1450 = vpop.permute.xlu0 %1449
        %1451 = vrot.lane.b32.xlu0 %v783, 24
        %v1452 = vpop.permute.xlu0 %1451
        %1453 = vrot.lane.b32.xlu0 %v785, 24
        %v1454 = vpop.permute.xlu0 %1453
        %1455 = vrot.lane.b32.xlu0 %v788, 24
        %v1456 = vpop.permute.xlu0 %1455
        %1457 = vrot.lane.b32.xlu0 %v790, 24
        %v1458 = vpop.permute.xlu0 %1457
        %1459 = vrot.lane.b32.xlu0 %v793, 24
        %v1460 = vpop.permute.xlu0 %1459
        %1461 = vrot.lane.b32.xlu0 %v795, 24
        %v1462 = vpop.permute.xlu0 %1461
        %1463 = vrot.lane.b32.xlu0 %v798, 24
        %v1464 = vpop.permute.xlu0 %1463
        %1465 = vrot.lane.b32.xlu0 %v800, 24
        %v1466 = vpop.permute.xlu0 %1465
        %1467 = vrot.lane.b32.xlu0 %v803, 24
        %v1468 = vpop.permute.xlu0 %1467
        %1469 = vrot.lane.b32.xlu0 %v805, 24
        %v1470 = vpop.permute.xlu0 %1469
        %1471 = vrot.lane.b32.xlu0 %v808, 24
        %v1472 = vpop.permute.xlu0 %1471
        %1473 = vrot.lane.b32.xlu0 %v810, 24
        %v1474 = vpop.permute.xlu0 %1473
        %1475 = vrot.lane.b32.xlu0 %v813, 24
        %v1476 = vpop.permute.xlu0 %1475
        %1477 = vrot.lane.b32.xlu0 %v815, 24
        %v1478 = vpop.permute.xlu0 %1477
        %1479 = vrot.lane.b32.xlu0 %v818, 24
        %v1480 = vpop.permute.xlu0 %1479
        %1481 = vrot.lane.b32.xlu0 %v820, 24
        %v1482 = vpop.permute.xlu0 %1481
        %1483 = vrot.lane.b32.xlu0 %v823, 24
        %v1484 = vpop.permute.xlu0 %1483
        %1485 = vrot.lane.b32.xlu0 %v825, 24
        %v1486 = vpop.permute.xlu0 %1485
        %1487 = vrot.lane.b32.xlu0 %v828, 24
        %v1488 = vpop.permute.xlu0 %1487
        %1489 = vrot.lane.b32.xlu0 %v830, 24
        %v1490 = vpop.permute.xlu0 %1489
        %1491 = vrot.lane.b32.xlu0 %v833, 24
        %v1492 = vpop.permute.xlu0 %1491
        %1493 = vrot.lane.b32.xlu0 %v835, 24
        %v1494 = vpop.permute.xlu0 %1493
        %1495 = vrot.lane.b32.xlu0 %v838, 24
        %v1496 = vpop.permute.xlu0 %1495
        %1497 = vrot.lane.b32.xlu0 %v840, 24
        %v1498 = vpop.permute.xlu0 %1497
        %1499 = vrot.lane.b32.xlu0 %v1139, 24
        %v1500 = vpop.permute.xlu0 %1499
        %1501 = vrot.lane.b32.xlu0 %v1141, 24
        %v1502 = vpop.permute.xlu0 %1501
        %1503 = vrot.lane.b32.xlu0 %v1440, 24
        %v1504 = vpop.permute.xlu0 %1503
        %1505 = vrot.lane.b32.xlu0 %v1442, 24
        %v1506 = vpop.permute.xlu0 %1505
        %v1539 = vsel %vm374, %v481, %v665
        %v1540 = vsel %vm374, %v482, %v667
        %v1541 = vsel %vm374, %v484, %v669
        %v1542 = vsel %vm374, %v485, %v671
        %v1543 = vsel %vm374, %v487, %v673
        %v1544 = vsel %vm374, %v488, %v675
        %v1545 = vsel %vm374, %v490, %v677
        %v1546 = vsel %vm374, %v491, %v679
        %v1547 = vsel %vm374, %v493, %v681
        %v1548 = vsel %vm374, %v494, %v683
        %v1549 = vsel %vm374, %v496, %v685
        %v1550 = vsel %vm374, %v497, %v687
        %v1551 = vsel %vm374, %v499, %v689
        %v1552 = vsel %vm374, %v500, %v691
        %v1553 = vsel %vm374, %v502, %v693
        %v1554 = vsel %vm374, %v503, %v695
        %v1555 = vsel %vm374, %v505, %v697
        %v1556 = vsel %vm374, %v506, %v699
        %v1557 = vsel %vm374, %v508, %v701
        %v1558 = vsel %vm374, %v509, %v703
        %v1559 = vsel %vm374, %v511, %v705
        %v1560 = vsel %vm374, %v512, %v707
        %v1561 = vsel %vm374, %v514, %v709
        %v1562 = vsel %vm374, %v515, %v711
        %v1563 = vsel %vm374, %v517, %v713
        %v1564 = vsel %vm374, %v518, %v715
        %v1565 = vsel %vm374, %v520, %v717
        %v1566 = vsel %vm374, %v521, %v719
        %v1567 = vsel %vm374, %v523, %v721
        %v1568 = vsel %vm374, %v524, %v723
        %v1569 = vsel %vm374, %v526, %v725
        %v1570 = vsel %vm374, %v527, %v727
        %vm1571 = vcmask 48128
        %v1572 = vsel %vm1571, %v1539, %v842
        %v1573 = vsel %vm1571, %v1540, %v844
        %v1574 = vsel %vm1571, %v1541, %v846
        %v1575 = vsel %vm1571, %v1542, %v848
        %v1576 = vsel %vm1571, %v1543, %v850
        %v1577 = vsel %vm1571, %v1544, %v852
        %v1578 = vsel %vm1571, %v1545, %v854
        %v1579 = vsel %vm1571, %v1546, %v856
        %v1580 = vsel %vm1571, %v1547, %v858
        %v1581 = vsel %vm1571, %v1548, %v860
        %v1582 = vsel %vm1571, %v1549, %v862
        %v1583 = vsel %vm1571, %v1550, %v864
        %v1584 = vsel %vm1571, %v1551, %v866
        %v1585 = vsel %vm1571, %v1552, %v868
        %v1586 = vsel %vm1571, %v1553, %v870
        %v1587 = vsel %vm1571, %v1554, %v872
        %v1588 = vsel %vm1571, %v1555, %v874
        %v1589 = vsel %vm1571, %v1556, %v876
        %v1590 = vsel %vm1571, %v1557, %v878
        %v1591 = vsel %vm1571, %v1558, %v880
        %v1592 = vsel %vm1571, %v1559, %v882
        %v1593 = vsel %vm1571, %v1560, %v884
        %v1594 = vsel %vm1571, %v1561, %v886
        %v1595 = vsel %vm1571, %v1562, %v888
        %v1596 = vsel %vm1571, %v1563, %v890
        %v1597 = vsel %vm1571, %v1564, %v892
        %v1598 = vsel %vm1571, %v1565, %v894
        %v1599 = vsel %vm1571, %v1566, %v896
        %v1600 = vsel %vm1571, %v1567, %v898
        %v1601 = vsel %vm1571, %v1568, %v900
        %v1602 = vsel %vm1571, %v1569, %v902
        %v1603 = vsel %vm1571, %v1570, %v904
        %vm1604 = vcmask 72704
        %v1605 = vsel %vm1604, %v1572, %v940
        %v1606 = vsel %vm1604, %v1573, %v942
        %v1607 = vsel %vm1604, %v1574, %v944
        %v1608 = vsel %vm1604, %v1575, %v946
        %v1609 = vsel %vm1604, %v1576, %v948
        %v1610 = vsel %vm1604, %v1577, %v950
        %v1611 = vsel %vm1604, %v1578, %v952
        %v1612 = vsel %vm1604, %v1579, %v954
        %v1613 = vsel %vm1604, %v1580, %v956
        %v1614 = vsel %vm1604, %v1581, %v958
        %v1615 = vsel %vm1604, %v1582, %v960
        %v1616 = vsel %vm1604, %v1583, %v962
        %v1617 = vsel %vm1604, %v1584, %v964
        %v1618 = vsel %vm1604, %v1585, %v966
        %v1619 = vsel %vm1604, %v1586, %v968
        %v1620 = vsel %vm1604, %v1587, %v970
        %v1621 = vsel %vm1604, %v1588, %v972
        %v1622 = vsel %vm1604, %v1589, %v974
        %v1623 = vsel %vm1604, %v1590, %v976
        %v1624 = vsel %vm1604, %v1591, %v978
        %v1625 = vsel %vm1604, %v1592, %v980
        %v1626 = vsel %vm1604, %v1593, %v982
        %v1627 = vsel %vm1604, %v1594, %v984
        %v1628 = vsel %vm1604, %v1595, %v986
        %v1629 = vsel %vm1604, %v1596, %v988
        %v1630 = vsel %vm1604, %v1597, %v990
        %v1631 = vsel %vm1604, %v1598, %v992
        %v1632 = vsel %vm1604, %v1599, %v994
        %v1633 = vsel %vm1604, %v1600, %v996
        %v1634 = vsel %vm1604, %v1601, %v998
        %v1635 = vsel %vm1604, %v1602, %v1000
        %v1636 = vsel %vm1604, %v1603, %v1002
        %vm1637 = vcmask 97280
        %v1638 = vsel %vm1637, %v1605, %v1042
        %v1639 = vsel %vm1637, %v1606, %v1044
        %v1640 = vsel %vm1637, %v1607, %v1046
        %v1641 = vsel %vm1637, %v1608, %v1048
        %v1642 = vsel %vm1637, %v1609, %v1050
        %v1643 = vsel %vm1637, %v1610, %v1052
        %v1644 = vsel %vm1637, %v1611, %v1054
        %v1645 = vsel %vm1637, %v1612, %v1056
        %v1646 = vsel %vm1637, %v1613, %v1058
        %v1647 = vsel %vm1637, %v1614, %v1060
        %v1648 = vsel %vm1637, %v1615, %v1062
        %v1649 = vsel %vm1637, %v1616, %v1064
        %v1650 = vsel %vm1637, %v1617, %v1066
        %v1651 = vsel %vm1637, %v1618, %v1068
        %v1652 = vsel %vm1637, %v1619, %v1070
        %v1653 = vsel %vm1637, %v1620, %v1072
        %v1654 = vsel %vm1637, %v1621, %v1074
        %v1655 = vsel %vm1637, %v1622, %v1076
        %v1656 = vsel %vm1637, %v1623, %v1078
        %v1657 = vsel %vm1637, %v1624, %v1080
        %v1658 = vsel %vm1637, %v1625, %v1082
        %v1659 = vsel %vm1637, %v1626, %v1084
        %v1660 = vsel %vm1637, %v1627, %v1086
        %v1661 = vsel %vm1637, %v1628, %v1088
        %v1662 = vsel %vm1637, %v1629, %v1090
        %v1663 = vsel %vm1637, %v1630, %v1092
        %v1664 = vsel %vm1637, %v1631, %v1094
        %v1665 = vsel %vm1637, %v1632, %v1096
        %v1666 = vsel %vm1637, %v1633, %v1098
        %v1667 = vsel %vm1637, %v1634, %v1100
        %v1668 = vsel %vm1637, %v1635, %v1102
        %v1669 = vsel %vm1637, %v1636, %v1104
        %vm1670 = vcmask 121856
        %v1671 = vsel %vm1670, %v1638, %v1143
        %v1672 = vsel %vm1670, %v1639, %v1145
        %v1673 = vsel %vm1670, %v1640, %v1147
        %v1674 = vsel %vm1670, %v1641, %v1149
        %v1675 = vsel %vm1670, %v1642, %v1151
        %v1676 = vsel %vm1670, %v1643, %v1153
        %v1677 = vsel %vm1670, %v1644, %v1155
        %v1678 = vsel %vm1670, %v1645, %v1157
        %v1679 = vsel %vm1670, %v1646, %v1159
        %v1680 = vsel %vm1670, %v1647, %v1161
        %v1681 = vsel %vm1670, %v1648, %v1163
        %v1682 = vsel %vm1670, %v1649, %v1165
        %v1683 = vsel %vm1670, %v1650, %v1167
        %v1684 = vsel %vm1670, %v1651, %v1169
        %v1685 = vsel %vm1670, %v1652, %v1171
        %v1686 = vsel %vm1670, %v1653, %v1173
        %v1687 = vsel %vm1670, %v1654, %v1175
        %v1688 = vsel %vm1670, %v1655, %v1177
        %v1689 = vsel %vm1670, %v1656, %v1179
        %v1690 = vsel %vm1670, %v1657, %v1181
        %v1691 = vsel %vm1670, %v1658, %v1183
        %v1692 = vsel %vm1670, %v1659, %v1185
        %v1693 = vsel %vm1670, %v1660, %v1187
        %v1694 = vsel %vm1670, %v1661, %v1189
        %v1695 = vsel %vm1670, %v1662, %v1191
        %v1696 = vsel %vm1670, %v1663, %v1193
        %v1697 = vsel %vm1670, %v1664, %v1195
        %v1698 = vsel %vm1670, %v1665, %v1197
        %v1699 = vsel %vm1670, %v1666, %v1199
        %v1700 = vsel %vm1670, %v1667, %v1201
        %v1701 = vsel %vm1670, %v1668, %v1203
        %v1702 = vsel %vm1670, %v1669, %v1205
        %vm1703 = vcmask 146432
        %v1704 = vsel %vm1703, %v1671, %v1241
        %v1705 = vsel %vm1703, %v1672, %v1243
        %v1706 = vsel %vm1703, %v1673, %v1245
        %v1707 = vsel %vm1703, %v1674, %v1247
        %v1708 = vsel %vm1703, %v1675, %v1249
        %v1709 = vsel %vm1703, %v1676, %v1251
        %v1710 = vsel %vm1703, %v1677, %v1253
        %v1711 = vsel %vm1703, %v1678, %v1255
        %v1712 = vsel %vm1703, %v1679, %v1257
        %v1713 = vsel %vm1703, %v1680, %v1259
        %v1714 = vsel %vm1703, %v1681, %v1261
        %v1715 = vsel %vm1703, %v1682, %v1263
        %v1716 = vsel %vm1703, %v1683, %v1265
        %v1717 = vsel %vm1703, %v1684, %v1267
        %v1718 = vsel %vm1703, %v1685, %v1269
        %v1719 = vsel %vm1703, %v1686, %v1271
        %v1720 = vsel %vm1703, %v1687, %v1273
        %v1721 = vsel %vm1703, %v1688, %v1275
        %v1722 = vsel %vm1703, %v1689, %v1277
        %v1723 = vsel %vm1703, %v1690, %v1279
        %v1724 = vsel %vm1703, %v1691, %v1281
        %v1725 = vsel %vm1703, %v1692, %v1283
        %v1726 = vsel %vm1703, %v1693, %v1285
        %v1727 = vsel %vm1703, %v1694, %v1287
        %v1728 = vsel %vm1703, %v1695, %v1289
        %v1729 = vsel %vm1703, %v1696, %v1291
        %v1730 = vsel %vm1703, %v1697, %v1293
        %v1731 = vsel %vm1703, %v1698, %v1295
        %v1732 = vsel %vm1703, %v1699, %v1297
        %v1733 = vsel %vm1703, %v1700, %v1299
        %v1734 = vsel %vm1703, %v1701, %v1301
        %v1735 = vsel %vm1703, %v1702, %v1303
        %vm1736 = vcmask 171008
        %v1737 = vsel %vm1736, %v1704, %v1343
        %v1738 = vsel %vm1736, %v1705, %v1345
        %v1739 = vsel %vm1736, %v1706, %v1347
        %v1740 = vsel %vm1736, %v1707, %v1349
        %v1741 = vsel %vm1736, %v1708, %v1351
        %v1742 = vsel %vm1736, %v1709, %v1353
        %v1743 = vsel %vm1736, %v1710, %v1355
        %v1744 = vsel %vm1736, %v1711, %v1357
        %v1745 = vsel %vm1736, %v1712, %v1359
        %v1746 = vsel %vm1736, %v1713, %v1361
        %v1747 = vsel %vm1736, %v1714, %v1363
        %v1748 = vsel %vm1736, %v1715, %v1365
        %v1749 = vsel %vm1736, %v1716, %v1367
        %v1750 = vsel %vm1736, %v1717, %v1369
        %v1751 = vsel %vm1736, %v1718, %v1371
        %v1752 = vsel %vm1736, %v1719, %v1373
        %v1753 = vsel %vm1736, %v1720, %v1375
        %v1754 = vsel %vm1736, %v1721, %v1377
        %v1755 = vsel %vm1736, %v1722, %v1379
        %v1756 = vsel %vm1736, %v1723, %v1381
        %v1757 = vsel %vm1736, %v1724, %v1383
        %v1758 = vsel %vm1736, %v1725, %v1385
        %v1759 = vsel %vm1736, %v1726, %v1387
        %v1760 = vsel %vm1736, %v1727, %v1389
        %v1761 = vsel %vm1736, %v1728, %v1391
        %v1762 = vsel %vm1736, %v1729, %v1393
        %v1763 = vsel %vm1736, %v1730, %v1395
        %v1764 = vsel %vm1736, %v1731, %v1397
        %v1765 = vsel %vm1736, %v1732, %v1399
        %v1766 = vsel %vm1736, %v1733, %v1401
        %v1767 = vsel %vm1736, %v1734, %v1403
        %v1768 = vsel %vm1736, %v1735, %v1405
        %vm1769 = vcmask 195584
        %v1770 = vsel %vm1769, %v1737, %v1444
        %v1771 = vsel %vm1769, %v1738, %v1446
        %v1772 = vsel %vm1769, %v1739, %v1448
        %v1773 = vsel %vm1769, %v1740, %v1450
        %v1774 = vsel %vm1769, %v1741, %v1452
        %v1775 = vsel %vm1769, %v1742, %v1454
        %v1776 = vsel %vm1769, %v1743, %v1456
        %v1777 = vsel %vm1769, %v1744, %v1458
        %v1778 = vsel %vm1769, %v1745, %v1460
        %v1779 = vsel %vm1769, %v1746, %v1462
        %v1780 = vsel %vm1769, %v1747, %v1464
        %v1781 = vsel %vm1769, %v1748, %v1466
        %v1782 = vsel %vm1769, %v1749, %v1468
        %v1783 = vsel %vm1769, %v1750, %v1470
        %v1784 = vsel %vm1769, %v1751, %v1472
        %v1785 = vsel %vm1769, %v1752, %v1474
        %v1786 = vsel %vm1769, %v1753, %v1476
        %v1787 = vsel %vm1769, %v1754, %v1478
        %v1788 = vsel %vm1769, %v1755, %v1480
        %v1789 = vsel %vm1769, %v1756, %v1482
        %v1790 = vsel %vm1769, %v1757, %v1484
        %v1791 = vsel %vm1769, %v1758, %v1486
        %v1792 = vsel %vm1769, %v1759, %v1488
        %v1793 = vsel %vm1769, %v1760, %v1490
        %v1794 = vsel %vm1769, %v1761, %v1492
        %v1795 = vsel %vm1769, %v1762, %v1494
        %v1796 = vsel %vm1769, %v1763, %v1496
        %v1797 = vsel %vm1769, %v1764, %v1498
        %v1798 = vsel %vm1769, %v1765, %v1500
        %v1799 = vsel %vm1769, %v1766, %v1502
        %v1800 = vsel %vm1769, %v1767, %v1504
        %v1801 = vsel %vm1769, %v1768, %v1506
        %v1802 = vld [vmem:[%s1] sm:$0xff]
        %v1803 = vld [vmem:[%s1 + $0x8] sm:$0xff]
        %v1804 = vld [vmem:[%s1 + $0x10] sm:$0xff]
        %v1805 = vld [vmem:[%s1 + $0x18] sm:$0x7]
        %v1806 = vld [vmem:[%s2] sm:$0x1]
        %v1808 = vlaneseq
        %v1809 = vshrl.u32 %v1808, 7
        %v1810 = vsub.s32 0, %v1809
        %v1811 = vrot.slane %v1806, %v1810
        %vm1813 = vcmask 220160
        %v1815 = vsel %vm1813, %v1770, 0
        %v1818 = vsel %vm1813, %v1771, 0
        %v1821 = vsel %vm1813, %v1772, 0
        %v1824 = vsel %vm1813, %v1773, 0
        %v1827 = vsel %vm1813, %v1774, 0
        %v1830 = vsel %vm1813, %v1775, 0
        %v1833 = vsel %vm1813, %v1776, 0
        %v1836 = vsel %vm1813, %v1777, 0
        %v1839 = vsel %vm1813, %v1778, 0
        %v1842 = vsel %vm1813, %v1779, 0
        %v1845 = vsel %vm1813, %v1780, 0
        %v1848 = vsel %vm1813, %v1781, 0
        %v1851 = vsel %vm1813, %v1782, 0
        %v1854 = vsel %vm1813, %v1783, 0
        %v1857 = vsel %vm1813, %v1784, 0
        %v1860 = vsel %vm1813, %v1785, 0
        %v1863 = vsel %vm1813, %v1786, 0
        %v1866 = vsel %vm1813, %v1787, 0
        %v1869 = vsel %vm1813, %v1788, 0
        %v1872 = vsel %vm1813, %v1789, 0
        %v1875 = vsel %vm1813, %v1790, 0
        %v1878 = vsel %vm1813, %v1791, 0
        %v1881 = vsel %vm1813, %v1792, 0
        %v1884 = vsel %vm1813, %v1793, 0
        %v1887 = vsel %vm1813, %v1794, 0
        %v1890 = vsel %vm1813, %v1795, 0
        %v1893 = vsel %vm1813, %v1796, 0
        %v1896 = vsel %vm1813, %v1797, 0
        %v1899 = vsel %vm1813, %v1798, 0
        %v1902 = vsel %vm1813, %v1799, 0
        %v1905 = vsel %vm1813, %v1800, 0
        %v1908 = vsel %vm1813, %v1801, 0
        %vm1910 = vcmask 1042432
        %v1912 = vsel %vm1910, %v1805, 0
        %1914 = vmatprep.subr.mxu0 0.0
        %1915 = vmatpush1.msra.mxu0 %v1802
        %1916 = vmatprep.subr.mxu0 0.0
        %1917 = vmatpush1.msra.mxu0 %v1803
        %1918 = vmatprep.subr.mxu0 0.0
        %1919 = vmatpush1.msra.mxu0 %v1804
        %1920 = vmatprep.subr.mxu0 0.0
        %1921 = vmatpush1.msra.mxu0 %v1912
        %1922 = vmatprep.subr.mxu0 0.0
        %1923 = vmatpush1.msra.mxu0 0.0
        %1924 = vmatprep.subr.mxu0 0.0
        %1925 = vmatpush1.msra.mxu0 0.0
        %1926 = vmatprep.subr.mxu0 0.0
        %1927 = vmatpush1.msra.mxu0 0.0
        %1928 = vmatprep.subr.mxu0 0.0
        %1929 = vmatpush1.msra.mxu0 0.0
        %1930 = vmatprep.subr.mxu0 0.0
        %1931 = vmatpush1.msra.mxu0 0.0
        %1932 = vmatprep.subr.mxu0 0.0
        %1933 = vmatpush1.msra.mxu0 0.0
        %1934 = vmatprep.subr.mxu0 0.0
        %1935 = vmatpush1.msra.mxu0 0.0
        %1936 = vmatprep.subr.mxu0 0.0
        %1937 = vmatpush1.msra.mxu0 0.0
        %1938 = vmatprep.subr.mxu0 0.0
        %1939 = vmatpush1.msra.mxu0 0.0
        %1940 = vmatprep.subr.mxu0 0.0
        %1941 = vmatpush1.msra.mxu0 0.0
        %1942 = vmatprep.subr.mxu0 0.0
        %1943 = vmatpush1.msra.mxu0 0.0
        %1944 = vmatprep.subr.mxu0 0.0
        %1945 = vmatpush1.msra.mxu0 0.0
        %1946 = vmatprep.subr.mxu0 0.0
        %1947 = vmatpush1.msra.mxu0 0.0
        %1948 = vmatprep.subr.mxu0 0.0
        %1949 = vmatpush1.msra.mxu0 0.0
        %1950 = vmatprep.subr.mxu0 0.0
        %1951 = vmatpush1.msra.mxu0 0.0
        %1952 = vmatprep.subr.mxu0 0.0
        %1953 = vmatpush1.msra.mxu0 0.0
        %1954 = vmatprep.subr.mxu0 0.0
        %1955 = vmatpush1.msra.mxu0 0.0
        %1956 = vmatprep.subr.mxu0 0.0
        %1957 = vmatpush1.msra.mxu0 0.0
        %1958 = vmatprep.subr.mxu0 0.0
        %1959 = vmatpush1.msra.mxu0 0.0
        %1960 = vmatprep.subr.mxu0 0.0
        %1961 = vmatpush1.msra.mxu0 0.0
        %1962 = vmatprep.subr.mxu0 0.0
        %1963 = vmatpush1.msra.mxu0 0.0
        %1964 = vmatprep.subr.mxu0 0.0
        %1965 = vmatpush1.msra.mxu0 0.0
        %1966 = vmatprep.subr.mxu0 0.0
        %1967 = vmatpush1.msra.mxu0 0.0
        %1968 = vmatprep.subr.mxu0 0.0
        %1969 = vmatpush1.msra.mxu0 0.0
        %1970 = vmatprep.subr.mxu0 0.0
        %1971 = vmatpush1.msra.mxu0 0.0
        %1972 = vmatprep.subr.mxu0 0.0
        %1973 = vmatpush1.msra.mxu0 0.0
        %1974 = vmatprep.subr.mxu0 0.0
        %1975 = vmatpush1.msra.mxu0 0.0
        %1976 = vmatprep.subr.mxu0 0.0
        %1977 = vmatpush1.msra.mxu0 0.0
        %1978 = vmatprep.mubr.f32.mxu0 0.0
        %1979 = vmatmul.mubr.f32.gmra.mrb[0].mxu0 %v1815
        %v1980 = vpop.f32.mrb[0].mxu0
        %v1981 = vadd.f32 %v1811, %v1980
        %v1982 = vpop.f32.mrb[0].mxu0
        %1983 = vmatprep.mubr.f32.mxu0 0.0
        %1984 = vmatmul.mubr.f32.gmra.mrb[0].mxu0 %v1818
        %v1985 = vpop.f32.mrb[0].mxu0
        %v1986 = vadd.f32 %v1811, %v1985
        %v1987 = vpop.f32.mrb[0].mxu0
        %1988 = vmatprep.mubr.f32.mxu0 0.0
        %1989 = vmatmul.mubr.f32.gmra.mrb[0].mxu0 %v1821
        %v1990 = vpop.f32.mrb[0].mxu0
        %v1991 = vadd.f32 %v1811, %v1990
        %v1992 = vpop.f32.mrb[0].mxu0
        %1993 = vmatprep.mubr.f32.mxu0 0.0
        %1994 = vmatmul.mubr.f32.gmra.mrb[0].mxu0 %v1824
        %v1995 = vpop.f32.mrb[0].mxu0
        %v1996 = vadd.f32 %v1811, %v1995
        %v1997 = vpop.f32.mrb[0].mxu0
        %1998 = vmatprep.mubr.f32.mxu0 0.0
        %1999 = vmatmul.mubr.f32.gmra.mrb[0].mxu0 %v1827
        %v2000 = vpop.f32.mrb[0].mxu0
        %v2001 = vadd.f32 %v1811, %v2000
        %v2002 = vpop.f32.mrb[0].mxu0
        %2003 = vmatprep.mubr.f32.mxu0 0.0
        %2004 = vmatmul.mubr.f32.gmra.mrb[0].mxu0 %v1830
        %v2005 = vpop.f32.mrb[0].mxu0
        %v2006 = vadd.f32 %v1811, %v2005
        %v2007 = vpop.f32.mrb[0].mxu0
        %2008 = vmatprep.mubr.f32.mxu0 0.0
        %2009 = vmatmul.mubr.f32.gmra.mrb[0].mxu0 %v1833
        %v2010 = vpop.f32.mrb[0].mxu0
        %v2011 = vadd.f32 %v1811, %v2010
        %v2012 = vpop.f32.mrb[0].mxu0
        %2013 = vmatprep.mubr.f32.mxu0 0.0
        %2014 = vmatmul.mubr.f32.gmra.mrb[0].mxu0 %v1836
        %v2015 = vpop.f32.mrb[0].mxu0
        %v2016 = vadd.f32 %v1811, %v2015
        %v2017 = vpop.f32.mrb[0].mxu0
        %2018 = vmatprep.mubr.f32.mxu0 0.0
        %2019 = vmatmul.mubr.f32.gmra.mrb[0].mxu0 %v1839
        %v2020 = vpop.f32.mrb[0].mxu0
        %v2021 = vadd.f32 %v1811, %v2020
        %v2022 = vpop.f32.mrb[0].mxu0
        %2023 = vmatprep.mubr.f32.mxu0 0.0
        %2024 = vmatmul.mubr.f32.gmra.mrb[0].mxu0 %v1842
        %v2025 = vpop.f32.mrb[0].mxu0
        %v2026 = vadd.f32 %v1811, %v2025
        %v2027 = vpop.f32.mrb[0].mxu0
        %2028 = vmatprep.mubr.f32.mxu0 0.0
        %2029 = vmatmul.mubr.f32.gmra.mrb[0].mxu0 %v1845
        %v2030 = vpop.f32.mrb[0].mxu0
        %v2031 = vadd.f32 %v1811, %v2030
        %v2032 = vpop.f32.mrb[0].mxu0
        %2033 = vmatprep.mubr.f32.mxu0 0.0
        %2034 = vmatmul.mubr.f32.gmra.mrb[0].mxu0 %v1848
        %v2035 = vpop.f32.mrb[0].mxu0
        %v2036 = vadd.f32 %v1811, %v2035
        %v2037 = vpop.f32.mrb[0].mxu0
        %2038 = vmatprep.mubr.f32.mxu0 0.0
        %2039 = vmatmul.mubr.f32.gmra.mrb[0].mxu0 %v1851
        %v2040 = vpop.f32.mrb[0].mxu0
        %v2041 = vadd.f32 %v1811, %v2040
        %v2042 = vpop.f32.mrb[0].mxu0
        %2043 = vmatprep.mubr.f32.mxu0 0.0
        %2044 = vmatmul.mubr.f32.gmra.mrb[0].mxu0 %v1854
        %v2045 = vpop.f32.mrb[0].mxu0
        %v2046 = vadd.f32 %v1811, %v2045
        %v2047 = vpop.f32.mrb[0].mxu0
        %2048 = vmatprep.mubr.f32.mxu0 0.0
        %2049 = vmatmul.mubr.f32.gmra.mrb[0].mxu0 %v1857
        %v2050 = vpop.f32.mrb[0].mxu0
        %v2051 = vadd.f32 %v1811, %v2050
        %v2052 = vpop.f32.mrb[0].mxu0
        %2053 = vmatprep.mubr.f32.mxu0 0.0
        %2054 = vmatmul.mubr.f32.gmra.mrb[0].mxu0 %v1860
        %v2055 = vpop.f32.mrb[0].mxu0
        %v2056 = vadd.f32 %v1811, %v2055
        %v2057 = vpop.f32.mrb[0].mxu0
        %2058 = vmatprep.mubr.f32.mxu0 0.0
        %2059 = vmatmul.mubr.f32.gmra.mrb[0].mxu0 %v1863
        %v2060 = vpop.f32.mrb[0].mxu0
        %v2061 = vadd.f32 %v1811, %v2060
        %v2062 = vpop.f32.mrb[0].mxu0
        %2063 = vmatprep.mubr.f32.mxu0 0.0
        %2064 = vmatmul.mubr.f32.gmra.mrb[0].mxu0 %v1866
        %v2065 = vpop.f32.mrb[0].mxu0
        %v2066 = vadd.f32 %v1811, %v2065
        %v2067 = vpop.f32.mrb[0].mxu0
        %2068 = vmatprep.mubr.f32.mxu0 0.0
        %2069 = vmatmul.mubr.f32.gmra.mrb[0].mxu0 %v1869
        %v2070 = vpop.f32.mrb[0].mxu0
        %v2071 = vadd.f32 %v1811, %v2070
        %v2072 = vpop.f32.mrb[0].mxu0
        %2073 = vmatprep.mubr.f32.mxu0 0.0
        %2074 = vmatmul.mubr.f32.gmra.mrb[0].mxu0 %v1872
        %v2075 = vpop.f32.mrb[0].mxu0
        %v2076 = vadd.f32 %v1811, %v2075
        %v2077 = vpop.f32.mrb[0].mxu0
        %2078 = vmatprep.mubr.f32.mxu0 0.0
        %2079 = vmatmul.mubr.f32.gmra.mrb[0].mxu0 %v1875
        %v2080 = vpop.f32.mrb[0].mxu0
        %v2081 = vadd.f32 %v1811, %v2080
        %v2082 = vpop.f32.mrb[0].mxu0
        %2083 = vmatprep.mubr.f32.mxu0 0.0
        %2084 = vmatmul.mubr.f32.gmra.mrb[0].mxu0 %v1878
        %v2085 = vpop.f32.mrb[0].mxu0
        %v2086 = vadd.f32 %v1811, %v2085
        %v2087 = vpop.f32.mrb[0].mxu0
        %2088 = vmatprep.mubr.f32.mxu0 0.0
        %2089 = vmatmul.mubr.f32.gmra.mrb[0].mxu0 %v1881
        %v2090 = vpop.f32.mrb[0].mxu0
        %v2091 = vadd.f32 %v1811, %v2090
        %v2092 = vpop.f32.mrb[0].mxu0
        %2093 = vmatprep.mubr.f32.mxu0 0.0
        %2094 = vmatmul.mubr.f32.gmra.mrb[0].mxu0 %v1884
        %v2095 = vpop.f32.mrb[0].mxu0
        %v2096 = vadd.f32 %v1811, %v2095
        %v2097 = vpop.f32.mrb[0].mxu0
        %2098 = vmatprep.mubr.f32.mxu0 0.0
        %2099 = vmatmul.mubr.f32.gmra.mrb[0].mxu0 %v1887
        %v2100 = vpop.f32.mrb[0].mxu0
        %v2101 = vadd.f32 %v1811, %v2100
        %v2102 = vpop.f32.mrb[0].mxu0
        %2103 = vmatprep.mubr.f32.mxu0 0.0
        %2104 = vmatmul.mubr.f32.gmra.mrb[0].mxu0 %v1890
        %v2105 = vpop.f32.mrb[0].mxu0
        %v2106 = vadd.f32 %v1811, %v2105
        %v2107 = vpop.f32.mrb[0].mxu0
        %2108 = vmatprep.mubr.f32.mxu0 0.0
        %2109 = vmatmul.mubr.f32.gmra.mrb[0].mxu0 %v1893
        %v2110 = vpop.f32.mrb[0].mxu0
        %v2111 = vadd.f32 %v1811, %v2110
        %v2112 = vpop.f32.mrb[0].mxu0
        %2113 = vmatprep.mubr.f32.mxu0 0.0
        %2114 = vmatmul.mubr.f32.gmra.mrb[0].mxu0 %v1896
        %v2115 = vpop.f32.mrb[0].mxu0
        %v2116 = vadd.f32 %v1811, %v2115
        %v2117 = vpop.f32.mrb[0].mxu0
        %2118 = vmatprep.mubr.f32.mxu0 0.0
        %2119 = vmatmul.mubr.f32.gmra.mrb[0].mxu0 %v1899
        %v2120 = vpop.f32.mrb[0].mxu0
        %v2121 = vadd.f32 %v1811, %v2120
        %v2122 = vpop.f32.mrb[0].mxu0
        %2123 = vmatprep.mubr.f32.mxu0 0.0
        %2124 = vmatmul.mubr.f32.gmra.mrb[0].mxu0 %v1902
        %v2125 = vpop.f32.mrb[0].mxu0
        %v2126 = vadd.f32 %v1811, %v2125
        %v2127 = vpop.f32.mrb[0].mxu0
        %2128 = vmatprep.mubr.f32.mxu0 0.0
        %2129 = vmatmul.mubr.f32.gmra.mrb[0].mxu0 %v1905
        %v2130 = vpop.f32.mrb[0].mxu0
        %v2131 = vpop.f32.mrb[0].mxu0
        %2132 = vmatprep.mubr.f32.mxu0 0.0
        %2133 = vmatmul.mubr.f32.gmra.mrb[0].mxu0 %v1908
        %v2134 = vpop.f32.mrb[0].mxu0
        %v2135 = vpop.f32.mrb[0].mxu0
        %2136 = vdwg.mxu0
        %s2137 = sld [smem:[#allocation3]]
        %vm2138 = vcmp.ge.f32.partialorder %v1981, 0.0
        %vm2139 = vcmp.ge.f32.partialorder %v1986, 0.0
        %vm2140 = vcmp.ge.f32.partialorder %v1991, 0.0
        %vm2141 = vcmp.ge.f32.partialorder %v1996, 0.0
        %vm2142 = vcmp.ge.f32.partialorder %v2001, 0.0
        %vm2143 = vcmp.ge.f32.partialorder %v2006, 0.0
        %vm2144 = vcmp.ge.f32.partialorder %v2011, 0.0
        %vm2145 = vcmp.ge.f32.partialorder %v2016, 0.0
        %vm2146 = vcmp.ge.f32.partialorder %v2021, 0.0
        %vm2147 = vcmp.ge.f32.partialorder %v2026, 0.0
        %vm2148 = vcmp.ge.f32.partialorder %v2031, 0.0
        %vm2149 = vcmp.ge.f32.partialorder %v2036, 0.0
        %vm2150 = vcmp.ge.f32.partialorder %v2041, 0.0
        %vm2151 = vcmp.ge.f32.partialorder %v2046, 0.0
        %vm2152 = vcmp.ge.f32.partialorder %v2051, 0.0
        %vm2153 = vcmp.ge.f32.partialorder %v2056, 0.0
        %vm2154 = vcmp.ge.f32.partialorder %v2061, 0.0
        %vm2155 = vcmp.ge.f32.partialorder %v2066, 0.0
        %vm2156 = vcmp.ge.f32.partialorder %v2071, 0.0
        %vm2157 = vcmp.ge.f32.partialorder %v2076, 0.0
        %vm2158 = vcmp.ge.f32.partialorder %v2081, 0.0
        %vm2159 = vcmp.ge.f32.partialorder %v2086, 0.0
        %vm2160 = vcmp.ge.f32.partialorder %v2091, 0.0
        %vm2161 = vcmp.ge.f32.partialorder %v2096, 0.0
        %vm2162 = vcmp.ge.f32.partialorder %v2101, 0.0
        %vm2163 = vcmp.ge.f32.partialorder %v2106, 0.0
        %vm2164 = vcmp.ge.f32.partialorder %v2111, 0.0
        %vm2165 = vcmp.ge.f32.partialorder %v2116, 0.0
        %vm2166 = vcmp.ge.f32.partialorder %v2121, 0.0
        %vm2167 = vcmp.ge.f32.partialorder %v2126, 0.0
        %v2168 = vstv %s2137
        %v2169 = vmul.f32 %v2168, %v1981
        %v2170 = vmul.f32 %v2168, %v1986
        %v2171 = vmul.f32 %v2168, %v1991
        %v2172 = vmul.f32 %v2168, %v1996
        %v2173 = vmul.f32 %v2168, %v2001
        %v2174 = vmul.f32 %v2168, %v2006
        %v2175 = vmul.f32 %v2168, %v2011
        %v2176 = vmul.f32 %v2168, %v2016
        %v2177 = vmul.f32 %v2168, %v2021
        %v2178 = vmul.f32 %v2168, %v2026
        %v2179 = vmul.f32 %v2168, %v2031
        %v2180 = vmul.f32 %v2168, %v2036
        %v2181 = vmul.f32 %v2168, %v2041
        %v2182 = vmul.f32 %v2168, %v2046
        %v2183 = vmul.f32 %v2168, %v2051
        %v2184 = vmul.f32 %v2168, %v2056
        %v2185 = vmul.f32 %v2168, %v2061
        %v2186 = vmul.f32 %v2168, %v2066
        %v2187 = vmul.f32 %v2168, %v2071
        %v2188 = vmul.f32 %v2168, %v2076
        %v2189 = vmul.f32 %v2168, %v2081
        %v2190 = vmul.f32 %v2168, %v2086
        %v2191 = vmul.f32 %v2168, %v2091
        %v2192 = vmul.f32 %v2168, %v2096
        %v2193 = vmul.f32 %v2168, %v2101
        %v2194 = vmul.f32 %v2168, %v2106
        %v2195 = vmul.f32 %v2168, %v2111
        %v2196 = vmul.f32 %v2168, %v2116
        %v2197 = vmul.f32 %v2168, %v2121
        %v2198 = vmul.f32 %v2168, %v2126
        %v2199 = vsel %vm2138, %v1981, %v2169
        %v2200 = vsel %vm2139, %v1986, %v2170
        %v2201 = vsel %vm2140, %v1991, %v2171
        %v2202 = vsel %vm2141, %v1996, %v2172
        %v2203 = vsel %vm2142, %v2001, %v2173
        %v2204 = vsel %vm2143, %v2006, %v2174
        %v2205 = vsel %vm2144, %v2011, %v2175
        %v2206 = vsel %vm2145, %v2016, %v2176
        %v2207 = vsel %vm2146, %v2021, %v2177
        %v2208 = vsel %vm2147, %v2026, %v2178
        %v2209 = vsel %vm2148, %v2031, %v2179
        %v2210 = vsel %vm2149, %v2036, %v2180
        %v2211 = vsel %vm2150, %v2041, %v2181
        %v2212 = vsel %vm2151, %v2046, %v2182
        %v2213 = vsel %vm2152, %v2051, %v2183
        %v2214 = vsel %vm2153, %v2056, %v2184
        %v2215 = vsel %vm2154, %v2061, %v2185
        %v2216 = vsel %vm2155, %v2066, %v2186
        %v2217 = vsel %vm2156, %v2071, %v2187
        %v2218 = vsel %vm2157, %v2076, %v2188
        %v2219 = vsel %vm2158, %v2081, %v2189
        %v2220 = vsel %vm2159, %v2086, %v2190
        %v2221 = vsel %vm2160, %v2091, %v2191
        %v2222 = vsel %vm2161, %v2096, %v2192
        %v2223 = vsel %vm2162, %v2101, %v2193
        %v2224 = vsel %vm2163, %v2106, %v2194
        %v2225 = vsel %vm2164, %v2111, %v2195
        %v2226 = vsel %vm2165, %v2116, %v2196
        %v2227 = vsel %vm2166, %v2121, %v2197
        %v2228 = vsel %vm2167, %v2126, %v2198
        %v2229 = vmax.f32 %v2199, %v2201
        %v2230 = vmax.f32 %v2200, %v2202
        %v2231 = vmax.f32 %v2203, %v2205
        %v2232 = vmax.f32 %v2204, %v2206
        %v2233 = vmax.f32 %v2207, %v2209
        %v2234 = vmax.f32 %v2208, %v2210
        %v2235 = vmax.f32 %v2211, %v2213
        %v2236 = vmax.f32 %v2212, %v2214
        %v2237 = vmax.f32 %v2215, %v2217
        %v2238 = vmax.f32 %v2216, %v2218
        %v2239 = vmax.f32 %v2219, %v2221
        %v2240 = vmax.f32 %v2220, %v2222
        %v2241 = vmax.f32 %v2223, %v2225
        %v2242 = vmax.f32 %v2224, %v2226
        %v2243 = vmax.f32 %v2229, %v2203
        %v2244 = vmax.f32 %v2230, %v2204
        %v2245 = vmax.f32 %v2231, %v2207
        %v2246 = vmax.f32 %v2232, %v2208
        %v2247 = vmax.f32 %v2233, %v2211
        %v2248 = vmax.f32 %v2234, %v2212
        %v2249 = vmax.f32 %v2235, %v2215
        %v2250 = vmax.f32 %v2236, %v2216
        %v2251 = vmax.f32 %v2237, %v2219
        %v2252 = vmax.f32 %v2238, %v2220
        %v2253 = vmax.f32 %v2239, %v2223
        %v2254 = vmax.f32 %v2240, %v2224
        %v2255 = vmax.f32 %v2241, %v2227
        %v2256 = vmax.f32 %v2242, %v2228
        %v2271 = vrot.slane %v2243, 1
        %v2272 = vrot.slane %v2244, 1
        %v2273 = vsel %vm583, %v2271, %v2272
        %v2274 = vrot.slane %v2245, 1
        %v2275 = vrot.slane %v2246, 1
        %v2276 = vsel %vm583, %v2274, %v2275
        %v2277 = vrot.slane %v2247, 1
        %v2278 = vrot.slane %v2248, 1
        %v2279 = vsel %vm583, %v2277, %v2278
        %v2280 = vrot.slane %v2249, 1
        %v2281 = vrot.slane %v2250, 1
        %v2282 = vsel %vm583, %v2280, %v2281
        %v2283 = vrot.slane %v2251, 1
        %v2284 = vrot.slane %v2252, 1
        %v2285 = vsel %vm583, %v2283, %v2284
        %v2286 = vrot.slane %v2253, 1
        %v2287 = vrot.slane %v2254, 1
        %v2288 = vsel %vm583, %v2286, %v2287
        %v2289 = vrot.slane %v2255, 1
        %v2290 = vrot.slane %v2256, 1
        %v2291 = vsel %vm583, %v2289, %v2290
        %v2306 = vmax.f32 %v2243, %v2273
        %v2307 = vmax.f32 %v2244, %v2272
        %v2308 = vmax.f32 %v2245, %v2276
        %v2309 = vmax.f32 %v2246, %v2275
        %v2310 = vmax.f32 %v2247, %v2279
        %v2311 = vmax.f32 %v2248, %v2278
        %v2312 = vmax.f32 %v2249, %v2282
        %v2313 = vmax.f32 %v2250, %v2281
        %v2314 = vmax.f32 %v2251, %v2285
        %v2315 = vmax.f32 %v2252, %v2284
        %v2316 = vmax.f32 %v2253, %v2288
        %v2317 = vmax.f32 %v2254, %v2287
        %v2318 = vmax.f32 %v2255, %v2291
        %v2319 = vmax.f32 %v2256, %v2290
        %v2320 = vrot.slane %v2243, 2
        %v2321 = vrot.slane %v2244, 2
        %v2322 = vsel %vm760, %v2320, %v2321
        %v2323 = vrot.slane %v2245, 2
        %v2324 = vrot.slane %v2246, 2
        %v2325 = vsel %vm760, %v2323, %v2324
        %v2326 = vrot.slane %v2247, 2
        %v2327 = vrot.slane %v2248, 2
        %v2328 = vsel %vm760, %v2326, %v2327
        %v2329 = vrot.slane %v2249, 2
        %v2330 = vrot.slane %v2250, 2
        %v2331 = vsel %vm760, %v2329, %v2330
        %v2332 = vrot.slane %v2251, 2
        %v2333 = vrot.slane %v2252, 2
        %v2334 = vsel %vm760, %v2332, %v2333
        %v2335 = vrot.slane %v2253, 2
        %v2336 = vrot.slane %v2254, 2
        %v2337 = vsel %vm760, %v2335, %v2336
        %v2338 = vrot.slane %v2255, 2
        %v2339 = vrot.slane %v2256, 2
        %v2340 = vsel %vm760, %v2338, %v2339
        %v2355 = vmax.f32 %v2306, %v2322
        %v2356 = vmax.f32 %v2307, %v2321
        %v2357 = vmax.f32 %v2308, %v2325
        %v2358 = vmax.f32 %v2309, %v2324
        %v2359 = vmax.f32 %v2310, %v2328
        %v2360 = vmax.f32 %v2311, %v2327
        %v2361 = vmax.f32 %v2312, %v2331
        %v2362 = vmax.f32 %v2313, %v2330
        %v2363 = vmax.f32 %v2314, %v2334
        %v2364 = vmax.f32 %v2315, %v2333
        %v2365 = vmax.f32 %v2316, %v2337
        %v2366 = vmax.f32 %v2317, %v2336
        %v2367 = vmax.f32 %v2318, %v2340
        %v2368 = vmax.f32 %v2319, %v2339
        %v2376 = vrot.slane %v2355, 1
        %v2377 = vrot.slane %v2357, 1
        %v2378 = vrot.slane %v2359, 1
        %v2379 = vrot.slane %v2361, 1
        %v2380 = vrot.slane %v2363, 1
        %v2381 = vrot.slane %v2365, 1
        %v2382 = vrot.slane %v2367, 1
        %v2390 = vrot.slane %v2355, 2
        %v2391 = vrot.slane %v2357, 2
        %v2392 = vrot.slane %v2359, 2
        %v2393 = vrot.slane %v2361, 2
        %v2394 = vrot.slane %v2363, 2
        %v2395 = vrot.slane %v2365, 2
        %v2396 = vrot.slane %v2367, 2
        %v2404 = vrot.slane %v2355, 3
        %v2405 = vrot.slane %v2357, 3
        %v2406 = vrot.slane %v2359, 3
        %v2407 = vrot.slane %v2361, 3
        %v2408 = vrot.slane %v2363, 3
        %v2409 = vrot.slane %v2365, 3
        %v2410 = vrot.slane %v2367, 3
        %v2425 = vrot.slane %v2356, 4
        %v2426 = vrot.slane %v2358, 4
        %v2427 = vrot.slane %v2360, 4
        %v2428 = vrot.slane %v2362, 4
        %v2429 = vrot.slane %v2364, 4
        %v2430 = vrot.slane %v2366, 4
        %v2431 = vrot.slane %v2368, 4
        %v2439 = vrot.slane %v2356, 5
        %v2440 = vrot.slane %v2358, 5
        %v2441 = vrot.slane %v2360, 5
        %v2442 = vrot.slane %v2362, 5
        %v2443 = vrot.slane %v2364, 5
        %v2444 = vrot.slane %v2366, 5
        %v2445 = vrot.slane %v2368, 5
        %v2453 = vrot.slane %v2356, 6
        %v2454 = vrot.slane %v2358, 6
        %v2455 = vrot.slane %v2360, 6
        %v2456 = vrot.slane %v2362, 6
        %v2457 = vrot.slane %v2364, 6
        %v2458 = vrot.slane %v2366, 6
        %v2459 = vrot.slane %v2368, 6
        %vm2467 = vcmask 1040384
        %v2468 = vsel %vm2467, %v2355, %v2376
        %v2469 = vsel %vm2467, %v2357, %v2377
        %v2470 = vsel %vm2467, %v2359, %v2378
        %v2471 = vsel %vm2467, %v2361, %v2379
        %v2472 = vsel %vm2467, %v2363, %v2380
        %v2473 = vsel %vm2467, %v2365, %v2381
        %v2474 = vsel %vm2467, %v2367, %v2382
        %vm2475 = vcmask 1041408
        %v2476 = vsel %vm2475, %v2468, %v2390
        %v2477 = vsel %vm2475, %v2469, %v2391
        %v2478 = vsel %vm2475, %v2470, %v2392
        %v2479 = vsel %vm2475, %v2471, %v2393
        %v2480 = vsel %vm2475, %v2472, %v2394
        %v2481 = vsel %vm2475, %v2473, %v2395
        %v2482 = vsel %vm2475, %v2474, %v2396
        %v2483 = vsel %vm1910, %v2476, %v2404
        %v2484 = vsel %vm1910, %v2477, %v2405
        %v2485 = vsel %vm1910, %v2478, %v2406
        %v2486 = vsel %vm1910, %v2479, %v2407
        %v2487 = vsel %vm1910, %v2480, %v2408
        %v2488 = vsel %vm1910, %v2481, %v2409
        %v2489 = vsel %vm1910, %v2482, %v2410
        %vm2490 = vcmask 1043456
        %v2491 = vsel %vm2490, %v2483, %v2425
        %v2492 = vsel %vm2490, %v2484, %v2426
        %v2493 = vsel %vm2490, %v2485, %v2427
        %v2494 = vsel %vm2490, %v2486, %v2428
        %v2495 = vsel %vm2490, %v2487, %v2429
        %v2496 = vsel %vm2490, %v2488, %v2430
        %v2497 = vsel %vm2490, %v2489, %v2431
        %vm2498 = vcmask 1044480
        %v2499 = vsel %vm2498, %v2491, %v2439
        %v2500 = vsel %vm2498, %v2492, %v2440
        %v2501 = vsel %vm2498, %v2493, %v2441
        %v2502 = vsel %vm2498, %v2494, %v2442
        %v2503 = vsel %vm2498, %v2495, %v2443
        %v2504 = vsel %vm2498, %v2496, %v2444
        %v2505 = vsel %vm2498, %v2497, %v2445
        %v2506 = vsel %vm760, %v2499, %v2453
        %v2507 = vsel %vm760, %v2500, %v2454
        %v2508 = vsel %vm760, %v2501, %v2455
        %v2509 = vsel %vm760, %v2502, %v2456
        %v2510 = vsel %vm760, %v2503, %v2457
        %v2511 = vsel %vm760, %v2504, %v2458
        %v2512 = vsel %vm760, %v2505, %v2459
        %v2518 = vrot.slane %v2506, 1
        %v2519 = vrot.slane %v2507, 1
        %v2520 = vrot.slane %v2508, 1
        %v2521 = vrot.slane %v2509, 1
        %v2522 = vrot.slane %v2510, 1
        %2523 = vrot.lane.b32.xlu0 %v2518, 10
        %v2524 = vpop.permute.xlu0 %2523
        %2525 = vrot.lane.b32.xlu0 %v2519, 10
        %v2526 = vpop.permute.xlu0 %2525
        %2527 = vrot.lane.b32.xlu0 %v2520, 10
        %v2528 = vpop.permute.xlu0 %2527
        %2529 = vrot.lane.b32.xlu0 %v2521, 10
        %v2530 = vpop.permute.xlu0 %2529
        %2531 = vrot.lane.b32.xlu0 %v2522, 10
        %v2532 = vpop.permute.xlu0 %2531
        %v2538 = vrot.slane %v2506, 2
        %v2539 = vrot.slane %v2507, 2
        %v2540 = vrot.slane %v2508, 2
        %v2541 = vrot.slane %v2509, 2
        %v2542 = vrot.slane %v2510, 2
        %2543 = vrot.lane.b32.xlu0 %v2538, 20
        %v2544 = vpop.permute.xlu0 %2543
        %2545 = vrot.lane.b32.xlu0 %v2539, 20
        %v2546 = vpop.permute.xlu0 %2545
        %2547 = vrot.lane.b32.xlu0 %v2540, 20
        %v2548 = vpop.permute.xlu0 %2547
        %2549 = vrot.lane.b32.xlu0 %v2541, 20
        %v2550 = vpop.permute.xlu0 %2549
        %2551 = vrot.lane.b32.xlu0 %v2542, 20
        %v2552 = vpop.permute.xlu0 %2551
        %2559 = vrot.lane.b32.xlu0 %v2507, 30
        %v2560 = vpop.permute.xlu0 %2559
        %2561 = vrot.lane.b32.xlu0 %v2508, 30
        %v2562 = vpop.permute.xlu0 %2561
        %2563 = vrot.lane.b32.xlu0 %v2509, 30
        %v2564 = vpop.permute.xlu0 %2563
        %2565 = vrot.lane.b32.xlu0 %v2510, 30
        %v2566 = vpop.permute.xlu0 %2565
        %2567 = vrot.lane.b32.xlu0 %v2511, 30
        %v2568 = vpop.permute.xlu0 %2567
        %v2574 = vrot.slane %v2511, 1
        %2575 = vrot.lane.b32.xlu0 %v2519, 40
        %v2576 = vpop.permute.xlu0 %2575
        %2577 = vrot.lane.b32.xlu0 %v2520, 40
        %v2578 = vpop.permute.xlu0 %2577
        %2579 = vrot.lane.b32.xlu0 %v2521, 40
        %v2580 = vpop.permute.xlu0 %2579
        %2581 = vrot.lane.b32.xlu0 %v2522, 40
        %v2582 = vpop.permute.xlu0 %2581
        %2583 = vrot.lane.b32.xlu0 %v2574, 40
        %v2584 = vpop.permute.xlu0 %2583
        %v2590 = vrot.slane %v2511, 2
        %2591 = vrot.lane.b32.xlu0 %v2539, 50
        %v2592 = vpop.permute.xlu0 %2591
        %2593 = vrot.lane.b32.xlu0 %v2540, 50
        %v2594 = vpop.permute.xlu0 %2593
        %2595 = vrot.lane.b32.xlu0 %v2541, 50
        %v2596 = vpop.permute.xlu0 %2595
        %2597 = vrot.lane.b32.xlu0 %v2542, 50
        %v2598 = vpop.permute.xlu0 %2597
        %2599 = vrot.lane.b32.xlu0 %v2590, 50
        %v2600 = vpop.permute.xlu0 %2599
        %2607 = vrot.lane.b32.xlu0 %v2508, 60
        %v2608 = vpop.permute.xlu0 %2607
        %2609 = vrot.lane.b32.xlu0 %v2509, 60
        %v2610 = vpop.permute.xlu0 %2609
        %2611 = vrot.lane.b32.xlu0 %v2510, 60
        %v2612 = vpop.permute.xlu0 %2611
        %2613 = vrot.lane.b32.xlu0 %v2511, 60
        %v2614 = vpop.permute.xlu0 %2613
        %2615 = vrot.lane.b32.xlu0 %v2512, 60
        %v2616 = vpop.permute.xlu0 %2615
        %v2622 = vrot.slane %v2512, 1
        %2623 = vrot.lane.b32.xlu0 %v2520, 70
        %v2624 = vpop.permute.xlu0 %2623
        %2625 = vrot.lane.b32.xlu0 %v2521, 70
        %v2626 = vpop.permute.xlu0 %2625
        %2627 = vrot.lane.b32.xlu0 %v2522, 70
        %v2628 = vpop.permute.xlu0 %2627
        %2629 = vrot.lane.b32.xlu0 %v2574, 70
        %v2630 = vpop.permute.xlu0 %2629
        %2631 = vrot.lane.b32.xlu0 %v2622, 70
        %v2632 = vpop.permute.xlu0 %2631
        %v2638 = vrot.slane %v2512, 2
        %2639 = vrot.lane.b32.xlu0 %v2540, 80
        %v2640 = vpop.permute.xlu0 %2639
        %2641 = vrot.lane.b32.xlu0 %v2541, 80
        %v2642 = vpop.permute.xlu0 %2641
        %2643 = vrot.lane.b32.xlu0 %v2542, 80
        %v2644 = vpop.permute.xlu0 %2643
        %2645 = vrot.lane.b32.xlu0 %v2590, 80
        %v2646 = vpop.permute.xlu0 %2645
        %2647 = vrot.lane.b32.xlu0 %v2638, 80
        %v2648 = vpop.permute.xlu0 %2647
        %vm2654 = vcmask 80896
        %v2655 = vsel %vm2654, %v2506, %v2524
        %v2656 = vsel %vm2654, %v2507, %v2526
        %v2657 = vsel %vm2654, %v2508, %v2528
        %v2658 = vsel %vm2654, %v2509, %v2530
        %v2659 = vsel %vm2654, %v2510, %v2532
        %vm2660 = vcmask 162816
        %v2661 = vsel %vm2660, %v2655, %v2544
        %v2662 = vsel %vm2660, %v2656, %v2546
        %v2663 = vsel %vm2660, %v2657, %v2548
        %v2664 = vsel %vm2660, %v2658, %v2550
        %v2665 = vsel %vm2660, %v2659, %v2552
        %vm2666 = vcmask 244736
        %v2667 = vsel %vm2666, %v2661, %v2560
        %v2668 = vsel %vm2666, %v2662, %v2562
        %v2669 = vsel %vm2666, %v2663, %v2564
        %v2670 = vsel %vm2666, %v2664, %v2566
        %v2671 = vsel %vm2666, %v2665, %v2568
        %vm2672 = vcmask 326656
        %v2673 = vsel %vm2672, %v2667, %v2576
        %v2674 = vsel %vm2672, %v2668, %v2578
        %v2675 = vsel %vm2672, %v2669, %v2580
        %v2676 = vsel %vm2672, %v2670, %v2582
        %v2677 = vsel %vm2672, %v2671, %v2584
        %vm2678 = vcmask 408576
        %v2679 = vsel %vm2678, %v2673, %v2592
        %v2680 = vsel %vm2678, %v2674, %v2594
        %v2681 = vsel %vm2678, %v2675, %v2596
        %v2682 = vsel %vm2678, %v2676, %v2598
        %v2683 = vsel %vm2678, %v2677, %v2600
        %vm2684 = vcmask 490496
        %v2685 = vsel %vm2684, %v2679, %v2608
        %v2686 = vsel %vm2684, %v2680, %v2610
        %v2687 = vsel %vm2684, %v2681, %v2612
        %v2688 = vsel %vm2684, %v2682, %v2614
        %v2689 = vsel %vm2684, %v2683, %v2616
        %vm2690 = vcmask 572416
        %v2691 = vsel %vm2690, %v2685, %v2624
        %v2692 = vsel %vm2690, %v2686, %v2626
        %v2693 = vsel %vm2690, %v2687, %v2628
        %v2694 = vsel %vm2690, %v2688, %v2630
        %v2695 = vsel %vm2690, %v2689, %v2632
        %vm2696 = vcmask 654336
        %v2697 = vsel %vm2696, %v2691, %v2640
        %v2698 = vsel %vm2696, %v2692, %v2642
        %v2699 = vsel %vm2696, %v2693, %v2644
        %v2700 = vsel %vm2696, %v2694, %v2646
        %v2701 = vsel %vm2696, %v2695, %v2648
        %v2703 = vrot.slane %v2698, 3
        %v2706 = vrot.slane %v2699, 6
        %v2709 = vrot.slane %v2700, 1
        %v2712 = vrot.slane %v2701, 4
        %v2714 = vsel %vm2498, %v2697, %v2703
        %v2715 = vsel %vm2475, %v2703, %v2706
        %v2716 = vsel %vm583, %v2715, %v2709
        %v2717 = vsel %vm2490, %v2709, %v2712
        %v2718 = vld [vmem:[%s3] sm:$0xff]
        %v2719 = vld [vmem:[%s3 + $0x8] sm:$0xff]
        %v2720 = vld [vmem:[%s3 + $0x10] sm:$0xff]
        %v2721 = vld [vmem:[%s3 + $0x18] sm:$0xff]
        %v2722 = vld [vmem:[%s3 + $0x20] sm:$0xff]
        %v2723 = vld [vmem:[%s3 + $0x28] sm:$0xff]
        %v2724 = vld [vmem:[%s3 + $0x30] sm:$0xff]
        %v2725 = vld [vmem:[%s3 + $0x38] sm:$0xff]
        %v2726 = vld [vmem:[%s3 + $0x40] sm:$0xff]
        %v2727 = vld [vmem:[%s3 + $0x48] sm:$0xff]
        %v2728 = vld [vmem:[%s3 + $0x50] sm:$0xff]
        %v2729 = vld [vmem:[%s3 + $0x58] sm:$0x3]
        %v2730 = vld [vmem:[%s4] sm:$0x1]
        %v2732 = vlaneseq
        %v2733 = vshrl.u32 %v2732, 7
        %v2734 = vsub.s32 0, %v2733
        %v2735 = vrot.slane %v2730, %v2734
        %vm2737 = vcmask 736256
        %v2739 = vsel %vm2737, %v2714, 0
        %v2742 = vsel %vm2737, %v2716, 0
        %v2745 = vsel %vm2737, %v2717, 0
        %v2747 = vsel %vm2737, %v2712, 0
        %v2750 = vsel %vm2475, %v2729, 0
        %2752 = vmatprep.subr.mxu0 0.0
        %2753 = vmatpush1.msra.mxu0 %v2718
        %2754 = vmatprep.subr.mxu0 0.0
        %2755 = vmatpush1.msra.mxu0 %v2719
        %2756 = vmatprep.subr.mxu0 0.0
        %2757 = vmatpush1.msra.mxu0 %v2720
        %2758 = vmatprep.subr.mxu0 0.0
        %2759 = vmatpush1.msra.mxu0 %v2721
        %2760 = vmatprep.subr.mxu0 0.0
        %2761 = vmatpush1.msra.mxu0 %v2722
        %2762 = vmatprep.subr.mxu0 0.0
        %2763 = vmatpush1.msra.mxu0 %v2723
        %2764 = vmatprep.subr.mxu0 0.0
        %2765 = vmatpush1.msra.mxu0 %v2724
        %2766 = vmatprep.subr.mxu0 0.0
        %2767 = vmatpush1.msra.mxu0 %v2725
        %2768 = vmatprep.subr.mxu0 0.0
        %2769 = vmatpush1.msra.mxu0 %v2726
        %2770 = vmatprep.subr.mxu0 0.0
        %2771 = vmatpush1.msra.mxu0 %v2727
        %2772 = vmatprep.subr.mxu0 0.0
        %2773 = vmatpush1.msra.mxu0 %v2728
        %2774 = vmatprep.subr.mxu0 0.0
        %2775 = vmatpush1.msra.mxu0 %v2750
        %2776 = vmatprep.subr.mxu0 0.0
        %2777 = vmatpush1.msra.mxu0 0.0
        %2778 = vmatprep.subr.mxu0 0.0
        %2779 = vmatpush1.msra.mxu0 0.0
        %2780 = vmatprep.subr.mxu0 0.0
        %2781 = vmatpush1.msra.mxu0 0.0
        %2782 = vmatprep.subr.mxu0 0.0
        %2783 = vmatpush1.msra.mxu0 0.0
        %2784 = vmatprep.subr.mxu0 0.0
        %2785 = vmatpush1.msra.mxu0 0.0
        %2786 = vmatprep.subr.mxu0 0.0
        %2787 = vmatpush1.msra.mxu0 0.0
        %2788 = vmatprep.subr.mxu0 0.0
        %2789 = vmatpush1.msra.mxu0 0.0
        %2790 = vmatprep.subr.mxu0 0.0
        %2791 = vmatpush1.msra.mxu0 0.0
        %2792 = vmatprep.subr.mxu0 0.0
        %2793 = vmatpush1.msra.mxu0 0.0
        %2794 = vmatprep.subr.mxu0 0.0
        %2795 = vmatpush1.msra.mxu0 0.0
        %2796 = vmatprep.subr.mxu0 0.0
        %2797 = vmatpush1.msra.mxu0 0.0
        %2798 = vmatprep.subr.mxu0 0.0
        %2799 = vmatpush1.msra.mxu0 0.0
        %2800 = vmatprep.subr.mxu0 0.0
        %2801 = vmatpush1.msra.mxu0 0.0
        %2802 = vmatprep.subr.mxu0 0.0
        %2803 = vmatpush1.msra.mxu0 0.0
        %2804 = vmatprep.subr.mxu0 0.0
        %2805 = vmatpush1.msra.mxu0 0.0
        %2806 = vmatprep.subr.mxu0 0.0
        %2807 = vmatpush1.msra.mxu0 0.0
        %2808 = vmatprep.subr.mxu0 0.0
        %2809 = vmatpush1.msra.mxu0 0.0
        %2810 = vmatprep.subr.mxu0 0.0
        %2811 = vmatpush1.msra.mxu0 0.0
        %2812 = vmatprep.subr.mxu0 0.0
        %2813 = vmatpush1.msra.mxu0 0.0
        %2814 = vmatprep.subr.mxu0 0.0
        %2815 = vmatpush1.msra.mxu0 0.0
        %2816 = vmatprep.mubr.f32.mxu0 0.0
        %2817 = vmatmul.mubr.f32.gmra.mrb[0].mxu0 %v2739
        %v2818 = vpop.f32.mrb[0].mxu0
        %v2819 = vadd.f32 %v2735, %v2818
        %v2820 = vpop.f32.mrb[0].mxu0
        %2821 = vmatprep.mubr.f32.mxu0 0.0
        %2822 = vmatmul.mubr.f32.gmra.mrb[0].mxu0 %v2742
        %v2823 = vpop.f32.mrb[0].mxu0
        %v2824 = vadd.f32 %v2735, %v2823
        %v2825 = vpop.f32.mrb[0].mxu0
        %2826 = vmatprep.mubr.f32.mxu0 0.0
        %2827 = vmatmul.mubr.f32.gmra.mrb[0].mxu0 %v2745
        %v2828 = vpop.f32.mrb[0].mxu0
        %v2829 = vadd.f32 %v2735, %v2828
        %v2830 = vpop.f32.mrb[0].mxu0
        %2831 = vmatprep.mubr.f32.mxu0 0.0
        %2832 = vmatmul.mubr.f32.gmra.mrb[0].mxu0 %v2747
        %v2833 = vpop.f32.mrb[0].mxu0
        %v2834 = vadd.f32 %v2735, %v2833
        %v2835 = vpop.f32.mrb[0].mxu0
        %2836 = vdwg.mxu0
        %s2837 = sld [smem:[#allocation3 + $0x1]]
        %vm2838 = vcmp.ge.f32.partialorder %v2819, 0.0
        %vm2839 = vcmp.ge.f32.partialorder %v2824, 0.0
        %vm2840 = vcmp.ge.f32.partialorder %v2829, 0.0
        %vm2841 = vcmp.ge.f32.partialorder %v2834, 0.0
        %v2842 = vstv %s2837
        %v2843 = vmul.f32 %v2842, %v2819
        %v2844 = vmul.f32 %v2842, %v2824
        %v2845 = vmul.f32 %v2842, %v2829
        %v2846 = vmul.f32 %v2842, %v2834
        %v2847 = vsel %vm2838, %v2819, %v2843
        %v2848 = vsel %vm2839, %v2824, %v2844
        %v2849 = vsel %vm2840, %v2829, %v2845
        %v2850 = vsel %vm2841, %v2834, %v2846
        %v2853 = vrot.slane %v2847, 5
        %v2854 = vrot.slane %v2848, 5
        %v2855 = vsel %vm1910, %v2853, %v2854
        %v2857 = vrot.slane %v2848, 2
        %v2860 = vrot.slane %v2848, 7
        %v2861 = vrot.slane %v2849, 7
        %v2862 = vsel %vm2467, %v2860, %v2861
        %v2864 = vrot.slane %v2849, 4
        %v2865 = vrot.slane %v2850, 4
        %v2866 = vsel %vm2490, %v2864, %v2865
        %v2867 = vrot.slane %v2847, 1
        %v2868 = vrot.slane %v2855, 1
        %v2869 = vrot.slane %v2857, 1
        %2870 = vrot.lane.b32.xlu0 %v2867, 16
        %v2871 = vpop.permute.xlu0 %2870
        %2872 = vrot.lane.b32.xlu0 %v2868, 16
        %v2873 = vpop.permute.xlu0 %2872
        %2874 = vrot.lane.b32.xlu0 %v2869, 16
        %v2875 = vpop.permute.xlu0 %2874
        %v2879 = vrot.slane %v2847, 2
        %v2880 = vrot.slane %v2855, 2
        %v2881 = vrot.slane %v2857, 2
        %2882 = vrot.lane.b32.xlu0 %v2879, 32
        %v2883 = vpop.permute.xlu0 %2882
        %2884 = vrot.lane.b32.xlu0 %v2880, 32
        %v2885 = vpop.permute.xlu0 %2884
        %2886 = vrot.lane.b32.xlu0 %v2881, 32
        %v2887 = vpop.permute.xlu0 %2886
        %2891 = vrot.lane.b32.xlu0 %v2855, 48
        %v2892 = vpop.permute.xlu0 %2891
        %2893 = vrot.lane.b32.xlu0 %v2857, 48
        %v2894 = vpop.permute.xlu0 %2893
        %2895 = vrot.lane.b32.xlu0 %v2862, 48
        %v2896 = vpop.permute.xlu0 %2895
        %v2900 = vrot.slane %v2862, 1
        %2901 = vrot.lane.b32.xlu0 %v2868, 64
        %v2902 = vpop.permute.xlu0 %2901
        %2903 = vrot.lane.b32.xlu0 %v2869, 64
        %v2904 = vpop.permute.xlu0 %2903
        %2905 = vrot.lane.b32.xlu0 %v2900, 64
        %v2906 = vpop.permute.xlu0 %2905
        %v2910 = vrot.slane %v2862, 2
        %2911 = vrot.lane.b32.xlu0 %v2880, 80
        %v2912 = vpop.permute.xlu0 %2911
        %2913 = vrot.lane.b32.xlu0 %v2881, 80
        %v2914 = vpop.permute.xlu0 %2913
        %2915 = vrot.lane.b32.xlu0 %v2910, 80
        %v2916 = vpop.permute.xlu0 %2915
        %2920 = vrot.lane.b32.xlu0 %v2857, 96
        %v2921 = vpop.permute.xlu0 %2920
        %2922 = vrot.lane.b32.xlu0 %v2862, 96
        %v2923 = vpop.permute.xlu0 %2922
        %2924 = vrot.lane.b32.xlu0 %v2866, 96
        %v2925 = vpop.permute.xlu0 %2924
        %v2929 = vrot.slane %v2866, 1
        %2930 = vrot.lane.b32.xlu0 %v2869, 112
        %v2931 = vpop.permute.xlu0 %2930
        %2932 = vrot.lane.b32.xlu0 %v2900, 112
        %v2933 = vpop.permute.xlu0 %2932
        %2934 = vrot.lane.b32.xlu0 %v2929, 112
        %v2935 = vpop.permute.xlu0 %2934
        %v2939 = vrot.slane %v2866, 2
        %vm2941 = vcmask 130048
        %v2942 = vsel %vm2941, %v2847, %v2871
        %v2943 = vsel %vm2941, %v2855, %v2873
        %v2944 = vsel %vm2941, %v2857, %v2875
        %vm2945 = vcmask 261120
        %v2946 = vsel %vm2945, %v2942, %v2883
        %v2947 = vsel %vm2945, %v2943, %v2885
        %v2948 = vsel %vm2945, %v2944, %v2887
        %vm2949 = vcmask 392192
        %v2950 = vsel %vm2949, %v2946, %v2892
        %v2951 = vsel %vm2949, %v2947, %v2894
        %v2952 = vsel %vm2949, %v2948, %v2896
        %vm2953 = vcmask 523264
        %v2954 = vsel %vm2953, %v2950, %v2902
        %v2955 = vsel %vm2953, %v2951, %v2904
        %v2956 = vsel %vm2953, %v2952, %v2906
        %v2957 = vsel %vm2696, %v2954, %v2912
        %v2958 = vsel %vm2696, %v2955, %v2914
        %v2959 = vsel %vm2696, %v2956, %v2916
        %vm2960 = vcmask 785408
        %v2961 = vsel %vm2960, %v2957, %v2921
        %v2962 = vsel %vm2960, %v2958, %v2923
        %v2963 = vsel %vm2960, %v2959, %v2925
        %vm2964 = vcmask 916480
        %v2965 = vsel %vm2964, %v2961, %v2931
        %v2966 = vsel %vm2964, %v2962, %v2933
        %v2967 = vsel %vm2964, %v2963, %v2935
        %v2969 = vrot.slane %v2966, 5
        %v2970 = vrot.slane %v2910, 5
        %v2974 = vrot.slane %v2967, 2
        %v2975 = vrot.slane %v2939, 2
        %v2978 = vsel %vm1910, %v2965, %v2969
        %v2979 = vsel %vm1910, %v2881, %v2970
        %v2980 = vsel %vm760, %v2978, %v2974
        %v2981 = vsel %vm760, %v2979, %v2975
        %v2982 = vld [vmem:[%s5] sm:$0xff]
        %v2983 = vld [vmem:[%s5 + $0x8] sm:$0xff]
        %v2984 = vld [vmem:[%s5 + $0x10] sm:$0xff]
        %v2985 = vld [vmem:[%s5 + $0x18] sm:$0xff]
        %v2986 = vld [vmem:[%s5 + $0x20] sm:$0xff]
        %v2987 = vld [vmem:[%s5 + $0x28] sm:$0xff]
        %v2988 = vld [vmem:[%s5 + $0x30] sm:$0xff]
        %v2989 = vld [vmem:[%s5 + $0x38] sm:$0xff]
        %v2990 = vld [vmem:[%s5 + $0x40] sm:$0xff]
        %v2991 = vld [vmem:[%s5 + $0x48] sm:$0xff]
        %v2992 = vld [vmem:[%s5 + $0x50] sm:$0xff]
        %v2993 = vld [vmem:[%s5 + $0x58] sm:$0xff]
        %v2994 = vld [vmem:[%s5 + $0x60] sm:$0xff]
        %v2995 = vld [vmem:[%s5 + $0x68] sm:$0xff]
        %v2996 = vld [vmem:[%s5 + $0x70] sm:$0xff]
        %v2997 = vld [vmem:[%s5 + $0x78] sm:$0xff]
        %v2998 = vld [vmem:[%s5 + $0x80] sm:$0xff]
        %v2999 = vld [vmem:[%s5 + $0x88] sm:$0xff]
        %v3000 = vld [vmem:[%s6] sm:$0x1]
        %v3002 = vlaneseq
        %v3003 = vshrl.u32 %v3002, 7
        %v3004 = vsub.s32 0, %v3003
        %v3005 = vrot.slane %v3000, %v3004
        %v3008 = vsel %vm2941, %v2981, 0
        %v3010 = vsel %vm2941, %v2975, 0
        %3012 = vmatprep.subr.mxu0 0.0
        %3013 = vmatpush1.msra.mxu0 %v2982
        %3014 = vmatprep.subr.mxu0 0.0
        %3015 = vmatpush1.msra.mxu0 %v2983
        %3016 = vmatprep.subr.mxu0 0.0
        %3017 = vmatpush1.msra.mxu0 %v2984
        %3018 = vmatprep.subr.mxu0 0.0
        %3019 = vmatpush1.msra.mxu0 %v2985
        %3020 = vmatprep.subr.mxu0 0.0
        %3021 = vmatpush1.msra.mxu0 %v2986
        %3022 = vmatprep.subr.mxu0 0.0
        %3023 = vmatpush1.msra.mxu0 %v2987
        %3024 = vmatprep.subr.mxu0 0.0
        %3025 = vmatpush1.msra.mxu0 %v2988
        %3026 = vmatprep.subr.mxu0 0.0
        %3027 = vmatpush1.msra.mxu0 %v2989
        %3028 = vmatprep.subr.mxu0 0.0
        %3029 = vmatpush1.msra.mxu0 %v2990
        %3030 = vmatprep.subr.mxu0 0.0
        %3031 = vmatpush1.msra.mxu0 %v2991
        %3032 = vmatprep.subr.mxu0 0.0
        %3033 = vmatpush1.msra.mxu0 %v2992
        %3034 = vmatprep.subr.mxu0 0.0
        %3035 = vmatpush1.msra.mxu0 %v2993
        %3036 = vmatprep.subr.mxu0 0.0
        %3037 = vmatpush1.msra.mxu0 %v2994
        %3038 = vmatprep.subr.mxu0 0.0
        %3039 = vmatpush1.msra.mxu0 %v2995
        %3040 = vmatprep.subr.mxu0 0.0
        %3041 = vmatpush1.msra.mxu0 %v2996
        %3042 = vmatprep.subr.mxu0 0.0
        %3043 = vmatpush1.msra.mxu0 %v2997
        %3044 = vmatprep.subr.mxu0 0.0
        %3045 = vmatpush1.msra.mxu0 %v2998
        %3046 = vmatprep.subr.mxu0 0.0
        %3047 = vmatpush1.msra.mxu0 %v2999
        %3048 = vmatprep.subr.mxu0 0.0
        %3049 = vmatpush1.msra.mxu0 0.0
        %3050 = vmatprep.subr.mxu0 0.0
        %3051 = vmatpush1.msra.mxu0 0.0
        %3052 = vmatprep.subr.mxu0 0.0
        %3053 = vmatpush1.msra.mxu0 0.0
        %3054 = vmatprep.subr.mxu0 0.0
        %3055 = vmatpush1.msra.mxu0 0.0
        %3056 = vmatprep.subr.mxu0 0.0
        %3057 = vmatpush1.msra.mxu0 0.0
        %3058 = vmatprep.subr.mxu0 0.0
        %3059 = vmatpush1.msra.mxu0 0.0
        %3060 = vmatprep.subr.mxu0 0.0
        %3061 = vmatpush1.msra.mxu0 0.0
        %3062 = vmatprep.subr.mxu0 0.0
        %3063 = vmatpush1.msra.mxu0 0.0
        %3064 = vmatprep.subr.mxu0 0.0
        %3065 = vmatpush1.msra.mxu0 0.0
        %3066 = vmatprep.subr.mxu0 0.0
        %3067 = vmatpush1.msra.mxu0 0.0
        %3068 = vmatprep.subr.mxu0 0.0
        %3069 = vmatpush1.msra.mxu0 0.0
        %3070 = vmatprep.subr.mxu0 0.0
        %3071 = vmatpush1.msra.mxu0 0.0
        %3072 = vmatprep.subr.mxu0 0.0
        %3073 = vmatpush1.msra.mxu0 0.0
        %3074 = vmatprep.subr.mxu0 0.0
        %3075 = vmatpush1.msra.mxu0 0.0
        %3076 = vmatprep.mubr.f32.mxu0 %v3008
        %3077 = vmatmul.mubr.f32.gmra.mrb[0].mxu0 %v2980
        %v3078 = vpop.f32.mrb[0].mxu0
        %v3079 = vadd.f32 %v3005, %v3078
        %v3080 = vpop.f32.mrb[0].mxu0
        %3081 = vmatprep.mubr.f32.mxu0 %v3010
        %3082 = vmatmul.mubr.f32.gmra.mrb[0].mxu0 %v2974
        %v3083 = vpop.f32.mrb[0].mxu0
        %v3084 = vadd.f32 %v3005, %v3083
        %v3085 = vpop.f32.mrb[0].mxu0
        %3086 = vdwg.mxu0
        %s3087 = sld [smem:[#allocation3 + $0x2]]
        %vm3088 = vcmp.ge.f32.partialorder %v3079, 0.0
        %vm3089 = vcmp.ge.f32.partialorder %v3084, 0.0
        %v3090 = vstv %s3087
        %v3091 = vmul.f32 %v3090, %v3079
        %v3092 = vmul.f32 %v3090, %v3084
        %v3093 = vsel %vm3088, %v3079, %v3091
        %v3094 = vsel %vm3089, %v3084, %v3092
        %v3095 = vld [vmem:[%s7] sm:$0xff]
        %v3096 = vld [vmem:[%s7 + $0x8] sm:$0xff]
        %v3097 = vld [vmem:[%s7 + $0x10] sm:$0xff]
        %v3098 = vld [vmem:[%s7 + $0x18] sm:$0xff]
        %v3099 = vld [vmem:[%s8] sm:$0x1]
        %v3101 = vlaneseq
        %v3102 = vshrl.u32 %v3101, 7
        %v3103 = vsub.s32 0, %v3102
        %v3104 = vrot.slane %v3099, %v3103
        %v3107 = vsel %vm2945, %v3093, 0
        %v3110 = vsel %vm2945, %v3094, 0
        %3112 = vmatprep.subr.mxu0 0.0
        %3113 = vmatpush1.msra.mxu0 %v3095
        %3114 = vmatprep.subr.mxu0 0.0
        %3115 = vmatpush1.msra.mxu0 %v3096
        %3116 = vmatprep.subr.mxu0 0.0
        %3117 = vmatpush1.msra.mxu0 %v3097
        %3118 = vmatprep.subr.mxu0 0.0
        %3119 = vmatpush1.msra.mxu0 %v3098
        %3120 = vmatprep.subr.mxu0 0.0
        %3121 = vmatpush1.msra.mxu0 0.0
        %3122 = vmatprep.subr.mxu0 0.0
        %3123 = vmatpush1.msra.mxu0 0.0
        %3124 = vmatprep.subr.mxu0 0.0
        %3125 = vmatpush1.msra.mxu0 0.0
        %3126 = vmatprep.subr.mxu0 0.0
        %3127 = vmatpush1.msra.mxu0 0.0
        %3128 = vmatprep.subr.mxu0 0.0
        %3129 = vmatpush1.msra.mxu0 0.0
        %3130 = vmatprep.subr.mxu0 0.0
        %3131 = vmatpush1.msra.mxu0 0.0
        %3132 = vmatprep.subr.mxu0 0.0
        %3133 = vmatpush1.msra.mxu0 0.0
        %3134 = vmatprep.subr.mxu0 0.0
        %3135 = vmatpush1.msra.mxu0 0.0
        %3136 = vmatprep.subr.mxu0 0.0
        %3137 = vmatpush1.msra.mxu0 0.0
        %3138 = vmatprep.subr.mxu0 0.0
        %3139 = vmatpush1.msra.mxu0 0.0
        %3140 = vmatprep.subr.mxu0 0.0
        %3141 = vmatpush1.msra.mxu0 0.0
        %3142 = vmatprep.subr.mxu0 0.0
        %3143 = vmatpush1.msra.mxu0 0.0
        %3144 = vmatprep.subr.mxu0 0.0
        %3145 = vmatpush1.msra.mxu0 0.0
        %3146 = vmatprep.subr.mxu0 0.0
        %3147 = vmatpush1.msra.mxu0 0.0
        %3148 = vmatprep.subr.mxu0 0.0
        %3149 = vmatpush1.msra.mxu0 0.0
        %3150 = vmatprep.subr.mxu0 0.0
        %3151 = vmatpush1.msra.mxu0 0.0
        %3152 = vmatprep.subr.mxu0 0.0
        %3153 = vmatpush1.msra.mxu0 0.0
        %3154 = vmatprep.subr.mxu0 0.0
        %3155 = vmatpush1.msra.mxu0 0.0
        %3156 = vmatprep.subr.mxu0 0.0
        %3157 = vmatpush1.msra.mxu0 0.0
        %3158 = vmatprep.subr.mxu0 0.0
        %3159 = vmatpush1.msra.mxu0 0.0
        %3160 = vmatprep.subr.mxu0 0.0
        %3161 = vmatpush1.msra.mxu0 0.0
        %3162 = vmatprep.subr.mxu0 0.0
        %3163 = vmatpush1.msra.mxu0 0.0
        %3164 = vmatprep.subr.mxu0 0.0
        %3165 = vmatpush1.msra.mxu0 0.0
        %3166 = vmatprep.subr.mxu0 0.0
        %3167 = vmatpush1.msra.mxu0 0.0
        %3168 = vmatprep.subr.mxu0 0.0
        %3169 = vmatpush1.msra.mxu0 0.0
        %3170 = vmatprep.subr.mxu0 0.0
        %3171 = vmatpush1.msra.mxu0 0.0
        %3172 = vmatprep.subr.mxu0 0.0
        %3173 = vmatpush1.msra.mxu0 0.0
        %3174 = vmatprep.subr.mxu0 0.0
        %3175 = vmatpush1.msra.mxu0 0.0
        %3176 = vmatprep.mubr.f32.mxu0 0.0
        %3177 = vmatmul.mubr.f32.gmra.mrb[0].mxu0 %v3107
        %v3178 = vpop.f32.mrb[0].mxu0
        %v3179 = vadd.f32 %v3104, %v3178
        %v3180 = vpop.f32.mrb[0].mxu0
        %3181 = vmatprep.mubr.f32.mxu0 0.0
        %3182 = vmatmul.mubr.f32.gmra.mrb[0].mxu0 %v3110
        %v3183 = vpop.f32.mrb[0].mxu0
        %v3184 = vadd.f32 %v3104, %v3183
        %v3185 = vpop.f32.mrb[0].mxu0
        %3186 = vdwg.mxu0
        %v3187 = vlaneseq
        %v3188 = vand.u32 %v3187, 127
        %vm3189 = vcmp.eq.s32.totalorder %v3188, 0
        %v3190 = vxor.u32 %v3179, 2147483648
        %v3191 = vxor.u32 %v3184, 2147483648
        %v3192 = vmul.f32 %v3190, 1.442695
        %v3193 = vpow.pop %v3192
        %v3194 = vmul.f32 %v3191, 1.442695
        %v3195 = vpow.pop %v3194
        %v3196 = vadd.f32 %v3193, 1.0
        %v3197 = vadd.f32 %v3195, 1.0
        %v3198 = vrcp.pop %v3196
        %v3199 = vmul.f32 1.0, %v3198
        %v3200 = vrcp.pop %v3197
        %v3201 = vmul.f32 1.0, %v3200
        %v3202 = vsel %vm3189, %v3199, %v3179
        %v3203 = vsel %vm3189, %v3201, %v3184
        %vm3204 = vcmask 39936
        %3205 = vst.msk [vmem:[%s373] sm:$0xff] %vm3204, %v3202
        %vm3206 = vcmask 32768
        %3207 = vst.msk [vmem:[%s373 + $0x8] sm:$0x1] %vm3206, %v3203
        %p3208 = scmp.lt.s32.totalorder %s22, 1
        %s3209 = scalar_select %p3208, %s22, 1
        %s3210 = smul.addr %s3209, 2
        %s3211 = smul.addr %s3210, 8
        %s3212 = scalar_lea.vmem %s10, %s3211
        // Predicated region
        $region65: #{pnet_forward.1} parent=59 // pred_check
          %p3213 = pneg %p255
        $region66: #{pnet_forward.1} parent=59 // pred_check_branch
          %3215 = sbr.rel (%p3213) target = $region68
        $region67: #{pnet_forward.1} parent=59 // pred_region
          _
        $region68: #{pnet_forward.1} parent=59 // pred_fallthru
          _
      $region60: #{pnet_forward.1} parent=5 // pred_fallthru
        _
      %p3216 = scmp.le.s32.totalorder 2, %s17
      // Predicated region
      $region69: #{pnet_forward.1} parent=5 // pred_check
        %p3217 = pneg %p3216
      $region70: #{pnet_forward.1} parent=5 // pred_check_branch
        %3219 = sbr.rel (%p3217) target = $region72
      $region71: #{pnet_forward.1} parent=5 // pred_region
        %s3220 = ssub.s32 %s17, 2
        // Predicated region
        $region73: #{pnet_forward.1} parent=71 // pred_check
          %p3221 = pneg %p261
        $region74: #{pnet_forward.1} parent=71 // pred_check_branch
          %3223 = sbr.rel (%p3221) target = $region76
        $region75: #{pnet_forward.1} parent=71 // pred_region
          %p3224 = scmp.lt.s32.totalorder %s23, 1
          %s3225 = scalar_select %p3224, %s23, 1
          %s3226 = smul.addr %s3225, 2
          %s3227 = smul.addr %s3226, 8
          %s3228 = scalar_lea.vmem %s10, %s3227
        $region76: #{pnet_forward.1} parent=71 // pred_fallthru
          _
      $region72: #{pnet_forward.1} parent=5 // pred_fallthru
        _
    $region6: #{pnet_forward.1} parent=1 // loop_footer
      %s21 = sadd.s32 1, %s17
    $region7: #{pnet_forward.1} parent=1 // loop_footer_branch
      %16 = sbr.rel target = $region3
    $region8: #{pnet_forward.1} parent=1 // loop_exit
      _
    %3229 = vsyncpa [#allocation4], 1
    %s3230 = scalar_lea.sflag [#allocation4], 1
    %3231 = vsyncpa %s3230, 1

</llo_original>
